<compile_context>
chip_gen: v6e
topology: v6e:2x2x1
jax: 0.10.0
libtpu: 0.0.40
codegen_flags: <defaults>
</compile_context>

<pallas_src>
import numpy as np
import jax
import jax.numpy as jnp
from jax.experimental import pallas as pl
from jax.experimental.pallas import tpu as pltpu


# ------------------------- model hyper-parameters ---------------------------
IN_FRAME = 16      # in_frame_size (== out_frame_size, as in the training script)
HIDDEN = 32        # hidden_size
OUT_FRAME = 16     # out_frame_size
BATCH = 2
SEQ_LEN = 8
CONDITION_NUM = 5
GROUNDTRUTH_NUM = 5


def get_condition_lst(condition_num, groundtruth_num, seq_len):
    """Identical to acLSTM.get_condition_lst."""
    num_cycles = seq_len // (condition_num + groundtruth_num) + 1
    gt_lst = np.ones((num_cycles, groundtruth_num))
    con_lst = np.zeros((num_cycles, condition_num))
    lst = np.empty((num_cycles, condition_num + groundtruth_num), dtype=gt_lst.dtype)
    lst[:, :groundtruth_num] = gt_lst
    lst[:, groundtruth_num:] = con_lst
    return lst.reshape(-1)[:seq_len]


# ------------------------------ Pallas kernel -------------------------------
def _sigmoid(x):
    # Single EUP tanh instead of exp + divide.
    return 0.5 * (jnp.tanh(0.5 * x) + 1.0)


def _lstm_activation(gates, c):
    """PyTorch LSTMCell non-linearities, gate order (i, f, g, o).

    Both activations are applied to the full (B, 4H) tensor (2 EUP passes) and
    the gates sliced afterwards; extra columns get a bounded function applied
    and are simply discarded."""
    sg = _sigmoid(gates)
    tg = jnp.tanh(gates)
    i = sg[:, 0 * HIDDEN:1 * HIDDEN]
    f = sg[:, 1 * HIDDEN:2 * HIDDEN]
    g = tg[:, 2 * HIDDEN:3 * HIDDEN]
    o = sg[:, 3 * HIDDEN:4 * HIDDEN]
    c_new = f * c + i * g
    h_new = o * jnp.tanh(c_new)
    return h_new, c_new


def _make_kernel(cond, seq_len, batch):
    """Build the kernel with the (static) auto-conditioning mask baked in."""
    cond = np.asarray(cond)

    def kernel(seq_ref,                            # (B, S*IN) lane-dense input
               wih1_ref, whh1_ref, b1_ref,         # layer-1 params
               wih2_ref, whh2_ref, b2_ref,         # layer-2 params
               wih3_ref, whh3_ref, b3_ref,         # layer-3 params
               wdec_ref, bdec_ref,                 # decoder params
               out_ref):                           # (B, S*OUT) lane-dense output
        f32 = jnp.float32

        wih1 = wih1_ref[...]                       # (IN, 4H)
        b1 = b1_ref[...]                           # (1, 4H)

        # ---- decoder fold (computed once, off the serial chain) ------------
        # conditioned step:  x_t = h2_{t-1} @ Wdec + bdec
        #   => x_t @ Wih1 = h2_{t-1} @ (Wdec @ Wih1) + (bdec @ Wih1)
        wdec_wih1 = jnp.dot(wdec_ref[...], wih1, preferred_element_type=f32)   # (H, 4H)
        bias_cond = jnp.dot(bdec_ref[...], wih1, preferred_element_type=f32) + b1

        # ---- ground-truth layer-1 input projections (state independent) ----
        gt_gates = {}
        for t in range(seq_len):
            if cond[t] == 1:
                x_t = seq_ref[:, t * IN_FRAME:(t + 1) * IN_FRAME]              # (B, IN)
                gt_gates[t] = jnp.dot(x_t, wih1, preferred_element_type=f32) + b1

        h0 = jnp.zeros((batch, HIDDEN), f32)
        c0 = jnp.zeros((batch, HIDDEN), f32)
        h1 = jnp.zeros((batch, HIDDEN), f32)
        c1 = jnp.zeros((batch, HIDDEN), f32)
        h2 = jnp.zeros((batch, HIDDEN), f32)
        c2 = jnp.zeros((batch, HIDDEN), f32)
        h2_hist = []

        # Fully unrolled recurrence; `cond` is static so branches are Python
        # level.  Weights/biases are read from VMEM refs at point of use so the
        # register allocator is free to re-load instead of keeping every weight
        # vreg live across all 8 unrolled steps.
        for t in range(seq_len):
            if cond[t] == 1:
                # Ground-truth input: projection precomputed above.
                gates1 = gt_gates[t] + jnp.dot(h0, whh1_ref[...],
                                               preferred_element_type=f32)
            elif t == 0:
                # Conditioned on the initial all-zero out_frame (PyTorch init).
                gates1 = jnp.dot(h0, whh1_ref[...], preferred_element_type=f32) + b1
            else:
                # Conditioned on the previous prediction, decoder folded in.
                gates1 = (jnp.dot(h2, wdec_wih1, preferred_element_type=f32)
                          + jnp.dot(h0, whh1_ref[...], preferred_element_type=f32)
                          + bias_cond)
            h0, c0 = _lstm_activation(gates1, c0)

            gates2 = (jnp.dot(h0, wih2_ref[...], preferred_element_type=f32)
                      + jnp.dot(h1, whh2_ref[...], preferred_element_type=f32)
                      + b2_ref[...])
            h1, c1 = _lstm_activation(gates2, c1)

            gates3 = (jnp.dot(h1, wih3_ref[...], preferred_element_type=f32)
                      + jnp.dot(h2, whh3_ref[...], preferred_element_type=f32)
                      + b3_ref[...])
            h2, c2 = _lstm_activation(gates3, c2)
            h2_hist.append(h2)

        # ---- frame decode after the loop (independent, pipelined dots) -----
        wdec = wdec_ref[...]
        bdec = bdec_ref[...]
        frames = [jnp.dot(h, wdec, preferred_element_type=f32) + bdec
                  for h in h2_hist]
        # One unmasked, lane-dense (B, S*OUT) = (2, 128) store.
        out_ref[...] = jnp.concatenate(frames, axis=1)

    return kernel


# ------------------------------ Python wrapper -------------------------------
def aclstm_forward(real_seq, params, condition_num, groundtruth_num):
    """real_seq: [batch, seq, in_frame] (PyTorch layout). Returns [batch, seq, out_frame]."""
    B, S, IN = real_seq.shape
    assert IN == IN_FRAME and IN_FRAME == OUT_FRAME

    (wih1, whh1, b1, wih2, whh2, b2, wih3, whh3, b3, wdec, bdec) = params
    cond = get_condition_lst(condition_num, groundtruth_num, S)   # static numpy

    seq_flat = real_seq.reshape(B, S * IN)        # contiguous (free) reshape

    vmem = pl.BlockSpec(memory_space=pltpu.MemorySpace.VMEM)
    kernel = _make_kernel(cond, S, B)

    out_flat = pl.pallas_call(
        kernel,
        out_shape=jax.ShapeDtypeStruct((B, S * OUT_FRAME), jnp.float32),
        in_specs=[vmem] * 12,     # whole arrays resident in VMEM, grid=()
        out_specs=vmem,
    )(seq_flat, wih1, whh1, b1, wih2, whh2, b2, wih3, whh3, b3, wdec, bdec)

    return out_flat.reshape(B, S, OUT_FRAME)


# ---------------------------- parameter creation -----------------------------
def init_params(key):
    """Deterministic init, PyTorch-style uniform(-1/sqrt(H), 1/sqrt(H)).

    Weights are stored pre-transposed (input-dim first) and the two LSTMCell
    biases (b_ih + b_hh) are pre-summed; semantics are identical."""
    bound = 1.0 / np.sqrt(HIDDEN)

    def u(key, shape):
        return jax.random.uniform(key, shape, jnp.float32, -bound, bound)

    ks = jax.random.split(key, 16)
    # lstm1
    wih1 = u(ks[0], (IN_FRAME, 4 * HIDDEN))
    whh1 = u(ks[1], (HIDDEN, 4 * HIDDEN))
    b1 = u(ks[2], (1, 4 * HIDDEN)) + u(ks[3], (1, 4 * HIDDEN))
    # lstm2
    wih2 = u(ks[4], (HIDDEN, 4 * HIDDEN))
    whh2 = u(ks[5], (HIDDEN, 4 * HIDDEN))
    b2 = u(ks[6], (1, 4 * HIDDEN)) + u(ks[7], (1, 4 * HIDDEN))
    # lstm3
    wih3 = u(ks[8], (HIDDEN, 4 * HIDDEN))
    whh3 = u(ks[9], (HIDDEN, 4 * HIDDEN))
    b3 = u(ks[10], (1, 4 * HIDDEN)) + u(ks[11], (1, 4 * HIDDEN))
    # decoder
    wdec = u(ks[12], (HIDDEN, OUT_FRAME))
    bdec = u(ks[13], (1, OUT_FRAME))
    return (wih1, whh1, b1, wih2, whh2, b2, wih3, whh3, b3, wdec, bdec)


# ------------------------------ pure-JAX reference ---------------------------
def aclstm_reference(real_seq, params, condition_num, groundtruth_num):
    (wih1, whh1, b1, wih2, whh2, b2, wih3, whh3, b3, wdec, bdec) = params
    B, S, _ = real_seq.shape
    cond = get_condition_lst(condition_num, groundtruth_num, S)

    def cell(x, h, c, wih, whh, b):
        g = x @ wih + h @ whh + b
        i = jax.nn.sigmoid(g[:, 0 * HIDDEN:1 * HIDDEN])
        f = jax.nn.sigmoid(g[:, 1 * HIDDEN:2 * HIDDEN])
        gg = jnp.tanh(g[:, 2 * HIDDEN:3 * HIDDEN])
        o = jax.nn.sigmoid(g[:, 3 * HIDDEN:4 * HIDDEN])
        c_n = f * c + i * gg
        return o * jnp.tanh(c_n), c_n

    h = [jnp.zeros((B, HIDDEN), jnp.float32) for _ in range(3)]
    c = [jnp.zeros((B, HIDDEN), jnp.float32) for _ in range(3)]
    out_frame = jnp.zeros((B, OUT_FRAME), jnp.float32)
    outs = []
    for t in range(S):
        x = real_seq[:, t] if cond[t] == 1 else out_frame
        h[0], c[0] = cell(x, h[0], c[0], wih1, whh1, b1)
        h[1], c[1] = cell(h[0], h[1], c[1], wih2, whh2, b2)
        h[2], c[2] = cell(h[1], h[2], c[2], wih3, whh3, b3)
        out_frame = h[2] @ wdec + bdec
        outs.append(out_frame[:, None, :])
    return jnp.concatenate(outs, axis=1)


# ----------------------------------- main ------------------------------------
if __name__ == "__main__":
    key = jax.random.PRNGKey(0)
    k_params, k_data = jax.random.split(key)

    params = init_params(k_params)
    real_seq = jax.random.normal(k_data, (BATCH, SEQ_LEN, IN_FRAME), jnp.float32)

    fwd = jax.jit(aclstm_forward, static_argnums=(2, 3))
    out = fwd(real_seq, params, CONDITION_NUM, GROUNDTRUTH_NUM)
    out = jax.block_until_ready(out)

    ref = jax.block_until_ready(
        aclstm_reference(real_seq, params, CONDITION_NUM, GROUNDTRUTH_NUM))

    # Decoder fold + tanh-based sigmoid change f32 accumulation/approx order
    # slightly vs. the reference -> slightly looser tolerance than exact match.
    np.testing.assert_allclose(np.asarray(out), np.asarray(ref), rtol=1e-4, atol=1e-4)
    print("KERNEL_OK")
</pallas_src>

<mosaic_0001>
module attributes {stable_mosaic.version = 11 : i64} {
  func.func @kernel(%arg0: memref<2x128xf32, #tpu.memory_space<vmem>>, %arg1: memref<16x128xf32, #tpu.memory_space<vmem>>, %arg2: memref<32x128xf32, #tpu.memory_space<vmem>>, %arg3: memref<1x128xf32, #tpu.memory_space<vmem>>, %arg4: memref<32x128xf32, #tpu.memory_space<vmem>>, %arg5: memref<32x128xf32, #tpu.memory_space<vmem>>, %arg6: memref<1x128xf32, #tpu.memory_space<vmem>>, %arg7: memref<32x128xf32, #tpu.memory_space<vmem>>, %arg8: memref<32x128xf32, #tpu.memory_space<vmem>>, %arg9: memref<1x128xf32, #tpu.memory_space<vmem>>, %arg10: memref<32x16xf32, #tpu.memory_space<vmem>>, %arg11: memref<1x16xf32, #tpu.memory_space<vmem>>, %arg12: memref<2x128xf32, #tpu.memory_space<vmem>>) attributes {dimension_semantics = [], scalar_prefetch = 0 : i64, scratch_operands = 0 : i64, tpu.core_type = #tpu.core_type<tc>} {
    %c0 = arith.constant 0 : index
    %c0_0 = arith.constant 0 : index
    %0 = vector.load %arg1[%c0, %c0_0] : memref<16x128xf32, #tpu.memory_space<vmem>>, vector<16x128xf32>
    %c0_1 = arith.constant 0 : index
    %c0_2 = arith.constant 0 : index
    %1 = vector.load %arg3[%c0_1, %c0_2] : memref<1x128xf32, #tpu.memory_space<vmem>>, vector<1x128xf32>
    %c0_3 = arith.constant 0 : index
    %c0_4 = arith.constant 0 : index
    %2 = vector.load %arg10[%c0_3, %c0_4] : memref<32x16xf32, #tpu.memory_space<vmem>>, vector<32x16xf32>
    %cst = arith.constant dense<0.000000e+00> : vector<32x128xf32>
    %3 = tpu.matmul %2, %0, %cst {dimension_numbers = #tpu.dot_dimension_numbers<[1], [0], [0], [1], [0, 0, 1, 1], [], []>} : vector<32x16xf32>, vector<16x128xf32>, vector<32x128xf32> -> vector<32x128xf32>
    %c0_5 = arith.constant 0 : index
    %c0_6 = arith.constant 0 : index
    %4 = vector.load %arg11[%c0_5, %c0_6] : memref<1x16xf32, #tpu.memory_space<vmem>>, vector<1x16xf32>
    %cst_7 = arith.constant dense<0.000000e+00> : vector<1x128xf32>
    %5 = tpu.matmul %4, %0, %cst_7 {dimension_numbers = #tpu.dot_dimension_numbers<[1], [0], [0], [1], [0, 0, 1, 1], [], []>} : vector<1x16xf32>, vector<16x128xf32>, vector<1x128xf32> -> vector<1x128xf32>
    %6 = arith.addf %5, %1 : vector<1x128xf32>
    %c0_8 = arith.constant 0 : index
    %c0_9 = arith.constant 0 : index
    %7 = vector.load %arg0[%c0_8, %c0_9] : memref<2x128xf32, #tpu.memory_space<vmem>>, vector<2x16xf32>
    %cst_10 = arith.constant dense<0.000000e+00> : vector<2x128xf32>
    %8 = tpu.matmul %7, %0, %cst_10 {dimension_numbers = #tpu.dot_dimension_numbers<[1], [0], [0], [1], [0, 0, 1, 1], [], []>} : vector<2x16xf32>, vector<16x128xf32>, vector<2x128xf32> -> vector<2x128xf32>
    %9 = vector.broadcast %1 : vector<1x128xf32> to vector<2x128xf32>
    %10 = arith.addf %8, %9 : vector<2x128xf32>
    %c0_11 = arith.constant 0 : index
    %c16 = arith.constant 16 : index
    %11 = vector.load %arg0[%c0_11, %c16] : memref<2x128xf32, #tpu.memory_space<vmem>>, vector<2x16xf32>
    %cst_12 = arith.constant dense<0.000000e+00> : vector<2x128xf32>
    %12 = tpu.matmul %11, %0, %cst_12 {dimension_numbers = #tpu.dot_dimension_numbers<[1], [0], [0], [1], [0, 0, 1, 1], [], []>} : vector<2x16xf32>, vector<16x128xf32>, vector<2x128xf32> -> vector<2x128xf32>
    %13 = vector.broadcast %1 : vector<1x128xf32> to vector<2x128xf32>
    %14 = arith.addf %12, %13 : vector<2x128xf32>
    %c0_13 = arith.constant 0 : index
    %c32 = arith.constant 32 : index
    %15 = vector.load %arg0[%c0_13, %c32] : memref<2x128xf32, #tpu.memory_space<vmem>>, vector<2x16xf32>
    %cst_14 = arith.constant dense<0.000000e+00> : vector<2x128xf32>
    %16 = tpu.matmul %15, %0, %cst_14 {dimension_numbers = #tpu.dot_dimension_numbers<[1], [0], [0], [1], [0, 0, 1, 1], [], []>} : vector<2x16xf32>, vector<16x128xf32>, vector<2x128xf32> -> vector<2x128xf32>
    %17 = vector.broadcast %1 : vector<1x128xf32> to vector<2x128xf32>
    %18 = arith.addf %16, %17 : vector<2x128xf32>
    %c0_15 = arith.constant 0 : index
    %c48 = arith.constant 48 : index
    %19 = vector.load %arg0[%c0_15, %c48] : memref<2x128xf32, #tpu.memory_space<vmem>>, vector<2x16xf32>
    %cst_16 = arith.constant dense<0.000000e+00> : vector<2x128xf32>
    %20 = tpu.matmul %19, %0, %cst_16 {dimension_numbers = #tpu.dot_dimension_numbers<[1], [0], [0], [1], [0, 0, 1, 1], [], []>} : vector<2x16xf32>, vector<16x128xf32>, vector<2x128xf32> -> vector<2x128xf32>
    %21 = vector.broadcast %1 : vector<1x128xf32> to vector<2x128xf32>
    %22 = arith.addf %20, %21 : vector<2x128xf32>
    %c0_17 = arith.constant 0 : index
    %c64 = arith.constant 64 : index
    %23 = vector.load %arg0[%c0_17, %c64] : memref<2x128xf32, #tpu.memory_space<vmem>>, vector<2x16xf32>
    %cst_18 = arith.constant dense<0.000000e+00> : vector<2x128xf32>
    %24 = tpu.matmul %23, %0, %cst_18 {dimension_numbers = #tpu.dot_dimension_numbers<[1], [0], [0], [1], [0, 0, 1, 1], [], []>} : vector<2x16xf32>, vector<16x128xf32>, vector<2x128xf32> -> vector<2x128xf32>
    %25 = vector.broadcast %1 : vector<1x128xf32> to vector<2x128xf32>
    %26 = arith.addf %24, %25 : vector<2x128xf32>
    %cst_19 = arith.constant 0.000000e+00 : f32
    %27 = vector.broadcast %cst_19 : f32 to vector<2x32xf32>
    %cst_20 = arith.constant 0.000000e+00 : f32
    %28 = vector.broadcast %cst_20 : f32 to vector<2x32xf32>
    %cst_21 = arith.constant 0.000000e+00 : f32
    %29 = vector.broadcast %cst_21 : f32 to vector<2x32xf32>
    %cst_22 = arith.constant 0.000000e+00 : f32
    %30 = vector.broadcast %cst_22 : f32 to vector<2x32xf32>
    %cst_23 = arith.constant 0.000000e+00 : f32
    %31 = vector.broadcast %cst_23 : f32 to vector<2x32xf32>
    %cst_24 = arith.constant 0.000000e+00 : f32
    %32 = vector.broadcast %cst_24 : f32 to vector<2x32xf32>
    %c0_25 = arith.constant 0 : index
    %c0_26 = arith.constant 0 : index
    %33 = vector.load %arg2[%c0_25, %c0_26] : memref<32x128xf32, #tpu.memory_space<vmem>>, vector<32x128xf32>
    %cst_27 = arith.constant dense<0.000000e+00> : vector<2x128xf32>
    %34 = tpu.matmul %27, %33, %cst_27 {dimension_numbers = #tpu.dot_dimension_numbers<[1], [0], [0], [1], [0, 0, 1, 1], [], []>} : vector<2x32xf32>, vector<32x128xf32>, vector<2x128xf32> -> vector<2x128xf32>
    %35 = arith.addf %10, %34 : vector<2x128xf32>
    %cst_28 = arith.constant 5.000000e-01 : f32
    %36 = vector.broadcast %cst_28 : f32 to vector<2x128xf32>
    %37 = arith.mulf %36, %35 : vector<2x128xf32>
    %38 = math.tanh %37 : vector<2x128xf32>
    %cst_29 = arith.constant 1.000000e+00 : f32
    %39 = vector.broadcast %cst_29 : f32 to vector<2x128xf32>
    %40 = arith.addf %38, %39 : vector<2x128xf32>
    %cst_30 = arith.constant 5.000000e-01 : f32
    %41 = vector.broadcast %cst_30 : f32 to vector<2x128xf32>
    %42 = arith.mulf %41, %40 : vector<2x128xf32>
    %43 = math.tanh %35 : vector<2x128xf32>
    %44 = vector.extract_strided_slice %42 {offsets = [0, 0], sizes = [2, 32], strides = [1, 1]} : vector<2x128xf32> to vector<2x32xf32>
    %45 = vector.extract_strided_slice %42 {offsets = [0, 32], sizes = [2, 32], strides = [1, 1]} : vector<2x128xf32> to vector<2x32xf32>
    %46 = vector.extract_strided_slice %43 {offsets = [0, 64], sizes = [2, 32], strides = [1, 1]} : vector<2x128xf32> to vector<2x32xf32>
    %47 = vector.extract_strided_slice %42 {offsets = [0, 96], sizes = [2, 32], strides = [1, 1]} : vector<2x128xf32> to vector<2x32xf32>
    %48 = arith.mulf %45, %28 : vector<2x32xf32>
    %49 = arith.mulf %44, %46 : vector<2x32xf32>
    %50 = arith.addf %48, %49 : vector<2x32xf32>
    %51 = math.tanh %50 : vector<2x32xf32>
    %52 = arith.mulf %47, %51 : vector<2x32xf32>
    %c0_31 = arith.constant 0 : index
    %c0_32 = arith.constant 0 : index
    %53 = vector.load %arg4[%c0_31, %c0_32] : memref<32x128xf32, #tpu.memory_space<vmem>>, vector<32x128xf32>
    %cst_33 = arith.constant dense<0.000000e+00> : vector<2x128xf32>
    %54 = tpu.matmul %52, %53, %cst_33 {dimension_numbers = #tpu.dot_dimension_numbers<[1], [0], [0], [1], [0, 0, 1, 1], [], []>} : vector<2x32xf32>, vector<32x128xf32>, vector<2x128xf32> -> vector<2x128xf32>
    %c0_34 = arith.constant 0 : index
    %c0_35 = arith.constant 0 : index
    %55 = vector.load %arg5[%c0_34, %c0_35] : memref<32x128xf32, #tpu.memory_space<vmem>>, vector<32x128xf32>
    %cst_36 = arith.constant dense<0.000000e+00> : vector<2x128xf32>
    %56 = tpu.matmul %29, %55, %cst_36 {dimension_numbers = #tpu.dot_dimension_numbers<[1], [0], [0], [1], [0, 0, 1, 1], [], []>} : vector<2x32xf32>, vector<32x128xf32>, vector<2x128xf32> -> vector<2x128xf32>
    %57 = arith.addf %54, %56 : vector<2x128xf32>
    %c0_37 = arith.constant 0 : index
    %c0_38 = arith.constant 0 : index
    %58 = vector.load %arg6[%c0_37, %c0_38] : memref<1x128xf32, #tpu.memory_space<vmem>>, vector<1x128xf32>
    %59 = vector.broadcast %58 : vector<1x128xf32> to vector<2x128xf32>
    %60 = arith.addf %57, %59 : vector<2x128xf32>
    %cst_39 = arith.constant 5.000000e-01 : f32
    %61 = vector.broadcast %cst_39 : f32 to vector<2x128xf32>
    %62 = arith.mulf %61, %60 : vector<2x128xf32>
    %63 = math.tanh %62 : vector<2x128xf32>
    %cst_40 = arith.constant 1.000000e+00 : f32
    %64 = vector.broadcast %cst_40 : f32 to vector<2x128xf32>
    %65 = arith.addf %63, %64 : vector<2x128xf32>
    %cst_41 = arith.constant 5.000000e-01 : f32
    %66 = vector.broadcast %cst_41 : f32 to vector<2x128xf32>
    %67 = arith.mulf %66, %65 : vector<2x128xf32>
    %68 = math.tanh %60 : vector<2x128xf32>
    %69 = vector.extract_strided_slice %67 {offsets = [0, 0], sizes = [2, 32], strides = [1, 1]} : vector<2x128xf32> to vector<2x32xf32>
    %70 = vector.extract_strided_slice %67 {offsets = [0, 32], sizes = [2, 32], strides = [1, 1]} : vector<2x128xf32> to vector<2x32xf32>
    %71 = vector.extract_strided_slice %68 {offsets = [0, 64], sizes = [2, 32], strides = [1, 1]} : vector<2x128xf32> to vector<2x32xf32>
    %72 = vector.extract_strided_slice %67 {offsets = [0, 96], sizes = [2, 32], strides = [1, 1]} : vector<2x128xf32> to vector<2x32xf32>
    %73 = arith.mulf %70, %30 : vector<2x32xf32>
    %74 = arith.mulf %69, %71 : vector<2x32xf32>
    %75 = arith.addf %73, %74 : vector<2x32xf32>
    %76 = math.tanh %75 : vector<2x32xf32>
    %77 = arith.mulf %72, %76 : vector<2x32xf32>
    %c0_42 = arith.constant 0 : index
    %c0_43 = arith.constant 0 : index
    %78 = vector.load %arg7[%c0_42, %c0_43] : memref<32x128xf32, #tpu.memory_space<vmem>>, vector<32x128xf32>
    %cst_44 = arith.constant dense<0.000000e+00> : vector<2x128xf32>
    %79 = tpu.matmul %77, %78, %cst_44 {dimension_numbers = #tpu.dot_dimension_numbers<[1], [0], [0], [1], [0, 0, 1, 1], [], []>} : vector<2x32xf32>, vector<32x128xf32>, vector<2x128xf32> -> vector<2x128xf32>
    %c0_45 = arith.constant 0 : index
    %c0_46 = arith.constant 0 : index
    %80 = vector.load %arg8[%c0_45, %c0_46] : memref<32x128xf32, #tpu.memory_space<vmem>>, vector<32x128xf32>
    %cst_47 = arith.constant dense<0.000000e+00> : vector<2x128xf32>
    %81 = tpu.matmul %31, %80, %cst_47 {dimension_numbers = #tpu.dot_dimension_numbers<[1], [0], [0], [1], [0, 0, 1, 1], [], []>} : vector<2x32xf32>, vector<32x128xf32>, vector<2x128xf32> -> vector<2x128xf32>
    %82 = arith.addf %79, %81 : vector<2x128xf32>
    %c0_48 = arith.constant 0 : index
    %c0_49 = arith.constant 0 : index
    %83 = vector.load %arg9[%c0_48, %c0_49] : memref<1x128xf32, #tpu.memory_space<vmem>>, vector<1x128xf32>
    %84 = vector.broadcast %83 : vector<1x128xf32> to vector<2x128xf32>
    %85 = arith.addf %82, %84 : vector<2x128xf32>
    %cst_50 = arith.constant 5.000000e-01 : f32
    %86 = vector.broadcast %cst_50 : f32 to vector<2x128xf32>
    %87 = arith.mulf %86, %85 : vector<2x128xf32>
    %88 = math.tanh %87 : vector<2x128xf32>
    %cst_51 = arith.constant 1.000000e+00 : f32
    %89 = vector.broadcast %cst_51 : f32 to vector<2x128xf32>
    %90 = arith.addf %88, %89 : vector<2x128xf32>
    %cst_52 = arith.constant 5.000000e-01 : f32
    %91 = vector.broadcast %cst_52 : f32 to vector<2x128xf32>
    %92 = arith.mulf %91, %90 : vector<2x128xf32>
    %93 = math.tanh %85 : vector<2x128xf32>
    %94 = vector.extract_strided_slice %92 {offsets = [0, 0], sizes = [2, 32], strides = [1, 1]} : vector<2x128xf32> to vector<2x32xf32>
    %95 = vector.extract_strided_slice %92 {offsets = [0, 32], sizes = [2, 32], strides = [1, 1]} : vector<2x128xf32> to vector<2x32xf32>
    %96 = vector.extract_strided_slice %93 {offsets = [0, 64], sizes = [2, 32], strides = [1, 1]} : vector<2x128xf32> to vector<2x32xf32>
    %97 = vector.extract_strided_slice %92 {offsets = [0, 96], sizes = [2, 32], strides = [1, 1]} : vector<2x128xf32> to vector<2x32xf32>
    %98 = arith.mulf %95, %32 : vector<2x32xf32>
    %99 = arith.mulf %94, %96 : vector<2x32xf32>
    %100 = arith.addf %98, %99 : vector<2x32xf32>
    %101 = math.tanh %100 : vector<2x32xf32>
    %102 = arith.mulf %97, %101 : vector<2x32xf32>
    %c0_53 = arith.constant 0 : index
    %c0_54 = arith.constant 0 : index
    %103 = vector.load %arg2[%c0_53, %c0_54] : memref<32x128xf32, #tpu.memory_space<vmem>>, vector<32x128xf32>
    %cst_55 = arith.constant dense<0.000000e+00> : vector<2x128xf32>
    %104 = tpu.matmul %52, %103, %cst_55 {dimension_numbers = #tpu.dot_dimension_numbers<[1], [0], [0], [1], [0, 0, 1, 1], [], []>} : vector<2x32xf32>, vector<32x128xf32>, vector<2x128xf32> -> vector<2x128xf32>
    %105 = arith.addf %14, %104 : vector<2x128xf32>
    %cst_56 = arith.constant 5.000000e-01 : f32
    %106 = vector.broadcast %cst_56 : f32 to vector<2x128xf32>
    %107 = arith.mulf %106, %105 : vector<2x128xf32>
    %108 = math.tanh %107 : vector<2x128xf32>
    %cst_57 = arith.constant 1.000000e+00 : f32
    %109 = vector.broadcast %cst_57 : f32 to vector<2x128xf32>
    %110 = arith.addf %108, %109 : vector<2x128xf32>
    %cst_58 = arith.constant 5.000000e-01 : f32
    %111 = vector.broadcast %cst_58 : f32 to vector<2x128xf32>
    %112 = arith.mulf %111, %110 : vector<2x128xf32>
    %113 = math.tanh %105 : vector<2x128xf32>
    %114 = vector.extract_strided_slice %112 {offsets = [0, 0], sizes = [2, 32], strides = [1, 1]} : vector<2x128xf32> to vector<2x32xf32>
    %115 = vector.extract_strided_slice %112 {offsets = [0, 32], sizes = [2, 32], strides = [1, 1]} : vector<2x128xf32> to vector<2x32xf32>
    %116 = vector.extract_strided_slice %113 {offsets = [0, 64], sizes = [2, 32], strides = [1, 1]} : vector<2x128xf32> to vector<2x32xf32>
    %117 = vector.extract_strided_slice %112 {offsets = [0, 96], sizes = [2, 32], strides = [1, 1]} : vector<2x128xf32> to vector<2x32xf32>
    %118 = arith.mulf %115, %50 : vector<2x32xf32>
    %119 = arith.mulf %114, %116 : vector<2x32xf32>
    %120 = arith.addf %118, %119 : vector<2x32xf32>
    %121 = math.tanh %120 : vector<2x32xf32>
    %122 = arith.mulf %117, %121 : vector<2x32xf32>
    %c0_59 = arith.constant 0 : index
    %c0_60 = arith.constant 0 : index
    %123 = vector.load %arg4[%c0_59, %c0_60] : memref<32x128xf32, #tpu.memory_space<vmem>>, vector<32x128xf32>
    %cst_61 = arith.constant dense<0.000000e+00> : vector<2x128xf32>
    %124 = tpu.matmul %122, %123, %cst_61 {dimension_numbers = #tpu.dot_dimension_numbers<[1], [0], [0], [1], [0, 0, 1, 1], [], []>} : vector<2x32xf32>, vector<32x128xf32>, vector<2x128xf32> -> vector<2x128xf32>
    %c0_62 = arith.constant 0 : index
    %c0_63 = arith.constant 0 : index
    %125 = vector.load %arg5[%c0_62, %c0_63] : memref<32x128xf32, #tpu.memory_space<vmem>>, vector<32x128xf32>
    %cst_64 = arith.constant dense<0.000000e+00> : vector<2x128xf32>
    %126 = tpu.matmul %77, %125, %cst_64 {dimension_numbers = #tpu.dot_dimension_numbers<[1], [0], [0], [1], [0, 0, 1, 1], [], []>} : vector<2x32xf32>, vector<32x128xf32>, vector<2x128xf32> -> vector<2x128xf32>
    %127 = arith.addf %124, %126 : vector<2x128xf32>
    %c0_65 = arith.constant 0 : index
    %c0_66 = arith.constant 0 : index
    %128 = vector.load %arg6[%c0_65, %c0_66] : memref<1x128xf32, #tpu.memory_space<vmem>>, vector<1x128xf32>
    %129 = vector.broadcast %128 : vector<1x128xf32> to vector<2x128xf32>
    %130 = arith.addf %127, %129 : vector<2x128xf32>
    %cst_67 = arith.constant 5.000000e-01 : f32
    %131 = vector.broadcast %cst_67 : f32 to vector<2x128xf32>
    %132 = arith.mulf %131, %130 : vector<2x128xf32>
    %133 = math.tanh %132 : vector<2x128xf32>
    %cst_68 = arith.constant 1.000000e+00 : f32
    %134 = vector.broadcast %cst_68 : f32 to vector<2x128xf32>
    %135 = arith.addf %133, %134 : vector<2x128xf32>
    %cst_69 = arith.constant 5.000000e-01 : f32
    %136 = vector.broadcast %cst_69 : f32 to vector<2x128xf32>
    %137 = arith.mulf %136, %135 : vector<2x128xf32>
    %138 = math.tanh %130 : vector<2x128xf32>
    %139 = vector.extract_strided_slice %137 {offsets = [0, 0], sizes = [2, 32], strides = [1, 1]} : vector<2x128xf32> to vector<2x32xf32>
    %140 = vector.extract_strided_slice %137 {offsets = [0, 32], sizes = [2, 32], strides = [1, 1]} : vector<2x128xf32> to vector<2x32xf32>
    %141 = vector.extract_strided_slice %138 {offsets = [0, 64], sizes = [2, 32], strides = [1, 1]} : vector<2x128xf32> to vector<2x32xf32>
    %142 = vector.extract_strided_slice %137 {offsets = [0, 96], sizes = [2, 32], strides = [1, 1]} : vector<2x128xf32> to vector<2x32xf32>
    %143 = arith.mulf %140, %75 : vector<2x32xf32>
    %144 = arith.mulf %139, %141 : vector<2x32xf32>
    %145 = arith.addf %143, %144 : vector<2x32xf32>
    %146 = math.tanh %145 : vector<2x32xf32>
    %147 = arith.mulf %142, %146 : vector<2x32xf32>
    %c0_70 = arith.constant 0 : index
    %c0_71 = arith.constant 0 : index
    %148 = vector.load %arg7[%c0_70, %c0_71] : memref<32x128xf32, #tpu.memory_space<vmem>>, vector<32x128xf32>
    %cst_72 = arith.constant dense<0.000000e+00> : vector<2x128xf32>
    %149 = tpu.matmul %147, %148, %cst_72 {dimension_numbers = #tpu.dot_dimension_numbers<[1], [0], [0], [1], [0, 0, 1, 1], [], []>} : vector<2x32xf32>, vector<32x128xf32>, vector<2x128xf32> -> vector<2x128xf32>
    %c0_73 = arith.constant 0 : index
    %c0_74 = arith.constant 0 : index
    %150 = vector.load %arg8[%c0_73, %c0_74] : memref<32x128xf32, #tpu.memory_space<vmem>>, vector<32x128xf32>
    %cst_75 = arith.constant dense<0.000000e+00> : vector<2x128xf32>
    %151 = tpu.matmul %102, %150, %cst_75 {dimension_numbers = #tpu.dot_dimension_numbers<[1], [0], [0], [1], [0, 0, 1, 1], [], []>} : vector<2x32xf32>, vector<32x128xf32>, vector<2x128xf32> -> vector<2x128xf32>
    %152 = arith.addf %149, %151 : vector<2x128xf32>
    %c0_76 = arith.constant 0 : index
    %c0_77 = arith.constant 0 : index
    %153 = vector.load %arg9[%c0_76, %c0_77] : memref<1x128xf32, #tpu.memory_space<vmem>>, vector<1x128xf32>
    %154 = vector.broadcast %153 : vector<1x128xf32> to vector<2x128xf32>
    %155 = arith.addf %152, %154 : vector<2x128xf32>
    %cst_78 = arith.constant 5.000000e-01 : f32
    %156 = vector.broadcast %cst_78 : f32 to vector<2x128xf32>
    %157 = arith.mulf %156, %155 : vector<2x128xf32>
    %158 = math.tanh %157 : vector<2x128xf32>
    %cst_79 = arith.constant 1.000000e+00 : f32
    %159 = vector.broadcast %cst_79 : f32 to vector<2x128xf32>
    %160 = arith.addf %158, %159 : vector<2x128xf32>
    %cst_80 = arith.constant 5.000000e-01 : f32
    %161 = vector.broadcast %cst_80 : f32 to vector<2x128xf32>
    %162 = arith.mulf %161, %160 : vector<2x128xf32>
    %163 = math.tanh %155 : vector<2x128xf32>
    %164 = vector.extract_strided_slice %162 {offsets = [0, 0], sizes = [2, 32], strides = [1, 1]} : vector<2x128xf32> to vector<2x32xf32>
    %165 = vector.extract_strided_slice %162 {offsets = [0, 32], sizes = [2, 32], strides = [1, 1]} : vector<2x128xf32> to vector<2x32xf32>
    %166 = vector.extract_strided_slice %163 {offsets = [0, 64], sizes = [2, 32], strides = [1, 1]} : vector<2x128xf32> to vector<2x32xf32>
    %167 = vector.extract_strided_slice %162 {offsets = [0, 96], sizes = [2, 32], strides = [1, 1]} : vector<2x128xf32> to vector<2x32xf32>
    %168 = arith.mulf %165, %100 : vector<2x32xf32>
    %169 = arith.mulf %164, %166 : vector<2x32xf32>
    %170 = arith.addf %168, %169 : vector<2x32xf32>
    %171 = math.tanh %170 : vector<2x32xf32>
    %172 = arith.mulf %167, %171 : vector<2x32xf32>
    %c0_81 = arith.constant 0 : index
    %c0_82 = arith.constant 0 : index
    %173 = vector.load %arg2[%c0_81, %c0_82] : memref<32x128xf32, #tpu.memory_space<vmem>>, vector<32x128xf32>
    %cst_83 = arith.constant dense<0.000000e+00> : vector<2x128xf32>
    %174 = tpu.matmul %122, %173, %cst_83 {dimension_numbers = #tpu.dot_dimension_numbers<[1], [0], [0], [1], [0, 0, 1, 1], [], []>} : vector<2x32xf32>, vector<32x128xf32>, vector<2x128xf32> -> vector<2x128xf32>
    %175 = arith.addf %18, %174 : vector<2x128xf32>
    %cst_84 = arith.constant 5.000000e-01 : f32
    %176 = vector.broadcast %cst_84 : f32 to vector<2x128xf32>
    %177 = arith.mulf %176, %175 : vector<2x128xf32>
    %178 = math.tanh %177 : vector<2x128xf32>
    %cst_85 = arith.constant 1.000000e+00 : f32
    %179 = vector.broadcast %cst_85 : f32 to vector<2x128xf32>
    %180 = arith.addf %178, %179 : vector<2x128xf32>
    %cst_86 = arith.constant 5.000000e-01 : f32
    %181 = vector.broadcast %cst_86 : f32 to vector<2x128xf32>
    %182 = arith.mulf %181, %180 : vector<2x128xf32>
    %183 = math.tanh %175 : vector<2x128xf32>
    %184 = vector.extract_strided_slice %182 {offsets = [0, 0], sizes = [2, 32], strides = [1, 1]} : vector<2x128xf32> to vector<2x32xf32>
    %185 = vector.extract_strided_slice %182 {offsets = [0, 32], sizes = [2, 32], strides = [1, 1]} : vector<2x128xf32> to vector<2x32xf32>
    %186 = vector.extract_strided_slice %183 {offsets = [0, 64], sizes = [2, 32], strides = [1, 1]} : vector<2x128xf32> to vector<2x32xf32>
    %187 = vector.extract_strided_slice %182 {offsets = [0, 96], sizes = [2, 32], strides = [1, 1]} : vector<2x128xf32> to vector<2x32xf32>
    %188 = arith.mulf %185, %120 : vector<2x32xf32>
    %189 = arith.mulf %184, %186 : vector<2x32xf32>
    %190 = arith.addf %188, %189 : vector<2x32xf32>
    %191 = math.tanh %190 : vector<2x32xf32>
    %192 = arith.mulf %187, %191 : vector<2x32xf32>
    %c0_87 = arith.constant 0 : index
    %c0_88 = arith.constant 0 : index
    %193 = vector.load %arg4[%c0_87, %c0_88] : memref<32x128xf32, #tpu.memory_space<vmem>>, vector<32x128xf32>
    %cst_89 = arith.constant dense<0.000000e+00> : vector<2x128xf32>
    %194 = tpu.matmul %192, %193, %cst_89 {dimension_numbers = #tpu.dot_dimension_numbers<[1], [0], [0], [1], [0, 0, 1, 1], [], []>} : vector<2x32xf32>, vector<32x128xf32>, vector<2x128xf32> -> vector<2x128xf32>
    %c0_90 = arith.constant 0 : index
    %c0_91 = arith.constant 0 : index
    %195 = vector.load %arg5[%c0_90, %c0_91] : memref<32x128xf32, #tpu.memory_space<vmem>>, vector<32x128xf32>
    %cst_92 = arith.constant dense<0.000000e+00> : vector<2x128xf32>
    %196 = tpu.matmul %147, %195, %cst_92 {dimension_numbers = #tpu.dot_dimension_numbers<[1], [0], [0], [1], [0, 0, 1, 1], [], []>} : vector<2x32xf32>, vector<32x128xf32>, vector<2x128xf32> -> vector<2x128xf32>
    %197 = arith.addf %194, %196 : vector<2x128xf32>
    %c0_93 = arith.constant 0 : index
    %c0_94 = arith.constant 0 : index
    %198 = vector.load %arg6[%c0_93, %c0_94] : memref<1x128xf32, #tpu.memory_space<vmem>>, vector<1x128xf32>
    %199 = vector.broadcast %198 : vector<1x128xf32> to vector<2x128xf32>
    %200 = arith.addf %197, %199 : vector<2x128xf32>
    %cst_95 = arith.constant 5.000000e-01 : f32
    %201 = vector.broadcast %cst_95 : f32 to vector<2x128xf32>
    %202 = arith.mulf %201, %200 : vector<2x128xf32>
    %203 = math.tanh %202 : vector<2x128xf32>
    %cst_96 = arith.constant 1.000000e+00 : f32
    %204 = vector.broadcast %cst_96 : f32 to vector<2x128xf32>
    %205 = arith.addf %203, %204 : vector<2x128xf32>
    %cst_97 = arith.constant 5.000000e-01 : f32
    %206 = vector.broadcast %cst_97 : f32 to vector<2x128xf32>
    %207 = arith.mulf %206, %205 : vector<2x128xf32>
    %208 = math.tanh %200 : vector<2x128xf32>
    %209 = vector.extract_strided_slice %207 {offsets = [0, 0], sizes = [2, 32], strides = [1, 1]} : vector<2x128xf32> to vector<2x32xf32>
    %210 = vector.extract_strided_slice %207 {offsets = [0, 32], sizes = [2, 32], strides = [1, 1]} : vector<2x128xf32> to vector<2x32xf32>
    %211 = vector.extract_strided_slice %208 {offsets = [0, 64], sizes = [2, 32], strides = [1, 1]} : vector<2x128xf32> to vector<2x32xf32>
    %212 = vector.extract_strided_slice %207 {offsets = [0, 96], sizes = [2, 32], strides = [1, 1]} : vector<2x128xf32> to vector<2x32xf32>
    %213 = arith.mulf %210, %145 : vector<2x32xf32>
    %214 = arith.mulf %209, %211 : vector<2x32xf32>
    %215 = arith.addf %213, %214 : vector<2x32xf32>
    %216 = math.tanh %215 : vector<2x32xf32>
    %217 = arith.mulf %212, %216 : vector<2x32xf32>
    %c0_98 = arith.constant 0 : index
    %c0_99 = arith.constant 0 : index
    %218 = vector.load %arg7[%c0_98, %c0_99] : memref<32x128xf32, #tpu.memory_space<vmem>>, vector<32x128xf32>
    %cst_100 = arith.constant dense<0.000000e+00> : vector<2x128xf32>
    %219 = tpu.matmul %217, %218, %cst_100 {dimension_numbers = #tpu.dot_dimension_numbers<[1], [0], [0], [1], [0, 0, 1, 1], [], []>} : vector<2x32xf32>, vector<32x128xf32>, vector<2x128xf32> -> vector<2x128xf32>
    %c0_101 = arith.constant 0 : index
    %c0_102 = arith.constant 0 : index
    %220 = vector.load %arg8[%c0_101, %c0_102] : memref<32x128xf32, #tpu.memory_space<vmem>>, vector<32x128xf32>
    %cst_103 = arith.constant dense<0.000000e+00> : vector<2x128xf32>
    %221 = tpu.matmul %172, %220, %cst_103 {dimension_numbers = #tpu.dot_dimension_numbers<[1], [0], [0], [1], [0, 0, 1, 1], [], []>} : vector<2x32xf32>, vector<32x128xf32>, vector<2x128xf32> -> vector<2x128xf32>
    %222 = arith.addf %219, %221 : vector<2x128xf32>
    %c0_104 = arith.constant 0 : index
    %c0_105 = arith.constant 0 : index
    %223 = vector.load %arg9[%c0_104, %c0_105] : memref<1x128xf32, #tpu.memory_space<vmem>>, vector<1x128xf32>
    %224 = vector.broadcast %223 : vector<1x128xf32> to vector<2x128xf32>
    %225 = arith.addf %222, %224 : vector<2x128xf32>
    %cst_106 = arith.constant 5.000000e-01 : f32
    %226 = vector.broadcast %cst_106 : f32 to vector<2x128xf32>
    %227 = arith.mulf %226, %225 : vector<2x128xf32>
    %228 = math.tanh %227 : vector<2x128xf32>
    %cst_107 = arith.constant 1.000000e+00 : f32
    %229 = vector.broadcast %cst_107 : f32 to vector<2x128xf32>
    %230 = arith.addf %228, %229 : vector<2x128xf32>
    %cst_108 = arith.constant 5.000000e-01 : f32
    %231 = vector.broadcast %cst_108 : f32 to vector<2x128xf32>
    %232 = arith.mulf %231, %230 : vector<2x128xf32>
    %233 = math.tanh %225 : vector<2x128xf32>
    %234 = vector.extract_strided_slice %232 {offsets = [0, 0], sizes = [2, 32], strides = [1, 1]} : vector<2x128xf32> to vector<2x32xf32>
    %235 = vector.extract_strided_slice %232 {offsets = [0, 32], sizes = [2, 32], strides = [1, 1]} : vector<2x128xf32> to vector<2x32xf32>
    %236 = vector.extract_strided_slice %233 {offsets = [0, 64], sizes = [2, 32], strides = [1, 1]} : vector<2x128xf32> to vector<2x32xf32>
    %237 = vector.extract_strided_slice %232 {offsets = [0, 96], sizes = [2, 32], strides = [1, 1]} : vector<2x128xf32> to vector<2x32xf32>
    %238 = arith.mulf %235, %170 : vector<2x32xf32>
    %239 = arith.mulf %234, %236 : vector<2x32xf32>
    %240 = arith.addf %238, %239 : vector<2x32xf32>
    %241 = math.tanh %240 : vector<2x32xf32>
    %242 = arith.mulf %237, %241 : vector<2x32xf32>
    %c0_109 = arith.constant 0 : index
    %c0_110 = arith.constant 0 : index
    %243 = vector.load %arg2[%c0_109, %c0_110] : memref<32x128xf32, #tpu.memory_space<vmem>>, vector<32x128xf32>
    %cst_111 = arith.constant dense<0.000000e+00> : vector<2x128xf32>
    %244 = tpu.matmul %192, %243, %cst_111 {dimension_numbers = #tpu.dot_dimension_numbers<[1], [0], [0], [1], [0, 0, 1, 1], [], []>} : vector<2x32xf32>, vector<32x128xf32>, vector<2x128xf32> -> vector<2x128xf32>
    %245 = arith.addf %22, %244 : vector<2x128xf32>
    %cst_112 = arith.constant 5.000000e-01 : f32
    %246 = vector.broadcast %cst_112 : f32 to vector<2x128xf32>
    %247 = arith.mulf %246, %245 : vector<2x128xf32>
    %248 = math.tanh %247 : vector<2x128xf32>
    %cst_113 = arith.constant 1.000000e+00 : f32
    %249 = vector.broadcast %cst_113 : f32 to vector<2x128xf32>
    %250 = arith.addf %248, %249 : vector<2x128xf32>
    %cst_114 = arith.constant 5.000000e-01 : f32
    %251 = vector.broadcast %cst_114 : f32 to vector<2x128xf32>
    %252 = arith.mulf %251, %250 : vector<2x128xf32>
    %253 = math.tanh %245 : vector<2x128xf32>
    %254 = vector.extract_strided_slice %252 {offsets = [0, 0], sizes = [2, 32], strides = [1, 1]} : vector<2x128xf32> to vector<2x32xf32>
    %255 = vector.extract_strided_slice %252 {offsets = [0, 32], sizes = [2, 32], strides = [1, 1]} : vector<2x128xf32> to vector<2x32xf32>
    %256 = vector.extract_strided_slice %253 {offsets = [0, 64], sizes = [2, 32], strides = [1, 1]} : vector<2x128xf32> to vector<2x32xf32>
    %257 = vector.extract_strided_slice %252 {offsets = [0, 96], sizes = [2, 32], strides = [1, 1]} : vector<2x128xf32> to vector<2x32xf32>
    %258 = arith.mulf %255, %190 : vector<2x32xf32>
    %259 = arith.mulf %254, %256 : vector<2x32xf32>
    %260 = arith.addf %258, %259 : vector<2x32xf32>
    %261 = math.tanh %260 : vector<2x32xf32>
    %262 = arith.mulf %257, %261 : vector<2x32xf32>
    %c0_115 = arith.constant 0 : index
    %c0_116 = arith.constant 0 : index
    %263 = vector.load %arg4[%c0_115, %c0_116] : memref<32x128xf32, #tpu.memory_space<vmem>>, vector<32x128xf32>
    %cst_117 = arith.constant dense<0.000000e+00> : vector<2x128xf32>
    %264 = tpu.matmul %262, %263, %cst_117 {dimension_numbers = #tpu.dot_dimension_numbers<[1], [0], [0], [1], [0, 0, 1, 1], [], []>} : vector<2x32xf32>, vector<32x128xf32>, vector<2x128xf32> -> vector<2x128xf32>
    %c0_118 = arith.constant 0 : index
    %c0_119 = arith.constant 0 : index
    %265 = vector.load %arg5[%c0_118, %c0_119] : memref<32x128xf32, #tpu.memory_space<vmem>>, vector<32x128xf32>
    %cst_120 = arith.constant dense<0.000000e+00> : vector<2x128xf32>
    %266 = tpu.matmul %217, %265, %cst_120 {dimension_numbers = #tpu.dot_dimension_numbers<[1], [0], [0], [1], [0, 0, 1, 1], [], []>} : vector<2x32xf32>, vector<32x128xf32>, vector<2x128xf32> -> vector<2x128xf32>
    %267 = arith.addf %264, %266 : vector<2x128xf32>
    %c0_121 = arith.constant 0 : index
    %c0_122 = arith.constant 0 : index
    %268 = vector.load %arg6[%c0_121, %c0_122] : memref<1x128xf32, #tpu.memory_space<vmem>>, vector<1x128xf32>
    %269 = vector.broadcast %268 : vector<1x128xf32> to vector<2x128xf32>
    %270 = arith.addf %267, %269 : vector<2x128xf32>
    %cst_123 = arith.constant 5.000000e-01 : f32
    %271 = vector.broadcast %cst_123 : f32 to vector<2x128xf32>
    %272 = arith.mulf %271, %270 : vector<2x128xf32>
    %273 = math.tanh %272 : vector<2x128xf32>
    %cst_124 = arith.constant 1.000000e+00 : f32
    %274 = vector.broadcast %cst_124 : f32 to vector<2x128xf32>
    %275 = arith.addf %273, %274 : vector<2x128xf32>
    %cst_125 = arith.constant 5.000000e-01 : f32
    %276 = vector.broadcast %cst_125 : f32 to vector<2x128xf32>
    %277 = arith.mulf %276, %275 : vector<2x128xf32>
    %278 = math.tanh %270 : vector<2x128xf32>
    %279 = vector.extract_strided_slice %277 {offsets = [0, 0], sizes = [2, 32], strides = [1, 1]} : vector<2x128xf32> to vector<2x32xf32>
    %280 = vector.extract_strided_slice %277 {offsets = [0, 32], sizes = [2, 32], strides = [1, 1]} : vector<2x128xf32> to vector<2x32xf32>
    %281 = vector.extract_strided_slice %278 {offsets = [0, 64], sizes = [2, 32], strides = [1, 1]} : vector<2x128xf32> to vector<2x32xf32>
    %282 = vector.extract_strided_slice %277 {offsets = [0, 96], sizes = [2, 32], strides = [1, 1]} : vector<2x128xf32> to vector<2x32xf32>
    %283 = arith.mulf %280, %215 : vector<2x32xf32>
    %284 = arith.mulf %279, %281 : vector<2x32xf32>
    %285 = arith.addf %283, %284 : vector<2x32xf32>
    %286 = math.tanh %285 : vector<2x32xf32>
    %287 = arith.mulf %282, %286 : vector<2x32xf32>
    %c0_126 = arith.constant 0 : index
    %c0_127 = arith.constant 0 : index
    %288 = vector.load %arg7[%c0_126, %c0_127] : memref<32x128xf32, #tpu.memory_space<vmem>>, vector<32x128xf32>
    %cst_128 = arith.constant dense<0.000000e+00> : vector<2x128xf32>
    %289 = tpu.matmul %287, %288, %cst_128 {dimension_numbers = #tpu.dot_dimension_numbers<[1], [0], [0], [1], [0, 0, 1, 1], [], []>} : vector<2x32xf32>, vector<32x128xf32>, vector<2x128xf32> -> vector<2x128xf32>
    %c0_129 = arith.constant 0 : index
    %c0_130 = arith.constant 0 : index
    %290 = vector.load %arg8[%c0_129, %c0_130] : memref<32x128xf32, #tpu.memory_space<vmem>>, vector<32x128xf32>
    %cst_131 = arith.constant dense<0.000000e+00> : vector<2x128xf32>
    %291 = tpu.matmul %242, %290, %cst_131 {dimension_numbers = #tpu.dot_dimension_numbers<[1], [0], [0], [1], [0, 0, 1, 1], [], []>} : vector<2x32xf32>, vector<32x128xf32>, vector<2x128xf32> -> vector<2x128xf32>
    %292 = arith.addf %289, %291 : vector<2x128xf32>
    %c0_132 = arith.constant 0 : index
    %c0_133 = arith.constant 0 : index
    %293 = vector.load %arg9[%c0_132, %c0_133] : memref<1x128xf32, #tpu.memory_space<vmem>>, vector<1x128xf32>
    %294 = vector.broadcast %293 : vector<1x128xf32> to vector<2x128xf32>
    %295 = arith.addf %292, %294 : vector<2x128xf32>
    %cst_134 = arith.constant 5.000000e-01 : f32
    %296 = vector.broadcast %cst_134 : f32 to vector<2x128xf32>
    %297 = arith.mulf %296, %295 : vector<2x128xf32>
    %298 = math.tanh %297 : vector<2x128xf32>
    %cst_135 = arith.constant 1.000000e+00 : f32
    %299 = vector.broadcast %cst_135 : f32 to vector<2x128xf32>
    %300 = arith.addf %298, %299 : vector<2x128xf32>
    %cst_136 = arith.constant 5.000000e-01 : f32
    %301 = vector.broadcast %cst_136 : f32 to vector<2x128xf32>
    %302 = arith.mulf %301, %300 : vector<2x128xf32>
    %303 = math.tanh %295 : vector<2x128xf32>
    %304 = vector.extract_strided_slice %302 {offsets = [0, 0], sizes = [2, 32], strides = [1, 1]} : vector<2x128xf32> to vector<2x32xf32>
    %305 = vector.extract_strided_slice %302 {offsets = [0, 32], sizes = [2, 32], strides = [1, 1]} : vector<2x128xf32> to vector<2x32xf32>
    %306 = vector.extract_strided_slice %303 {offsets = [0, 64], sizes = [2, 32], strides = [1, 1]} : vector<2x128xf32> to vector<2x32xf32>
    %307 = vector.extract_strided_slice %302 {offsets = [0, 96], sizes = [2, 32], strides = [1, 1]} : vector<2x128xf32> to vector<2x32xf32>
    %308 = arith.mulf %305, %240 : vector<2x32xf32>
    %309 = arith.mulf %304, %306 : vector<2x32xf32>
    %310 = arith.addf %308, %309 : vector<2x32xf32>
    %311 = math.tanh %310 : vector<2x32xf32>
    %312 = arith.mulf %307, %311 : vector<2x32xf32>
    %c0_137 = arith.constant 0 : index
    %c0_138 = arith.constant 0 : index
    %313 = vector.load %arg2[%c0_137, %c0_138] : memref<32x128xf32, #tpu.memory_space<vmem>>, vector<32x128xf32>
    %cst_139 = arith.constant dense<0.000000e+00> : vector<2x128xf32>
    %314 = tpu.matmul %262, %313, %cst_139 {dimension_numbers = #tpu.dot_dimension_numbers<[1], [0], [0], [1], [0, 0, 1, 1], [], []>} : vector<2x32xf32>, vector<32x128xf32>, vector<2x128xf32> -> vector<2x128xf32>
    %315 = arith.addf %26, %314 : vector<2x128xf32>
    %cst_140 = arith.constant 5.000000e-01 : f32
    %316 = vector.broadcast %cst_140 : f32 to vector<2x128xf32>
    %317 = arith.mulf %316, %315 : vector<2x128xf32>
    %318 = math.tanh %317 : vector<2x128xf32>
    %cst_141 = arith.constant 1.000000e+00 : f32
    %319 = vector.broadcast %cst_141 : f32 to vector<2x128xf32>
    %320 = arith.addf %318, %319 : vector<2x128xf32>
    %cst_142 = arith.constant 5.000000e-01 : f32
    %321 = vector.broadcast %cst_142 : f32 to vector<2x128xf32>
    %322 = arith.mulf %321, %320 : vector<2x128xf32>
    %323 = math.tanh %315 : vector<2x128xf32>
    %324 = vector.extract_strided_slice %322 {offsets = [0, 0], sizes = [2, 32], strides = [1, 1]} : vector<2x128xf32> to vector<2x32xf32>
    %325 = vector.extract_strided_slice %322 {offsets = [0, 32], sizes = [2, 32], strides = [1, 1]} : vector<2x128xf32> to vector<2x32xf32>
    %326 = vector.extract_strided_slice %323 {offsets = [0, 64], sizes = [2, 32], strides = [1, 1]} : vector<2x128xf32> to vector<2x32xf32>
    %327 = vector.extract_strided_slice %322 {offsets = [0, 96], sizes = [2, 32], strides = [1, 1]} : vector<2x128xf32> to vector<2x32xf32>
    %328 = arith.mulf %325, %260 : vector<2x32xf32>
    %329 = arith.mulf %324, %326 : vector<2x32xf32>
    %330 = arith.addf %328, %329 : vector<2x32xf32>
    %331 = math.tanh %330 : vector<2x32xf32>
    %332 = arith.mulf %327, %331 : vector<2x32xf32>
    %c0_143 = arith.constant 0 : index
    %c0_144 = arith.constant 0 : index
    %333 = vector.load %arg4[%c0_143, %c0_144] : memref<32x128xf32, #tpu.memory_space<vmem>>, vector<32x128xf32>
    %cst_145 = arith.constant dense<0.000000e+00> : vector<2x128xf32>
    %334 = tpu.matmul %332, %333, %cst_145 {dimension_numbers = #tpu.dot_dimension_numbers<[1], [0], [0], [1], [0, 0, 1, 1], [], []>} : vector<2x32xf32>, vector<32x128xf32>, vector<2x128xf32> -> vector<2x128xf32>
    %c0_146 = arith.constant 0 : index
    %c0_147 = arith.constant 0 : index
    %335 = vector.load %arg5[%c0_146, %c0_147] : memref<32x128xf32, #tpu.memory_space<vmem>>, vector<32x128xf32>
    %cst_148 = arith.constant dense<0.000000e+00> : vector<2x128xf32>
    %336 = tpu.matmul %287, %335, %cst_148 {dimension_numbers = #tpu.dot_dimension_numbers<[1], [0], [0], [1], [0, 0, 1, 1], [], []>} : vector<2x32xf32>, vector<32x128xf32>, vector<2x128xf32> -> vector<2x128xf32>
    %337 = arith.addf %334, %336 : vector<2x128xf32>
    %c0_149 = arith.constant 0 : index
    %c0_150 = arith.constant 0 : index
    %338 = vector.load %arg6[%c0_149, %c0_150] : memref<1x128xf32, #tpu.memory_space<vmem>>, vector<1x128xf32>
    %339 = vector.broadcast %338 : vector<1x128xf32> to vector<2x128xf32>
    %340 = arith.addf %337, %339 : vector<2x128xf32>
    %cst_151 = arith.constant 5.000000e-01 : f32
    %341 = vector.broadcast %cst_151 : f32 to vector<2x128xf32>
    %342 = arith.mulf %341, %340 : vector<2x128xf32>
    %343 = math.tanh %342 : vector<2x128xf32>
    %cst_152 = arith.constant 1.000000e+00 : f32
    %344 = vector.broadcast %cst_152 : f32 to vector<2x128xf32>
    %345 = arith.addf %343, %344 : vector<2x128xf32>
    %cst_153 = arith.constant 5.000000e-01 : f32
    %346 = vector.broadcast %cst_153 : f32 to vector<2x128xf32>
    %347 = arith.mulf %346, %345 : vector<2x128xf32>
    %348 = math.tanh %340 : vector<2x128xf32>
    %349 = vector.extract_strided_slice %347 {offsets = [0, 0], sizes = [2, 32], strides = [1, 1]} : vector<2x128xf32> to vector<2x32xf32>
    %350 = vector.extract_strided_slice %347 {offsets = [0, 32], sizes = [2, 32], strides = [1, 1]} : vector<2x128xf32> to vector<2x32xf32>
    %351 = vector.extract_strided_slice %348 {offsets = [0, 64], sizes = [2, 32], strides = [1, 1]} : vector<2x128xf32> to vector<2x32xf32>
    %352 = vector.extract_strided_slice %347 {offsets = [0, 96], sizes = [2, 32], strides = [1, 1]} : vector<2x128xf32> to vector<2x32xf32>
    %353 = arith.mulf %350, %285 : vector<2x32xf32>
    %354 = arith.mulf %349, %351 : vector<2x32xf32>
    %355 = arith.addf %353, %354 : vector<2x32xf32>
    %356 = math.tanh %355 : vector<2x32xf32>
    %357 = arith.mulf %352, %356 : vector<2x32xf32>
    %c0_154 = arith.constant 0 : index
    %c0_155 = arith.constant 0 : index
    %358 = vector.load %arg7[%c0_154, %c0_155] : memref<32x128xf32, #tpu.memory_space<vmem>>, vector<32x128xf32>
    %cst_156 = arith.constant dense<0.000000e+00> : vector<2x128xf32>
    %359 = tpu.matmul %357, %358, %cst_156 {dimension_numbers = #tpu.dot_dimension_numbers<[1], [0], [0], [1], [0, 0, 1, 1], [], []>} : vector<2x32xf32>, vector<32x128xf32>, vector<2x128xf32> -> vector<2x128xf32>
    %c0_157 = arith.constant 0 : index
    %c0_158 = arith.constant 0 : index
    %360 = vector.load %arg8[%c0_157, %c0_158] : memref<32x128xf32, #tpu.memory_space<vmem>>, vector<32x128xf32>
    %cst_159 = arith.constant dense<0.000000e+00> : vector<2x128xf32>
    %361 = tpu.matmul %312, %360, %cst_159 {dimension_numbers = #tpu.dot_dimension_numbers<[1], [0], [0], [1], [0, 0, 1, 1], [], []>} : vector<2x32xf32>, vector<32x128xf32>, vector<2x128xf32> -> vector<2x128xf32>
    %362 = arith.addf %359, %361 : vector<2x128xf32>
    %c0_160 = arith.constant 0 : index
    %c0_161 = arith.constant 0 : index
    %363 = vector.load %arg9[%c0_160, %c0_161] : memref<1x128xf32, #tpu.memory_space<vmem>>, vector<1x128xf32>
    %364 = vector.broadcast %363 : vector<1x128xf32> to vector<2x128xf32>
    %365 = arith.addf %362, %364 : vector<2x128xf32>
    %cst_162 = arith.constant 5.000000e-01 : f32
    %366 = vector.broadcast %cst_162 : f32 to vector<2x128xf32>
    %367 = arith.mulf %366, %365 : vector<2x128xf32>
    %368 = math.tanh %367 : vector<2x128xf32>
    %cst_163 = arith.constant 1.000000e+00 : f32
    %369 = vector.broadcast %cst_163 : f32 to vector<2x128xf32>
    %370 = arith.addf %368, %369 : vector<2x128xf32>
    %cst_164 = arith.constant 5.000000e-01 : f32
    %371 = vector.broadcast %cst_164 : f32 to vector<2x128xf32>
    %372 = arith.mulf %371, %370 : vector<2x128xf32>
    %373 = math.tanh %365 : vector<2x128xf32>
    %374 = vector.extract_strided_slice %372 {offsets = [0, 0], sizes = [2, 32], strides = [1, 1]} : vector<2x128xf32> to vector<2x32xf32>
    %375 = vector.extract_strided_slice %372 {offsets = [0, 32], sizes = [2, 32], strides = [1, 1]} : vector<2x128xf32> to vector<2x32xf32>
    %376 = vector.extract_strided_slice %373 {offsets = [0, 64], sizes = [2, 32], strides = [1, 1]} : vector<2x128xf32> to vector<2x32xf32>
    %377 = vector.extract_strided_slice %372 {offsets = [0, 96], sizes = [2, 32], strides = [1, 1]} : vector<2x128xf32> to vector<2x32xf32>
    %378 = arith.mulf %375, %310 : vector<2x32xf32>
    %379 = arith.mulf %374, %376 : vector<2x32xf32>
    %380 = arith.addf %378, %379 : vector<2x32xf32>
    %381 = math.tanh %380 : vector<2x32xf32>
    %382 = arith.mulf %377, %381 : vector<2x32xf32>
    %cst_165 = arith.constant dense<0.000000e+00> : vector<2x128xf32>
    %383 = tpu.matmul %382, %3, %cst_165 {dimension_numbers = #tpu.dot_dimension_numbers<[1], [0], [0], [1], [0, 0, 1, 1], [], []>} : vector<2x32xf32>, vector<32x128xf32>, vector<2x128xf32> -> vector<2x128xf32>
    %c0_166 = arith.constant 0 : index
    %c0_167 = arith.constant 0 : index
    %384 = vector.load %arg2[%c0_166, %c0_167] : memref<32x128xf32, #tpu.memory_space<vmem>>, vector<32x128xf32>
    %cst_168 = arith.constant dense<0.000000e+00> : vector<2x128xf32>
    %385 = tpu.matmul %332, %384, %cst_168 {dimension_numbers = #tpu.dot_dimension_numbers<[1], [0], [0], [1], [0, 0, 1, 1], [], []>} : vector<2x32xf32>, vector<32x128xf32>, vector<2x128xf32> -> vector<2x128xf32>
    %386 = arith.addf %383, %385 : vector<2x128xf32>
    %387 = vector.broadcast %6 : vector<1x128xf32> to vector<2x128xf32>
    %388 = arith.addf %386, %387 : vector<2x128xf32>
    %cst_169 = arith.constant 5.000000e-01 : f32
    %389 = vector.broadcast %cst_169 : f32 to vector<2x128xf32>
    %390 = arith.mulf %389, %388 : vector<2x128xf32>
    %391 = math.tanh %390 : vector<2x128xf32>
    %cst_170 = arith.constant 1.000000e+00 : f32
    %392 = vector.broadcast %cst_170 : f32 to vector<2x128xf32>
    %393 = arith.addf %391, %392 : vector<2x128xf32>
    %cst_171 = arith.constant 5.000000e-01 : f32
    %394 = vector.broadcast %cst_171 : f32 to vector<2x128xf32>
    %395 = arith.mulf %394, %393 : vector<2x128xf32>
    %396 = math.tanh %388 : vector<2x128xf32>
    %397 = vector.extract_strided_slice %395 {offsets = [0, 0], sizes = [2, 32], strides = [1, 1]} : vector<2x128xf32> to vector<2x32xf32>
    %398 = vector.extract_strided_slice %395 {offsets = [0, 32], sizes = [2, 32], strides = [1, 1]} : vector<2x128xf32> to vector<2x32xf32>
    %399 = vector.extract_strided_slice %396 {offsets = [0, 64], sizes = [2, 32], strides = [1, 1]} : vector<2x128xf32> to vector<2x32xf32>
    %400 = vector.extract_strided_slice %395 {offsets = [0, 96], sizes = [2, 32], strides = [1, 1]} : vector<2x128xf32> to vector<2x32xf32>
    %401 = arith.mulf %398, %330 : vector<2x32xf32>
    %402 = arith.mulf %397, %399 : vector<2x32xf32>
    %403 = arith.addf %401, %402 : vector<2x32xf32>
    %404 = math.tanh %403 : vector<2x32xf32>
    %405 = arith.mulf %400, %404 : vector<2x32xf32>
    %c0_172 = arith.constant 0 : index
    %c0_173 = arith.constant 0 : index
    %406 = vector.load %arg4[%c0_172, %c0_173] : memref<32x128xf32, #tpu.memory_space<vmem>>, vector<32x128xf32>
    %cst_174 = arith.constant dense<0.000000e+00> : vector<2x128xf32>
    %407 = tpu.matmul %405, %406, %cst_174 {dimension_numbers = #tpu.dot_dimension_numbers<[1], [0], [0], [1], [0, 0, 1, 1], [], []>} : vector<2x32xf32>, vector<32x128xf32>, vector<2x128xf32> -> vector<2x128xf32>
    %c0_175 = arith.constant 0 : index
    %c0_176 = arith.constant 0 : index
    %408 = vector.load %arg5[%c0_175, %c0_176] : memref<32x128xf32, #tpu.memory_space<vmem>>, vector<32x128xf32>
    %cst_177 = arith.constant dense<0.000000e+00> : vector<2x128xf32>
    %409 = tpu.matmul %357, %408, %cst_177 {dimension_numbers = #tpu.dot_dimension_numbers<[1], [0], [0], [1], [0, 0, 1, 1], [], []>} : vector<2x32xf32>, vector<32x128xf32>, vector<2x128xf32> -> vector<2x128xf32>
    %410 = arith.addf %407, %409 : vector<2x128xf32>
    %c0_178 = arith.constant 0 : index
    %c0_179 = arith.constant 0 : index
    %411 = vector.load %arg6[%c0_178, %c0_179] : memref<1x128xf32, #tpu.memory_space<vmem>>, vector<1x128xf32>
    %412 = vector.broadcast %411 : vector<1x128xf32> to vector<2x128xf32>
    %413 = arith.addf %410, %412 : vector<2x128xf32>
    %cst_180 = arith.constant 5.000000e-01 : f32
    %414 = vector.broadcast %cst_180 : f32 to vector<2x128xf32>
    %415 = arith.mulf %414, %413 : vector<2x128xf32>
    %416 = math.tanh %415 : vector<2x128xf32>
    %cst_181 = arith.constant 1.000000e+00 : f32
    %417 = vector.broadcast %cst_181 : f32 to vector<2x128xf32>
    %418 = arith.addf %416, %417 : vector<2x128xf32>
    %cst_182 = arith.constant 5.000000e-01 : f32
    %419 = vector.broadcast %cst_182 : f32 to vector<2x128xf32>
    %420 = arith.mulf %419, %418 : vector<2x128xf32>
    %421 = math.tanh %413 : vector<2x128xf32>
    %422 = vector.extract_strided_slice %420 {offsets = [0, 0], sizes = [2, 32], strides = [1, 1]} : vector<2x128xf32> to vector<2x32xf32>
    %423 = vector.extract_strided_slice %420 {offsets = [0, 32], sizes = [2, 32], strides = [1, 1]} : vector<2x128xf32> to vector<2x32xf32>
    %424 = vector.extract_strided_slice %421 {offsets = [0, 64], sizes = [2, 32], strides = [1, 1]} : vector<2x128xf32> to vector<2x32xf32>
    %425 = vector.extract_strided_slice %420 {offsets = [0, 96], sizes = [2, 32], strides = [1, 1]} : vector<2x128xf32> to vector<2x32xf32>
    %426 = arith.mulf %423, %355 : vector<2x32xf32>
    %427 = arith.mulf %422, %424 : vector<2x32xf32>
    %428 = arith.addf %426, %427 : vector<2x32xf32>
    %429 = math.tanh %428 : vector<2x32xf32>
    %430 = arith.mulf %425, %429 : vector<2x32xf32>
    %c0_183 = arith.constant 0 : index
    %c0_184 = arith.constant 0 : index
    %431 = vector.load %arg7[%c0_183, %c0_184] : memref<32x128xf32, #tpu.memory_space<vmem>>, vector<32x128xf32>
    %cst_185 = arith.constant dense<0.000000e+00> : vector<2x128xf32>
    %432 = tpu.matmul %430, %431, %cst_185 {dimension_numbers = #tpu.dot_dimension_numbers<[1], [0], [0], [1], [0, 0, 1, 1], [], []>} : vector<2x32xf32>, vector<32x128xf32>, vector<2x128xf32> -> vector<2x128xf32>
    %c0_186 = arith.constant 0 : index
    %c0_187 = arith.constant 0 : index
    %433 = vector.load %arg8[%c0_186, %c0_187] : memref<32x128xf32, #tpu.memory_space<vmem>>, vector<32x128xf32>
    %cst_188 = arith.constant dense<0.000000e+00> : vector<2x128xf32>
    %434 = tpu.matmul %382, %433, %cst_188 {dimension_numbers = #tpu.dot_dimension_numbers<[1], [0], [0], [1], [0, 0, 1, 1], [], []>} : vector<2x32xf32>, vector<32x128xf32>, vector<2x128xf32> -> vector<2x128xf32>
    %435 = arith.addf %432, %434 : vector<2x128xf32>
    %c0_189 = arith.constant 0 : index
    %c0_190 = arith.constant 0 : index
    %436 = vector.load %arg9[%c0_189, %c0_190] : memref<1x128xf32, #tpu.memory_space<vmem>>, vector<1x128xf32>
    %437 = vector.broadcast %436 : vector<1x128xf32> to vector<2x128xf32>
    %438 = arith.addf %435, %437 : vector<2x128xf32>
    %cst_191 = arith.constant 5.000000e-01 : f32
    %439 = vector.broadcast %cst_191 : f32 to vector<2x128xf32>
    %440 = arith.mulf %439, %438 : vector<2x128xf32>
    %441 = math.tanh %440 : vector<2x128xf32>
    %cst_192 = arith.constant 1.000000e+00 : f32
    %442 = vector.broadcast %cst_192 : f32 to vector<2x128xf32>
    %443 = arith.addf %441, %442 : vector<2x128xf32>
    %cst_193 = arith.constant 5.000000e-01 : f32
    %444 = vector.broadcast %cst_193 : f32 to vector<2x128xf32>
    %445 = arith.mulf %444, %443 : vector<2x128xf32>
    %446 = math.tanh %438 : vector<2x128xf32>
    %447 = vector.extract_strided_slice %445 {offsets = [0, 0], sizes = [2, 32], strides = [1, 1]} : vector<2x128xf32> to vector<2x32xf32>
    %448 = vector.extract_strided_slice %445 {offsets = [0, 32], sizes = [2, 32], strides = [1, 1]} : vector<2x128xf32> to vector<2x32xf32>
    %449 = vector.extract_strided_slice %446 {offsets = [0, 64], sizes = [2, 32], strides = [1, 1]} : vector<2x128xf32> to vector<2x32xf32>
    %450 = vector.extract_strided_slice %445 {offsets = [0, 96], sizes = [2, 32], strides = [1, 1]} : vector<2x128xf32> to vector<2x32xf32>
    %451 = arith.mulf %448, %380 : vector<2x32xf32>
    %452 = arith.mulf %447, %449 : vector<2x32xf32>
    %453 = arith.addf %451, %452 : vector<2x32xf32>
    %454 = math.tanh %453 : vector<2x32xf32>
    %455 = arith.mulf %450, %454 : vector<2x32xf32>
    %cst_194 = arith.constant dense<0.000000e+00> : vector<2x128xf32>
    %456 = tpu.matmul %455, %3, %cst_194 {dimension_numbers = #tpu.dot_dimension_numbers<[1], [0], [0], [1], [0, 0, 1, 1], [], []>} : vector<2x32xf32>, vector<32x128xf32>, vector<2x128xf32> -> vector<2x128xf32>
    %c0_195 = arith.constant 0 : index
    %c0_196 = arith.constant 0 : index
    %457 = vector.load %arg2[%c0_195, %c0_196] : memref<32x128xf32, #tpu.memory_space<vmem>>, vector<32x128xf32>
    %cst_197 = arith.constant dense<0.000000e+00> : vector<2x128xf32>
    %458 = tpu.matmul %405, %457, %cst_197 {dimension_numbers = #tpu.dot_dimension_numbers<[1], [0], [0], [1], [0, 0, 1, 1], [], []>} : vector<2x32xf32>, vector<32x128xf32>, vector<2x128xf32> -> vector<2x128xf32>
    %459 = arith.addf %456, %458 : vector<2x128xf32>
    %460 = vector.broadcast %6 : vector<1x128xf32> to vector<2x128xf32>
    %461 = arith.addf %459, %460 : vector<2x128xf32>
    %cst_198 = arith.constant 5.000000e-01 : f32
    %462 = vector.broadcast %cst_198 : f32 to vector<2x128xf32>
    %463 = arith.mulf %462, %461 : vector<2x128xf32>
    %464 = math.tanh %463 : vector<2x128xf32>
    %cst_199 = arith.constant 1.000000e+00 : f32
    %465 = vector.broadcast %cst_199 : f32 to vector<2x128xf32>
    %466 = arith.addf %464, %465 : vector<2x128xf32>
    %cst_200 = arith.constant 5.000000e-01 : f32
    %467 = vector.broadcast %cst_200 : f32 to vector<2x128xf32>
    %468 = arith.mulf %467, %466 : vector<2x128xf32>
    %469 = math.tanh %461 : vector<2x128xf32>
    %470 = vector.extract_strided_slice %468 {offsets = [0, 0], sizes = [2, 32], strides = [1, 1]} : vector<2x128xf32> to vector<2x32xf32>
    %471 = vector.extract_strided_slice %468 {offsets = [0, 32], sizes = [2, 32], strides = [1, 1]} : vector<2x128xf32> to vector<2x32xf32>
    %472 = vector.extract_strided_slice %469 {offsets = [0, 64], sizes = [2, 32], strides = [1, 1]} : vector<2x128xf32> to vector<2x32xf32>
    %473 = vector.extract_strided_slice %468 {offsets = [0, 96], sizes = [2, 32], strides = [1, 1]} : vector<2x128xf32> to vector<2x32xf32>
    %474 = arith.mulf %471, %403 : vector<2x32xf32>
    %475 = arith.mulf %470, %472 : vector<2x32xf32>
    %476 = arith.addf %474, %475 : vector<2x32xf32>
    %477 = math.tanh %476 : vector<2x32xf32>
    %478 = arith.mulf %473, %477 : vector<2x32xf32>
    %c0_201 = arith.constant 0 : index
    %c0_202 = arith.constant 0 : index
    %479 = vector.load %arg4[%c0_201, %c0_202] : memref<32x128xf32, #tpu.memory_space<vmem>>, vector<32x128xf32>
    %cst_203 = arith.constant dense<0.000000e+00> : vector<2x128xf32>
    %480 = tpu.matmul %478, %479, %cst_203 {dimension_numbers = #tpu.dot_dimension_numbers<[1], [0], [0], [1], [0, 0, 1, 1], [], []>} : vector<2x32xf32>, vector<32x128xf32>, vector<2x128xf32> -> vector<2x128xf32>
    %c0_204 = arith.constant 0 : index
    %c0_205 = arith.constant 0 : index
    %481 = vector.load %arg5[%c0_204, %c0_205] : memref<32x128xf32, #tpu.memory_space<vmem>>, vector<32x128xf32>
    %cst_206 = arith.constant dense<0.000000e+00> : vector<2x128xf32>
    %482 = tpu.matmul %430, %481, %cst_206 {dimension_numbers = #tpu.dot_dimension_numbers<[1], [0], [0], [1], [0, 0, 1, 1], [], []>} : vector<2x32xf32>, vector<32x128xf32>, vector<2x128xf32> -> vector<2x128xf32>
    %483 = arith.addf %480, %482 : vector<2x128xf32>
    %c0_207 = arith.constant 0 : index
    %c0_208 = arith.constant 0 : index
    %484 = vector.load %arg6[%c0_207, %c0_208] : memref<1x128xf32, #tpu.memory_space<vmem>>, vector<1x128xf32>
    %485 = vector.broadcast %484 : vector<1x128xf32> to vector<2x128xf32>
    %486 = arith.addf %483, %485 : vector<2x128xf32>
    %cst_209 = arith.constant 5.000000e-01 : f32
    %487 = vector.broadcast %cst_209 : f32 to vector<2x128xf32>
    %488 = arith.mulf %487, %486 : vector<2x128xf32>
    %489 = math.tanh %488 : vector<2x128xf32>
    %cst_210 = arith.constant 1.000000e+00 : f32
    %490 = vector.broadcast %cst_210 : f32 to vector<2x128xf32>
    %491 = arith.addf %489, %490 : vector<2x128xf32>
    %cst_211 = arith.constant 5.000000e-01 : f32
    %492 = vector.broadcast %cst_211 : f32 to vector<2x128xf32>
    %493 = arith.mulf %492, %491 : vector<2x128xf32>
    %494 = math.tanh %486 : vector<2x128xf32>
    %495 = vector.extract_strided_slice %493 {offsets = [0, 0], sizes = [2, 32], strides = [1, 1]} : vector<2x128xf32> to vector<2x32xf32>
    %496 = vector.extract_strided_slice %493 {offsets = [0, 32], sizes = [2, 32], strides = [1, 1]} : vector<2x128xf32> to vector<2x32xf32>
    %497 = vector.extract_strided_slice %494 {offsets = [0, 64], sizes = [2, 32], strides = [1, 1]} : vector<2x128xf32> to vector<2x32xf32>
    %498 = vector.extract_strided_slice %493 {offsets = [0, 96], sizes = [2, 32], strides = [1, 1]} : vector<2x128xf32> to vector<2x32xf32>
    %499 = arith.mulf %496, %428 : vector<2x32xf32>
    %500 = arith.mulf %495, %497 : vector<2x32xf32>
    %501 = arith.addf %499, %500 : vector<2x32xf32>
    %502 = math.tanh %501 : vector<2x32xf32>
    %503 = arith.mulf %498, %502 : vector<2x32xf32>
    %c0_212 = arith.constant 0 : index
    %c0_213 = arith.constant 0 : index
    %504 = vector.load %arg7[%c0_212, %c0_213] : memref<32x128xf32, #tpu.memory_space<vmem>>, vector<32x128xf32>
    %cst_214 = arith.constant dense<0.000000e+00> : vector<2x128xf32>
    %505 = tpu.matmul %503, %504, %cst_214 {dimension_numbers = #tpu.dot_dimension_numbers<[1], [0], [0], [1], [0, 0, 1, 1], [], []>} : vector<2x32xf32>, vector<32x128xf32>, vector<2x128xf32> -> vector<2x128xf32>
    %c0_215 = arith.constant 0 : index
    %c0_216 = arith.constant 0 : index
    %506 = vector.load %arg8[%c0_215, %c0_216] : memref<32x128xf32, #tpu.memory_space<vmem>>, vector<32x128xf32>
    %cst_217 = arith.constant dense<0.000000e+00> : vector<2x128xf32>
    %507 = tpu.matmul %455, %506, %cst_217 {dimension_numbers = #tpu.dot_dimension_numbers<[1], [0], [0], [1], [0, 0, 1, 1], [], []>} : vector<2x32xf32>, vector<32x128xf32>, vector<2x128xf32> -> vector<2x128xf32>
    %508 = arith.addf %505, %507 : vector<2x128xf32>
    %c0_218 = arith.constant 0 : index
    %c0_219 = arith.constant 0 : index
    %509 = vector.load %arg9[%c0_218, %c0_219] : memref<1x128xf32, #tpu.memory_space<vmem>>, vector<1x128xf32>
    %510 = vector.broadcast %509 : vector<1x128xf32> to vector<2x128xf32>
    %511 = arith.addf %508, %510 : vector<2x128xf32>
    %cst_220 = arith.constant 5.000000e-01 : f32
    %512 = vector.broadcast %cst_220 : f32 to vector<2x128xf32>
    %513 = arith.mulf %512, %511 : vector<2x128xf32>
    %514 = math.tanh %513 : vector<2x128xf32>
    %cst_221 = arith.constant 1.000000e+00 : f32
    %515 = vector.broadcast %cst_221 : f32 to vector<2x128xf32>
    %516 = arith.addf %514, %515 : vector<2x128xf32>
    %cst_222 = arith.constant 5.000000e-01 : f32
    %517 = vector.broadcast %cst_222 : f32 to vector<2x128xf32>
    %518 = arith.mulf %517, %516 : vector<2x128xf32>
    %519 = math.tanh %511 : vector<2x128xf32>
    %520 = vector.extract_strided_slice %518 {offsets = [0, 0], sizes = [2, 32], strides = [1, 1]} : vector<2x128xf32> to vector<2x32xf32>
    %521 = vector.extract_strided_slice %518 {offsets = [0, 32], sizes = [2, 32], strides = [1, 1]} : vector<2x128xf32> to vector<2x32xf32>
    %522 = vector.extract_strided_slice %519 {offsets = [0, 64], sizes = [2, 32], strides = [1, 1]} : vector<2x128xf32> to vector<2x32xf32>
    %523 = vector.extract_strided_slice %518 {offsets = [0, 96], sizes = [2, 32], strides = [1, 1]} : vector<2x128xf32> to vector<2x32xf32>
    %524 = arith.mulf %521, %453 : vector<2x32xf32>
    %525 = arith.mulf %520, %522 : vector<2x32xf32>
    %526 = arith.addf %524, %525 : vector<2x32xf32>
    %527 = math.tanh %526 : vector<2x32xf32>
    %528 = arith.mulf %523, %527 : vector<2x32xf32>
    %cst_223 = arith.constant dense<0.000000e+00> : vector<2x128xf32>
    %529 = tpu.matmul %528, %3, %cst_223 {dimension_numbers = #tpu.dot_dimension_numbers<[1], [0], [0], [1], [0, 0, 1, 1], [], []>} : vector<2x32xf32>, vector<32x128xf32>, vector<2x128xf32> -> vector<2x128xf32>
    %c0_224 = arith.constant 0 : index
    %c0_225 = arith.constant 0 : index
    %530 = vector.load %arg2[%c0_224, %c0_225] : memref<32x128xf32, #tpu.memory_space<vmem>>, vector<32x128xf32>
    %cst_226 = arith.constant dense<0.000000e+00> : vector<2x128xf32>
    %531 = tpu.matmul %478, %530, %cst_226 {dimension_numbers = #tpu.dot_dimension_numbers<[1], [0], [0], [1], [0, 0, 1, 1], [], []>} : vector<2x32xf32>, vector<32x128xf32>, vector<2x128xf32> -> vector<2x128xf32>
    %532 = arith.addf %529, %531 : vector<2x128xf32>
    %533 = vector.broadcast %6 : vector<1x128xf32> to vector<2x128xf32>
    %534 = arith.addf %532, %533 : vector<2x128xf32>
    %cst_227 = arith.constant 5.000000e-01 : f32
    %535 = vector.broadcast %cst_227 : f32 to vector<2x128xf32>
    %536 = arith.mulf %535, %534 : vector<2x128xf32>
    %537 = math.tanh %536 : vector<2x128xf32>
    %cst_228 = arith.constant 1.000000e+00 : f32
    %538 = vector.broadcast %cst_228 : f32 to vector<2x128xf32>
    %539 = arith.addf %537, %538 : vector<2x128xf32>
    %cst_229 = arith.constant 5.000000e-01 : f32
    %540 = vector.broadcast %cst_229 : f32 to vector<2x128xf32>
    %541 = arith.mulf %540, %539 : vector<2x128xf32>
    %542 = math.tanh %534 : vector<2x128xf32>
    %543 = vector.extract_strided_slice %541 {offsets = [0, 0], sizes = [2, 32], strides = [1, 1]} : vector<2x128xf32> to vector<2x32xf32>
    %544 = vector.extract_strided_slice %541 {offsets = [0, 32], sizes = [2, 32], strides = [1, 1]} : vector<2x128xf32> to vector<2x32xf32>
    %545 = vector.extract_strided_slice %542 {offsets = [0, 64], sizes = [2, 32], strides = [1, 1]} : vector<2x128xf32> to vector<2x32xf32>
    %546 = vector.extract_strided_slice %541 {offsets = [0, 96], sizes = [2, 32], strides = [1, 1]} : vector<2x128xf32> to vector<2x32xf32>
    %547 = arith.mulf %544, %476 : vector<2x32xf32>
    %548 = arith.mulf %543, %545 : vector<2x32xf32>
    %549 = arith.addf %547, %548 : vector<2x32xf32>
    %550 = math.tanh %549 : vector<2x32xf32>
    %551 = arith.mulf %546, %550 : vector<2x32xf32>
    %c0_230 = arith.constant 0 : index
    %c0_231 = arith.constant 0 : index
    %552 = vector.load %arg4[%c0_230, %c0_231] : memref<32x128xf32, #tpu.memory_space<vmem>>, vector<32x128xf32>
    %cst_232 = arith.constant dense<0.000000e+00> : vector<2x128xf32>
    %553 = tpu.matmul %551, %552, %cst_232 {dimension_numbers = #tpu.dot_dimension_numbers<[1], [0], [0], [1], [0, 0, 1, 1], [], []>} : vector<2x32xf32>, vector<32x128xf32>, vector<2x128xf32> -> vector<2x128xf32>
    %c0_233 = arith.constant 0 : index
    %c0_234 = arith.constant 0 : index
    %554 = vector.load %arg5[%c0_233, %c0_234] : memref<32x128xf32, #tpu.memory_space<vmem>>, vector<32x128xf32>
    %cst_235 = arith.constant dense<0.000000e+00> : vector<2x128xf32>
    %555 = tpu.matmul %503, %554, %cst_235 {dimension_numbers = #tpu.dot_dimension_numbers<[1], [0], [0], [1], [0, 0, 1, 1], [], []>} : vector<2x32xf32>, vector<32x128xf32>, vector<2x128xf32> -> vector<2x128xf32>
    %556 = arith.addf %553, %555 : vector<2x128xf32>
    %c0_236 = arith.constant 0 : index
    %c0_237 = arith.constant 0 : index
    %557 = vector.load %arg6[%c0_236, %c0_237] : memref<1x128xf32, #tpu.memory_space<vmem>>, vector<1x128xf32>
    %558 = vector.broadcast %557 : vector<1x128xf32> to vector<2x128xf32>
    %559 = arith.addf %556, %558 : vector<2x128xf32>
    %cst_238 = arith.constant 5.000000e-01 : f32
    %560 = vector.broadcast %cst_238 : f32 to vector<2x128xf32>
    %561 = arith.mulf %560, %559 : vector<2x128xf32>
    %562 = math.tanh %561 : vector<2x128xf32>
    %cst_239 = arith.constant 1.000000e+00 : f32
    %563 = vector.broadcast %cst_239 : f32 to vector<2x128xf32>
    %564 = arith.addf %562, %563 : vector<2x128xf32>
    %cst_240 = arith.constant 5.000000e-01 : f32
    %565 = vector.broadcast %cst_240 : f32 to vector<2x128xf32>
    %566 = arith.mulf %565, %564 : vector<2x128xf32>
    %567 = math.tanh %559 : vector<2x128xf32>
    %568 = vector.extract_strided_slice %566 {offsets = [0, 0], sizes = [2, 32], strides = [1, 1]} : vector<2x128xf32> to vector<2x32xf32>
    %569 = vector.extract_strided_slice %566 {offsets = [0, 32], sizes = [2, 32], strides = [1, 1]} : vector<2x128xf32> to vector<2x32xf32>
    %570 = vector.extract_strided_slice %567 {offsets = [0, 64], sizes = [2, 32], strides = [1, 1]} : vector<2x128xf32> to vector<2x32xf32>
    %571 = vector.extract_strided_slice %566 {offsets = [0, 96], sizes = [2, 32], strides = [1, 1]} : vector<2x128xf32> to vector<2x32xf32>
    %572 = arith.mulf %569, %501 : vector<2x32xf32>
    %573 = arith.mulf %568, %570 : vector<2x32xf32>
    %574 = arith.addf %572, %573 : vector<2x32xf32>
    %575 = math.tanh %574 : vector<2x32xf32>
    %576 = arith.mulf %571, %575 : vector<2x32xf32>
    %c0_241 = arith.constant 0 : index
    %c0_242 = arith.constant 0 : index
    %577 = vector.load %arg7[%c0_241, %c0_242] : memref<32x128xf32, #tpu.memory_space<vmem>>, vector<32x128xf32>
    %cst_243 = arith.constant dense<0.000000e+00> : vector<2x128xf32>
    %578 = tpu.matmul %576, %577, %cst_243 {dimension_numbers = #tpu.dot_dimension_numbers<[1], [0], [0], [1], [0, 0, 1, 1], [], []>} : vector<2x32xf32>, vector<32x128xf32>, vector<2x128xf32> -> vector<2x128xf32>
    %c0_244 = arith.constant 0 : index
    %c0_245 = arith.constant 0 : index
    %579 = vector.load %arg8[%c0_244, %c0_245] : memref<32x128xf32, #tpu.memory_space<vmem>>, vector<32x128xf32>
    %cst_246 = arith.constant dense<0.000000e+00> : vector<2x128xf32>
    %580 = tpu.matmul %528, %579, %cst_246 {dimension_numbers = #tpu.dot_dimension_numbers<[1], [0], [0], [1], [0, 0, 1, 1], [], []>} : vector<2x32xf32>, vector<32x128xf32>, vector<2x128xf32> -> vector<2x128xf32>
    %581 = arith.addf %578, %580 : vector<2x128xf32>
    %c0_247 = arith.constant 0 : index
    %c0_248 = arith.constant 0 : index
    %582 = vector.load %arg9[%c0_247, %c0_248] : memref<1x128xf32, #tpu.memory_space<vmem>>, vector<1x128xf32>
    %583 = vector.broadcast %582 : vector<1x128xf32> to vector<2x128xf32>
    %584 = arith.addf %581, %583 : vector<2x128xf32>
    %cst_249 = arith.constant 5.000000e-01 : f32
    %585 = vector.broadcast %cst_249 : f32 to vector<2x128xf32>
    %586 = arith.mulf %585, %584 : vector<2x128xf32>
    %587 = math.tanh %586 : vector<2x128xf32>
    %cst_250 = arith.constant 1.000000e+00 : f32
    %588 = vector.broadcast %cst_250 : f32 to vector<2x128xf32>
    %589 = arith.addf %587, %588 : vector<2x128xf32>
    %cst_251 = arith.constant 5.000000e-01 : f32
    %590 = vector.broadcast %cst_251 : f32 to vector<2x128xf32>
    %591 = arith.mulf %590, %589 : vector<2x128xf32>
    %592 = math.tanh %584 : vector<2x128xf32>
    %593 = vector.extract_strided_slice %591 {offsets = [0, 0], sizes = [2, 32], strides = [1, 1]} : vector<2x128xf32> to vector<2x32xf32>
    %594 = vector.extract_strided_slice %591 {offsets = [0, 32], sizes = [2, 32], strides = [1, 1]} : vector<2x128xf32> to vector<2x32xf32>
    %595 = vector.extract_strided_slice %592 {offsets = [0, 64], sizes = [2, 32], strides = [1, 1]} : vector<2x128xf32> to vector<2x32xf32>
    %596 = vector.extract_strided_slice %591 {offsets = [0, 96], sizes = [2, 32], strides = [1, 1]} : vector<2x128xf32> to vector<2x32xf32>
    %597 = arith.mulf %594, %526 : vector<2x32xf32>
    %598 = arith.mulf %593, %595 : vector<2x32xf32>
    %599 = arith.addf %597, %598 : vector<2x32xf32>
    %600 = math.tanh %599 : vector<2x32xf32>
    %601 = arith.mulf %596, %600 : vector<2x32xf32>
    %c0_252 = arith.constant 0 : index
    %c0_253 = arith.constant 0 : index
    %602 = vector.load %arg10[%c0_252, %c0_253] : memref<32x16xf32, #tpu.memory_space<vmem>>, vector<32x16xf32>
    %c0_254 = arith.constant 0 : index
    %c0_255 = arith.constant 0 : index
    %603 = vector.load %arg11[%c0_254, %c0_255] : memref<1x16xf32, #tpu.memory_space<vmem>>, vector<1x16xf32>
    %cst_256 = arith.constant dense<0.000000e+00> : vector<2x16xf32>
    %604 = tpu.matmul %102, %602, %cst_256 {dimension_numbers = #tpu.dot_dimension_numbers<[1], [0], [0], [1], [0, 0, 1, 1], [], []>} : vector<2x32xf32>, vector<32x16xf32>, vector<2x16xf32> -> vector<2x16xf32>
    %605 = vector.broadcast %603 : vector<1x16xf32> to vector<2x16xf32>
    %606 = arith.addf %604, %605 : vector<2x16xf32>
    %cst_257 = arith.constant dense<0.000000e+00> : vector<2x16xf32>
    %607 = tpu.matmul %172, %602, %cst_257 {dimension_numbers = #tpu.dot_dimension_numbers<[1], [0], [0], [1], [0, 0, 1, 1], [], []>} : vector<2x32xf32>, vector<32x16xf32>, vector<2x16xf32> -> vector<2x16xf32>
    %608 = vector.broadcast %603 : vector<1x16xf32> to vector<2x16xf32>
    %609 = arith.addf %607, %608 : vector<2x16xf32>
    %cst_258 = arith.constant dense<0.000000e+00> : vector<2x16xf32>
    %610 = tpu.matmul %242, %602, %cst_258 {dimension_numbers = #tpu.dot_dimension_numbers<[1], [0], [0], [1], [0, 0, 1, 1], [], []>} : vector<2x32xf32>, vector<32x16xf32>, vector<2x16xf32> -> vector<2x16xf32>
    %611 = vector.broadcast %603 : vector<1x16xf32> to vector<2x16xf32>
    %612 = arith.addf %610, %611 : vector<2x16xf32>
    %cst_259 = arith.constant dense<0.000000e+00> : vector<2x16xf32>
    %613 = tpu.matmul %312, %602, %cst_259 {dimension_numbers = #tpu.dot_dimension_numbers<[1], [0], [0], [1], [0, 0, 1, 1], [], []>} : vector<2x32xf32>, vector<32x16xf32>, vector<2x16xf32> -> vector<2x16xf32>
    %614 = vector.broadcast %603 : vector<1x16xf32> to vector<2x16xf32>
    %615 = arith.addf %613, %614 : vector<2x16xf32>
    %cst_260 = arith.constant dense<0.000000e+00> : vector<2x16xf32>
    %616 = tpu.matmul %382, %602, %cst_260 {dimension_numbers = #tpu.dot_dimension_numbers<[1], [0], [0], [1], [0, 0, 1, 1], [], []>} : vector<2x32xf32>, vector<32x16xf32>, vector<2x16xf32> -> vector<2x16xf32>
    %617 = vector.broadcast %603 : vector<1x16xf32> to vector<2x16xf32>
    %618 = arith.addf %616, %617 : vector<2x16xf32>
    %cst_261 = arith.constant dense<0.000000e+00> : vector<2x16xf32>
    %619 = tpu.matmul %455, %602, %cst_261 {dimension_numbers = #tpu.dot_dimension_numbers<[1], [0], [0], [1], [0, 0, 1, 1], [], []>} : vector<2x32xf32>, vector<32x16xf32>, vector<2x16xf32> -> vector<2x16xf32>
    %620 = vector.broadcast %603 : vector<1x16xf32> to vector<2x16xf32>
    %621 = arith.addf %619, %620 : vector<2x16xf32>
    %cst_262 = arith.constant dense<0.000000e+00> : vector<2x16xf32>
    %622 = tpu.matmul %528, %602, %cst_262 {dimension_numbers = #tpu.dot_dimension_numbers<[1], [0], [0], [1], [0, 0, 1, 1], [], []>} : vector<2x32xf32>, vector<32x16xf32>, vector<2x16xf32> -> vector<2x16xf32>
    %623 = vector.broadcast %603 : vector<1x16xf32> to vector<2x16xf32>
    %624 = arith.addf %622, %623 : vector<2x16xf32>
    %cst_263 = arith.constant dense<0.000000e+00> : vector<2x16xf32>
    %625 = tpu.matmul %601, %602, %cst_263 {dimension_numbers = #tpu.dot_dimension_numbers<[1], [0], [0], [1], [0, 0, 1, 1], [], []>} : vector<2x32xf32>, vector<32x16xf32>, vector<2x16xf32> -> vector<2x16xf32>
    %626 = vector.broadcast %603 : vector<1x16xf32> to vector<2x16xf32>
    %627 = arith.addf %625, %626 : vector<2x16xf32>
    %628 = tpu.concatenate %606, %609, %612, %615, %618, %621, %624, %627 in 1 : vector<2x16xf32>, vector<2x16xf32>, vector<2x16xf32>, vector<2x16xf32>, vector<2x16xf32>, vector<2x16xf32>, vector<2x16xf32>, vector<2x16xf32> -> vector<2x128xf32>
    %c0_264 = arith.constant 0 : index
    %c0_265 = arith.constant 0 : index
    %629 = vector.load %arg12[%c0_264, %c0_265] : memref<2x128xf32, #tpu.memory_space<vmem>>, vector<2x128xf32>
    tpu.vector_store %arg12[%c0_264, %c0_265], %628 {strides = array<i32>} : memref<2x128xf32, #tpu.memory_space<vmem>>, vector<2x128xf32>,
    return
  }
}

</mosaic_0001>

<llo_original>
// kernel: aclstm_forward.1
$region0: #{aclstm_forward.1}
  #allocation0 [shape = 'u32[]', space=smem, size = 0x4, offset = 0x4, fixed_abs, tag = 'smem constant byte address 0x4 - core index']
  #allocation1 [shape = 'u32[144,128]{1,0:T(1,128)}', space=vmem, size = 0x12000, scoped, tag = 'internal scratch']
  %s0 = inlined_call_operand.vmem [shape: f32[2,128], index: 0, kind: input, shape index: {}]
  %s1 = inlined_call_operand.hbm [shape: f32[16,128], index: 1, kind: input, shape index: {}]
  %s2 = inlined_call_operand.vmem [shape: f32[32,128], index: 2, kind: input, shape index: {}]
  %s3 = inlined_call_operand.hbm [shape: f32[1,128], index: 3, kind: input, shape index: {}]
  %s4 = inlined_call_operand.vmem [shape: f32[32,128], index: 4, kind: input, shape index: {}]
  %s5 = inlined_call_operand.hbm [shape: f32[32,128], index: 5, kind: input, shape index: {}]
  %s6 = inlined_call_operand.hbm [shape: f32[1,128], index: 6, kind: input, shape index: {}]
  %s7 = inlined_call_operand.hbm [shape: f32[32,128], index: 7, kind: input, shape index: {}]
  %s8 = inlined_call_operand.hbm [shape: f32[32,128], index: 8, kind: input, shape index: {}]
  %s9 = inlined_call_operand.vmem [shape: f32[1,128], index: 9, kind: input, shape index: {}]
  %s10 = inlined_call_operand.vmem [shape: f32[32,16], index: 10, kind: input, shape index: {}]
  %s11 = inlined_call_operand.vmem [shape: f32[1,16], index: 11, kind: input, shape index: {}]
  %s12 = inlined_call_operand.vmem [shape: f32[2,128], index: 12, kind: output, shape index: {}]
  %s13 = sld [smem:[#allocation0]]
  $region82: #{aclstm_forward.1} parent=0
    _
  %s15 = ssub.s32 1, %s13
  %s16 = scalar_select 0, %s15, %s13
  $region1: #{aclstm_forward.1} parent=0
    #allocation2 [shape = 'u8[8192]{0}', space=vmem, size = 0x2000, scoped, tag = 'input window, operand 1, single buffered']
    #allocation3 [shape = 's32[1]{0}', space=sflag, size = 0x4, scoped, tag = 'scoped memory for aclstm_forward.1']
    #allocation4 [shape = 'u8[512]{0}', space=vmem, size = 0x400, scoped, tag = 'input window, operand 3, single buffered']
    #allocation5 [shape = 's32[1]{0}', space=sflag, size = 0x4, scoped, tag = 'scoped memory for aclstm_forward.1']
    #allocation6 [shape = 'u8[16384]{0}', space=vmem, size = 0x4000, scoped, tag = 'input window, operand 5, single buffered']
    #allocation7 [shape = 'u8[512]{0}', space=vmem, size = 0x400, scoped, tag = 'input window, operand 6, single buffered']
    #allocation8 [shape = 's32[1]{0}', space=sflag, size = 0x4, scoped, tag = 'scoped memory for aclstm_forward.1']
    #allocation9 [shape = 'u8[16384]{0}', space=vmem, size = 0x4000, scoped, tag = 'input window, operand 7, single buffered']
    #allocation10 [shape = 'u8[16384]{0}', space=vmem, size = 0x4000, scoped, tag = 'input window, operand 8, single buffered']
    #allocation11 [shape = 's32[1]{0}', space=sflag, size = 0x4, scoped, tag = 'scoped memory for aclstm_forward.1']
    %17 = vsyncpa [#allocation3], 0
    %18 = vsyncpa [#allocation5], 0
    %19 = vsyncpa [#allocation8], 0
    %20 = vsyncpa [#allocation11], 0
    // Predicated region
    $region2: #{aclstm_forward.1} parent=1 // pred_check
      _
    $region3: #{aclstm_forward.1} parent=1 // pred_check_branch
      %22 = sbr.rel (0) target = $region5
    $region4: #{aclstm_forward.1} parent=1 // pred_region
      _
    $region5: #{aclstm_forward.1} parent=1 // pred_fallthru
      _
    // Predicated region
    $region6: #{aclstm_forward.1} parent=1 // pred_check
      _
    $region7: #{aclstm_forward.1} parent=1 // pred_check_branch
      %24 = sbr.rel (0) target = $region9
    $region8: #{aclstm_forward.1} parent=1 // pred_region
      %s26 = ssub.s32 256, 256
      %27 = vsyncadd [#allocation3], %s26
      %s28 = sshll.u32 [#allocation2], 4
      %s29 = int_to_ptr.vmem [resolvable:$true] %s28
      %34 = dma.hbm_to_vmem [thread:$0]  %s1, 256, %s29, [#allocation3], 128, 128, 8
    $region9: #{aclstm_forward.1} parent=1 // pred_fallthru
      _
    // Predicated region
    $region10: #{aclstm_forward.1} parent=1 // pred_check
      _
    $region11: #{aclstm_forward.1} parent=1 // pred_check_branch
      %36 = sbr.rel (0) target = $region13
    $region12: #{aclstm_forward.1} parent=1 // pred_region
      _
    $region13: #{aclstm_forward.1} parent=1 // pred_fallthru
      _
    // Predicated region
    $region14: #{aclstm_forward.1} parent=1 // pred_check
      _
    $region15: #{aclstm_forward.1} parent=1 // pred_check_branch
      %38 = sbr.rel (0) target = $region17
    $region16: #{aclstm_forward.1} parent=1 // pred_region
      %s40 = ssub.s32 16, 16
      %41 = vsyncadd [#allocation5], %s40
      %s43 = sshll.u32 [#allocation4], 4
      %s44 = int_to_ptr.vmem [resolvable:$true] %s43
      %46 = dma.hbm_to_vmem [thread:$0]  %s3, 16, %s44, [#allocation5]
    $region17: #{aclstm_forward.1} parent=1 // pred_fallthru
      _
    // Predicated region
    $region18: #{aclstm_forward.1} parent=1 // pred_check
      _
    $region19: #{aclstm_forward.1} parent=1 // pred_check_branch
      %48 = sbr.rel (0) target = $region21
    $region20: #{aclstm_forward.1} parent=1 // pred_region
      _
    $region21: #{aclstm_forward.1} parent=1 // pred_fallthru
      _
    // Predicated region
    $region22: #{aclstm_forward.1} parent=1 // pred_check
      _
    $region23: #{aclstm_forward.1} parent=1 // pred_check_branch
      %50 = sbr.rel (0) target = $region25
    $region24: #{aclstm_forward.1} parent=1 // pred_region
      %s52 = ssub.s32 512, 512
      %53 = vsyncadd [#allocation5], %s52
      %s54 = sshll.u32 [#allocation6], 4
      %s55 = int_to_ptr.vmem [resolvable:$true] %s54
      %60 = dma.hbm_to_vmem [thread:$0]  %s5, 512, %s55, [#allocation5], 128, 128, 8
    $region25: #{aclstm_forward.1} parent=1 // pred_fallthru
      _
    // Predicated region
    $region26: #{aclstm_forward.1} parent=1 // pred_check
      _
    $region27: #{aclstm_forward.1} parent=1 // pred_check_branch
      %62 = sbr.rel (0) target = $region29
    $region28: #{aclstm_forward.1} parent=1 // pred_region
      %s64 = ssub.s32 16, 16
      %65 = vsyncadd [#allocation8], %s64
      %s67 = sshll.u32 [#allocation7], 4
      %s68 = int_to_ptr.vmem [resolvable:$true] %s67
      %70 = dma.hbm_to_vmem [thread:$0]  %s6, 16, %s68, [#allocation8]
    $region29: #{aclstm_forward.1} parent=1 // pred_fallthru
      _
    // Predicated region
    $region30: #{aclstm_forward.1} parent=1 // pred_check
      _
    $region31: #{aclstm_forward.1} parent=1 // pred_check_branch
      %72 = sbr.rel (0) target = $region33
    $region32: #{aclstm_forward.1} parent=1 // pred_region
      %s74 = ssub.s32 512, 512
      %75 = vsyncadd [#allocation8], %s74
      %s76 = sshll.u32 [#allocation9], 4
      %s77 = int_to_ptr.vmem [resolvable:$true] %s76
      %82 = dma.hbm_to_vmem [thread:$0]  %s7, 512, %s77, [#allocation8], 128, 128, 8
    $region33: #{aclstm_forward.1} parent=1 // pred_fallthru
      _
    // Predicated region
    $region34: #{aclstm_forward.1} parent=1 // pred_check
      _
    $region35: #{aclstm_forward.1} parent=1 // pred_check_branch
      %84 = sbr.rel (0) target = $region37
    $region36: #{aclstm_forward.1} parent=1 // pred_region
      %s86 = ssub.s32 512, 512
      %87 = vsyncadd [#allocation11], %s86
      %s88 = sshll.u32 [#allocation10], 4
      %s89 = int_to_ptr.vmem [resolvable:$true] %s88
      %94 = dma.hbm_to_vmem [thread:$0]  %s8, 512, %s89, [#allocation11], 128, 128, 8
    $region37: #{aclstm_forward.1} parent=1 // pred_fallthru
      _
    // Predicated region
    $region38: #{aclstm_forward.1} parent=1 // pred_check
      _
    $region39: #{aclstm_forward.1} parent=1 // pred_check_branch
      %96 = sbr.rel (0) target = $region41
    $region40: #{aclstm_forward.1} parent=1 // pred_region
      _
    $region41: #{aclstm_forward.1} parent=1 // pred_fallthru
      _
    // Predicated region
    $region42: #{aclstm_forward.1} parent=1 // pred_check
      _
    $region43: #{aclstm_forward.1} parent=1 // pred_check_branch
      %98 = sbr.rel (0) target = $region45
    $region44: #{aclstm_forward.1} parent=1 // pred_region
      _
    $region45: #{aclstm_forward.1} parent=1 // pred_fallthru
      _
    // Predicated region
    $region46: #{aclstm_forward.1} parent=1 // pred_check
      _
    $region47: #{aclstm_forward.1} parent=1 // pred_check_branch
      %100 = sbr.rel (0) target = $region49
    $region48: #{aclstm_forward.1} parent=1 // pred_region
      _
    $region49: #{aclstm_forward.1} parent=1 // pred_fallthru
      _
    // Predicated region
    $region50: #{aclstm_forward.1} parent=1 // pred_check
      _
    $region51: #{aclstm_forward.1} parent=1 // pred_check_branch
      %102 = sbr.rel (0) target = $region53
    $region52: #{aclstm_forward.1} parent=1 // pred_region
      %103 = dma.done [#allocation3], 256
    $region53: #{aclstm_forward.1} parent=1 // pred_fallthru
      _
    // Predicated region
    $region54: #{aclstm_forward.1} parent=1 // pred_check
      _
    $region55: #{aclstm_forward.1} parent=1 // pred_check_branch
      %105 = sbr.rel (0) target = $region57
    $region56: #{aclstm_forward.1} parent=1 // pred_region
      %106 = dma.done [#allocation5], 16
    $region57: #{aclstm_forward.1} parent=1 // pred_fallthru
      _
    // Predicated region
    $region58: #{aclstm_forward.1} parent=1 // pred_check
      _
    $region59: #{aclstm_forward.1} parent=1 // pred_check_branch
      %108 = sbr.rel (0) target = $region61
    $region60: #{aclstm_forward.1} parent=1 // pred_region
      %109 = dma.done [#allocation5], 512
    $region61: #{aclstm_forward.1} parent=1 // pred_fallthru
      _
    // Predicated region
    $region62: #{aclstm_forward.1} parent=1 // pred_check
      _
    $region63: #{aclstm_forward.1} parent=1 // pred_check_branch
      %111 = sbr.rel (0) target = $region65
    $region64: #{aclstm_forward.1} parent=1 // pred_region
      %112 = dma.done [#allocation8], 16
    $region65: #{aclstm_forward.1} parent=1 // pred_fallthru
      _
    // Predicated region
    $region66: #{aclstm_forward.1} parent=1 // pred_check
      _
    $region67: #{aclstm_forward.1} parent=1 // pred_check_branch
      %114 = sbr.rel (0) target = $region69
    $region68: #{aclstm_forward.1} parent=1 // pred_region
      %115 = dma.done [#allocation8], 512
    $region69: #{aclstm_forward.1} parent=1 // pred_fallthru
      _
    // Predicated region
    $region70: #{aclstm_forward.1} parent=1 // pred_check
      _
    $region71: #{aclstm_forward.1} parent=1 // pred_check_branch
      %117 = sbr.rel (0) target = $region73
    $region72: #{aclstm_forward.1} parent=1 // pred_region
      %118 = dma.done [#allocation11], 512
    $region73: #{aclstm_forward.1} parent=1 // pred_fallthru
      _
    %v119 = vld [vmem:[#allocation2] sm:$0xff]
    %v120 = vld [vmem:[#allocation2 + $0x8] sm:$0xff]
    %v121 = vld [vmem:[#allocation4] sm:$0x1]
    %v122 = vld [vmem:[%s10] sm:$0xff]
    %v123 = vld [vmem:[%s10 + $0x8] sm:$0xff]
    %v124 = vld [vmem:[%s10 + $0x10] sm:$0xff]
    %v125 = vld [vmem:[%s10 + $0x18] sm:$0xff]
    %vm126 = vcmask 130048
    %v128 = vsel %vm126, %v122, 0
    %v131 = vsel %vm126, %v123, 0
    %v134 = vsel %vm126, %v124, 0
    %v137 = vsel %vm126, %v125, 0
    %139 = vmatprep.subr.mxu0 0.0
    %140 = vmatpush1.msra.mxu0 0.0
    %141 = vmatprep.subr.mxu0 0.0
    %142 = vmatpush1.msra.mxu0 0.0
    %143 = vmatprep.subr.mxu0 0.0
    %144 = vmatpush1.msra.mxu0 0.0
    %145 = vmatprep.subr.mxu0 0.0
    %146 = vmatpush1.msra.mxu0 0.0
    %147 = vmatprep.subr.mxu0 0.0
    %148 = vmatpush1.msra.mxu0 0.0
    %149 = vmatprep.subr.mxu0 0.0
    %150 = vmatpush1.msra.mxu0 0.0
    %151 = vmatprep.subr.mxu0 0.0
    %152 = vmatpush1.msra.mxu0 0.0
    %153 = vmatprep.subr.mxu0 0.0
    %154 = vmatpush1.msra.mxu0 0.0
    %155 = vmatprep.subr.mxu0 0.0
    %156 = vmatpush1.msra.mxu0 0.0
    %157 = vmatprep.subr.mxu0 0.0
    %158 = vmatpush1.msra.mxu0 0.0
    %159 = vmatprep.subr.mxu0 0.0
    %160 = vmatpush1.msra.mxu0 0.0
    %161 = vmatprep.subr.mxu0 0.0
    %162 = vmatpush1.msra.mxu0 0.0
    %163 = vmatprep.subr.mxu0 0.0
    %164 = vmatpush1.msra.mxu0 0.0
    %165 = vmatprep.subr.mxu0 0.0
    %166 = vmatpush1.msra.mxu0 0.0
    %167 = vmatprep.subr.mxu0 0.0
    %168 = vmatpush1.msra.mxu0 %v120
    %169 = vmatprep.subr.mxu0 0.0
    %170 = vmatpush1.msra.mxu0 %v119
    %171 = vmatprep.subr.mxu0 0.0
    %172 = vmatpush2.msra.mxu0 0.0
    %173 = vmatprep.subr.mxu0 0.0
    %174 = vmatpush2.msra.mxu0 0.0
    %175 = vmatprep.subr.mxu0 0.0
    %176 = vmatpush2.msra.mxu0 0.0
    %177 = vmatprep.subr.mxu0 0.0
    %178 = vmatpush2.msra.mxu0 0.0
    %179 = vmatprep.subr.mxu0 0.0
    %180 = vmatpush2.msra.mxu0 0.0
    %181 = vmatprep.subr.mxu0 0.0
    %182 = vmatpush2.msra.mxu0 0.0
    %183 = vmatprep.subr.mxu0 0.0
    %184 = vmatpush2.msra.mxu0 0.0
    %185 = vmatprep.subr.mxu0 0.0
    %186 = vmatpush2.msra.mxu0 0.0
    %187 = vmatprep.subr.mxu0 0.0
    %188 = vmatpush2.msra.mxu0 0.0
    %189 = vmatprep.subr.mxu0 0.0
    %190 = vmatpush2.msra.mxu0 0.0
    %191 = vmatprep.subr.mxu0 0.0
    %192 = vmatpush2.msra.mxu0 0.0
    %193 = vmatprep.subr.mxu0 0.0
    %194 = vmatpush2.msra.mxu0 0.0
    %195 = vmatprep.subr.mxu0 0.0
    %196 = vmatpush2.msra.mxu0 0.0
    %197 = vmatprep.subr.mxu0 0.0
    %198 = vmatpush2.msra.mxu0 0.0
    %199 = vmatprep.subr.mxu0 0.0
    %200 = vmatpush2.msra.mxu0 0.0
    %201 = vmatprep.subr.mxu0 0.0
    %202 = vmatpush2.msra.mxu0 0.0
    %203 = vmatprep.mubr.f32.mxu0 0.0
    %204 = vmatmul.mubr.f32.gmra.mxu0 %v128
    %v205 = vpop.f32.mrf.mxu0
    %v206 = vadd.f32 0.0, %v205
    %v207 = vpop.f32.mrf.mxu0
    %208 = vmatprep.mubr.f32.mxu0 0.0
    %209 = vmatmul.mubr.f32.gmra.mxu0 %v131
    %v210 = vpop.f32.mrf.mxu0
    %v211 = vadd.f32 0.0, %v210
    %v212 = vpop.f32.mrf.mxu0
    %213 = vmatprep.mubr.f32.mxu0 0.0
    %214 = vmatmul.mubr.f32.gmra.mxu0 %v134
    %v215 = vpop.f32.mrf.mxu0
    %v216 = vadd.f32 0.0, %v215
    %v217 = vpop.f32.mrf.mxu0
    %218 = vmatprep.mubr.f32.mxu0 0.0
    %219 = vmatmul.mubr.f32.gmra.mxu0 %v137
    %v220 = vpop.f32.mrf.mxu0
    %v221 = vadd.f32 0.0, %v220
    %v222 = vpop.f32.mrf.mxu0
    %223 = vdwg.mxu0
    %v224 = vld [vmem:[%s11] sm:$0x1]
    %v226 = vsel %vm126, %v224, 0
    %228 = vmatprep.subr.mxu0 0.0
    %229 = vmatpush1.msra.mxu0 0.0
    %230 = vmatprep.subr.mxu0 0.0
    %231 = vmatpush1.msra.mxu0 0.0
    %232 = vmatprep.subr.mxu0 0.0
    %233 = vmatpush1.msra.mxu0 0.0
    %234 = vmatprep.subr.mxu0 0.0
    %235 = vmatpush1.msra.mxu0 0.0
    %236 = vmatprep.subr.mxu0 0.0
    %237 = vmatpush1.msra.mxu0 0.0
    %238 = vmatprep.subr.mxu0 0.0
    %239 = vmatpush1.msra.mxu0 0.0
    %240 = vmatprep.subr.mxu0 0.0
    %241 = vmatpush1.msra.mxu0 0.0
    %242 = vmatprep.subr.mxu0 0.0
    %243 = vmatpush1.msra.mxu0 0.0
    %244 = vmatprep.subr.mxu0 0.0
    %245 = vmatpush1.msra.mxu0 0.0
    %246 = vmatprep.subr.mxu0 0.0
    %247 = vmatpush1.msra.mxu0 0.0
    %248 = vmatprep.subr.mxu0 0.0
    %249 = vmatpush1.msra.mxu0 0.0
    %250 = vmatprep.subr.mxu0 0.0
    %251 = vmatpush1.msra.mxu0 0.0
    %252 = vmatprep.subr.mxu0 0.0
    %253 = vmatpush1.msra.mxu0 0.0
    %254 = vmatprep.subr.mxu0 0.0
    %255 = vmatpush1.msra.mxu0 0.0
    %256 = vmatprep.subr.mxu0 0.0
    %257 = vmatpush1.msra.mxu0 %v120
    %258 = vmatprep.subr.mxu0 0.0
    %259 = vmatpush1.msra.mxu0 %v119
    %260 = vmatprep.subr.mxu0 0.0
    %261 = vmatpush2.msra.mxu0 0.0
    %262 = vmatprep.subr.mxu0 0.0
    %263 = vmatpush2.msra.mxu0 0.0
    %264 = vmatprep.subr.mxu0 0.0
    %265 = vmatpush2.msra.mxu0 0.0
    %266 = vmatprep.subr.mxu0 0.0
    %267 = vmatpush2.msra.mxu0 0.0
    %268 = vmatprep.subr.mxu0 0.0
    %269 = vmatpush2.msra.mxu0 0.0
    %270 = vmatprep.subr.mxu0 0.0
    %271 = vmatpush2.msra.mxu0 0.0
    %272 = vmatprep.subr.mxu0 0.0
    %273 = vmatpush2.msra.mxu0 0.0
    %274 = vmatprep.subr.mxu0 0.0
    %275 = vmatpush2.msra.mxu0 0.0
    %276 = vmatprep.subr.mxu0 0.0
    %277 = vmatpush2.msra.mxu0 0.0
    %278 = vmatprep.subr.mxu0 0.0
    %279 = vmatpush2.msra.mxu0 0.0
    %280 = vmatprep.subr.mxu0 0.0
    %281 = vmatpush2.msra.mxu0 0.0
    %282 = vmatprep.subr.mxu0 0.0
    %283 = vmatpush2.msra.mxu0 0.0
    %284 = vmatprep.subr.mxu0 0.0
    %285 = vmatpush2.msra.mxu0 0.0
    %286 = vmatprep.subr.mxu0 0.0
    %287 = vmatpush2.msra.mxu0 0.0
    %288 = vmatprep.subr.mxu0 0.0
    %289 = vmatpush2.msra.mxu0 0.0
    %290 = vmatprep.subr.mxu0 0.0
    %291 = vmatpush2.msra.mxu0 0.0
    %292 = vmatprep.mubr.f32.mxu0 0.0
    %293 = vmatmul.mubr.f32.gmra.mxu0 %v226
    %v294 = vpop.f32.mrf.mxu0
    %v295 = vadd.f32 %v121, %v294
    %v296 = vpop.f32.mrf.mxu0
    %297 = vdwg.mxu0
    %v298 = vld [vmem:[%s0] sm:$0x3]
    %v300 = vlaneseq
    %v301 = vshrl.u32 %v300, 7
    %v302 = vsub.s32 0, %v301
    %v303 = vrot.slane %v121, %v302
    %v306 = vsel %vm126, %v298, 0
    %308 = vmatprep.subr.mxu0 0.0
    %309 = vmatpush1.msra.mxu0 0.0
    %310 = vmatprep.subr.mxu0 0.0
    %311 = vmatpush1.msra.mxu0 0.0
    %312 = vmatprep.subr.mxu0 0.0
    %313 = vmatpush1.msra.mxu0 0.0
    %314 = vmatprep.subr.mxu0 0.0
    %315 = vmatpush1.msra.mxu0 0.0
    %316 = vmatprep.subr.mxu0 0.0
    %317 = vmatpush1.msra.mxu0 0.0
    %318 = vmatprep.subr.mxu0 0.0
    %319 = vmatpush1.msra.mxu0 0.0
    %320 = vmatprep.subr.mxu0 0.0
    %321 = vmatpush1.msra.mxu0 0.0
    %322 = vmatprep.subr.mxu0 0.0
    %323 = vmatpush1.msra.mxu0 0.0
    %324 = vmatprep.subr.mxu0 0.0
    %325 = vmatpush1.msra.mxu0 0.0
    %326 = vmatprep.subr.mxu0 0.0
    %327 = vmatpush1.msra.mxu0 0.0
    %328 = vmatprep.subr.mxu0 0.0
    %329 = vmatpush1.msra.mxu0 0.0
    %330 = vmatprep.subr.mxu0 0.0
    %331 = vmatpush1.msra.mxu0 0.0
    %332 = vmatprep.subr.mxu0 0.0
    %333 = vmatpush1.msra.mxu0 0.0
    %334 = vmatprep.subr.mxu0 0.0
    %335 = vmatpush1.msra.mxu0 0.0
    %336 = vmatprep.subr.mxu0 0.0
    %337 = vmatpush1.msra.mxu0 %v120
    %338 = vmatprep.subr.mxu0 0.0
    %339 = vmatpush1.msra.mxu0 %v119
    %340 = vmatprep.subr.mxu0 0.0
    %341 = vmatpush2.msra.mxu0 0.0
    %342 = vmatprep.subr.mxu0 0.0
    %343 = vmatpush2.msra.mxu0 0.0
    %344 = vmatprep.subr.mxu0 0.0
    %345 = vmatpush2.msra.mxu0 0.0
    %346 = vmatprep.subr.mxu0 0.0
    %347 = vmatpush2.msra.mxu0 0.0
    %348 = vmatprep.subr.mxu0 0.0
    %349 = vmatpush2.msra.mxu0 0.0
    %350 = vmatprep.subr.mxu0 0.0
    %351 = vmatpush2.msra.mxu0 0.0
    %352 = vmatprep.subr.mxu0 0.0
    %353 = vmatpush2.msra.mxu0 0.0
    %354 = vmatprep.subr.mxu0 0.0
    %355 = vmatpush2.msra.mxu0 0.0
    %356 = vmatprep.subr.mxu0 0.0
    %357 = vmatpush2.msra.mxu0 0.0
    %358 = vmatprep.subr.mxu0 0.0
    %359 = vmatpush2.msra.mxu0 0.0
    %360 = vmatprep.subr.mxu0 0.0
    %361 = vmatpush2.msra.mxu0 0.0
    %362 = vmatprep.subr.mxu0 0.0
    %363 = vmatpush2.msra.mxu0 0.0
    %364 = vmatprep.subr.mxu0 0.0
    %365 = vmatpush2.msra.mxu0 0.0
    %366 = vmatprep.subr.mxu0 0.0
    %367 = vmatpush2.msra.mxu0 0.0
    %368 = vmatprep.subr.mxu0 0.0
    %369 = vmatpush2.msra.mxu0 0.0
    %370 = vmatprep.subr.mxu0 0.0
    %371 = vmatpush2.msra.mxu0 0.0
    %372 = vmatprep.mubr.f32.mxu0 0.0
    %373 = vmatmul.mubr.f32.gmra.mxu0 %v306
    %v374 = vpop.f32.mrf.mxu0
    %v375 = vadd.f32 %v303, %v374
    %v376 = vpop.f32.mrf.mxu0
    %377 = vdwg.mxu0
    %378 = vrot.lane.b32.xlu0 %v298, 112
    %v379 = vpop.permute.xlu0 %378
    %v380 = vsel %vm126, %v379, 0
    %382 = vmatprep.subr.mxu0 0.0
    %383 = vmatpush1.msra.mxu0 0.0
    %384 = vmatprep.subr.mxu0 0.0
    %385 = vmatpush1.msra.mxu0 0.0
    %386 = vmatprep.subr.mxu0 0.0
    %387 = vmatpush1.msra.mxu0 0.0
    %388 = vmatprep.subr.mxu0 0.0
    %389 = vmatpush1.msra.mxu0 0.0
    %390 = vmatprep.subr.mxu0 0.0
    %391 = vmatpush1.msra.mxu0 0.0
    %392 = vmatprep.subr.mxu0 0.0
    %393 = vmatpush1.msra.mxu0 0.0
    %394 = vmatprep.subr.mxu0 0.0
    %395 = vmatpush1.msra.mxu0 0.0
    %396 = vmatprep.subr.mxu0 0.0
    %397 = vmatpush1.msra.mxu0 0.0
    %398 = vmatprep.subr.mxu0 0.0
    %399 = vmatpush1.msra.mxu0 0.0
    %400 = vmatprep.subr.mxu0 0.0
    %401 = vmatpush1.msra.mxu0 0.0
    %402 = vmatprep.subr.mxu0 0.0
    %403 = vmatpush1.msra.mxu0 0.0
    %404 = vmatprep.subr.mxu0 0.0
    %405 = vmatpush1.msra.mxu0 0.0
    %406 = vmatprep.subr.mxu0 0.0
    %407 = vmatpush1.msra.mxu0 0.0
    %408 = vmatprep.subr.mxu0 0.0
    %409 = vmatpush1.msra.mxu0 0.0
    %410 = vmatprep.subr.mxu0 0.0
    %411 = vmatpush1.msra.mxu0 %v120
    %412 = vmatprep.subr.mxu0 0.0
    %413 = vmatpush1.msra.mxu0 %v119
    %414 = vmatprep.subr.mxu0 0.0
    %415 = vmatpush2.msra.mxu0 0.0
    %416 = vmatprep.subr.mxu0 0.0
    %417 = vmatpush2.msra.mxu0 0.0
    %418 = vmatprep.subr.mxu0 0.0
    %419 = vmatpush2.msra.mxu0 0.0
    %420 = vmatprep.subr.mxu0 0.0
    %421 = vmatpush2.msra.mxu0 0.0
    %422 = vmatprep.subr.mxu0 0.0
    %423 = vmatpush2.msra.mxu0 0.0
    %424 = vmatprep.subr.mxu0 0.0
    %425 = vmatpush2.msra.mxu0 0.0
    %426 = vmatprep.subr.mxu0 0.0
    %427 = vmatpush2.msra.mxu0 0.0
    %428 = vmatprep.subr.mxu0 0.0
    %429 = vmatpush2.msra.mxu0 0.0
    %430 = vmatprep.subr.mxu0 0.0
    %431 = vmatpush2.msra.mxu0 0.0
    %432 = vmatprep.subr.mxu0 0.0
    %433 = vmatpush2.msra.mxu0 0.0
    %434 = vmatprep.subr.mxu0 0.0
    %435 = vmatpush2.msra.mxu0 0.0
    %436 = vmatprep.subr.mxu0 0.0
    %437 = vmatpush2.msra.mxu0 0.0
    %438 = vmatprep.subr.mxu0 0.0
    %439 = vmatpush2.msra.mxu0 0.0
    %440 = vmatprep.subr.mxu0 0.0
    %441 = vmatpush2.msra.mxu0 0.0
    %442 = vmatprep.subr.mxu0 0.0
    %443 = vmatpush2.msra.mxu0 0.0
    %444 = vmatprep.subr.mxu0 0.0
    %445 = vmatpush2.msra.mxu0 0.0
    %446 = vmatprep.mubr.f32.mxu0 0.0
    %447 = vmatmul.mubr.f32.gmra.mxu0 %v380
    %v448 = vpop.f32.mrf.mxu0
    %v449 = vadd.f32 %v303, %v448
    %v450 = vpop.f32.mrf.mxu0
    %451 = vdwg.mxu0
    %452 = vrot.lane.b32.xlu0 %v298, 96
    %v453 = vpop.permute.xlu0 %452
    %v454 = vsel %vm126, %v453, 0
    %456 = vmatprep.subr.mxu0 0.0
    %457 = vmatpush1.msra.mxu0 0.0
    %458 = vmatprep.subr.mxu0 0.0
    %459 = vmatpush1.msra.mxu0 0.0
    %460 = vmatprep.subr.mxu0 0.0
    %461 = vmatpush1.msra.mxu0 0.0
    %462 = vmatprep.subr.mxu0 0.0
    %463 = vmatpush1.msra.mxu0 0.0
    %464 = vmatprep.subr.mxu0 0.0
    %465 = vmatpush1.msra.mxu0 0.0
    %466 = vmatprep.subr.mxu0 0.0
    %467 = vmatpush1.msra.mxu0 0.0
    %468 = vmatprep.subr.mxu0 0.0
    %469 = vmatpush1.msra.mxu0 0.0
    %470 = vmatprep.subr.mxu0 0.0
    %471 = vmatpush1.msra.mxu0 0.0
    %472 = vmatprep.subr.mxu0 0.0
    %473 = vmatpush1.msra.mxu0 0.0
    %474 = vmatprep.subr.mxu0 0.0
    %475 = vmatpush1.msra.mxu0 0.0
    %476 = vmatprep.subr.mxu0 0.0
    %477 = vmatpush1.msra.mxu0 0.0
    %478 = vmatprep.subr.mxu0 0.0
    %479 = vmatpush1.msra.mxu0 0.0
    %480 = vmatprep.subr.mxu0 0.0
    %481 = vmatpush1.msra.mxu0 0.0
    %482 = vmatprep.subr.mxu0 0.0
    %483 = vmatpush1.msra.mxu0 0.0
    %484 = vmatprep.subr.mxu0 0.0
    %485 = vmatpush1.msra.mxu0 %v120
    %486 = vmatprep.subr.mxu0 0.0
    %487 = vmatpush1.msra.mxu0 %v119
    %488 = vmatprep.subr.mxu0 0.0
    %489 = vmatpush2.msra.mxu0 0.0
    %490 = vmatprep.subr.mxu0 0.0
    %491 = vmatpush2.msra.mxu0 0.0
    %492 = vmatprep.subr.mxu0 0.0
    %493 = vmatpush2.msra.mxu0 0.0
    %494 = vmatprep.subr.mxu0 0.0
    %495 = vmatpush2.msra.mxu0 0.0
    %496 = vmatprep.subr.mxu0 0.0
    %497 = vmatpush2.msra.mxu0 0.0
    %498 = vmatprep.subr.mxu0 0.0
    %499 = vmatpush2.msra.mxu0 0.0
    %500 = vmatprep.subr.mxu0 0.0
    %501 = vmatpush2.msra.mxu0 0.0
    %502 = vmatprep.subr.mxu0 0.0
    %503 = vmatpush2.msra.mxu0 0.0
    %504 = vmatprep.subr.mxu0 0.0
    %505 = vmatpush2.msra.mxu0 0.0
    %506 = vmatprep.subr.mxu0 0.0
    %507 = vmatpush2.msra.mxu0 0.0
    %508 = vmatprep.subr.mxu0 0.0
    %509 = vmatpush2.msra.mxu0 0.0
    %510 = vmatprep.subr.mxu0 0.0
    %511 = vmatpush2.msra.mxu0 0.0
    %512 = vmatprep.subr.mxu0 0.0
    %513 = vmatpush2.msra.mxu0 0.0
    %514 = vmatprep.subr.mxu0 0.0
    %515 = vmatpush2.msra.mxu0 0.0
    %516 = vmatprep.subr.mxu0 0.0
    %517 = vmatpush2.msra.mxu0 0.0
    %518 = vmatprep.subr.mxu0 0.0
    %519 = vmatpush2.msra.mxu0 0.0
    %520 = vmatprep.mubr.f32.mxu0 0.0
    %521 = vmatmul.mubr.f32.gmra.mxu0 %v454
    %v522 = vpop.f32.mrf.mxu0
    %v523 = vadd.f32 %v303, %v522
    %v524 = vpop.f32.mrf.mxu0
    %525 = vdwg.mxu0
    %526 = vrot.lane.b32.xlu0 %v298, 80
    %v527 = vpop.permute.xlu0 %526
    %v528 = vsel %vm126, %v527, 0
    %530 = vmatprep.subr.mxu0 0.0
    %531 = vmatpush1.msra.mxu0 0.0
    %532 = vmatprep.subr.mxu0 0.0
    %533 = vmatpush1.msra.mxu0 0.0
    %534 = vmatprep.subr.mxu0 0.0
    %535 = vmatpush1.msra.mxu0 0.0
    %536 = vmatprep.subr.mxu0 0.0
    %537 = vmatpush1.msra.mxu0 0.0
    %538 = vmatprep.subr.mxu0 0.0
    %539 = vmatpush1.msra.mxu0 0.0
    %540 = vmatprep.subr.mxu0 0.0
    %541 = vmatpush1.msra.mxu0 0.0
    %542 = vmatprep.subr.mxu0 0.0
    %543 = vmatpush1.msra.mxu0 0.0
    %544 = vmatprep.subr.mxu0 0.0
    %545 = vmatpush1.msra.mxu0 0.0
    %546 = vmatprep.subr.mxu0 0.0
    %547 = vmatpush1.msra.mxu0 0.0
    %548 = vmatprep.subr.mxu0 0.0
    %549 = vmatpush1.msra.mxu0 0.0
    %550 = vmatprep.subr.mxu0 0.0
    %551 = vmatpush1.msra.mxu0 0.0
    %552 = vmatprep.subr.mxu0 0.0
    %553 = vmatpush1.msra.mxu0 0.0
    %554 = vmatprep.subr.mxu0 0.0
    %555 = vmatpush1.msra.mxu0 0.0
    %556 = vmatprep.subr.mxu0 0.0
    %557 = vmatpush1.msra.mxu0 0.0
    %558 = vmatprep.subr.mxu0 0.0
    %559 = vmatpush1.msra.mxu0 %v120
    %560 = vmatprep.subr.mxu0 0.0
    %561 = vmatpush1.msra.mxu0 %v119
    %562 = vmatprep.subr.mxu0 0.0
    %563 = vmatpush2.msra.mxu0 0.0
    %564 = vmatprep.subr.mxu0 0.0
    %565 = vmatpush2.msra.mxu0 0.0
    %566 = vmatprep.subr.mxu0 0.0
    %567 = vmatpush2.msra.mxu0 0.0
    %568 = vmatprep.subr.mxu0 0.0
    %569 = vmatpush2.msra.mxu0 0.0
    %570 = vmatprep.subr.mxu0 0.0
    %571 = vmatpush2.msra.mxu0 0.0
    %572 = vmatprep.subr.mxu0 0.0
    %573 = vmatpush2.msra.mxu0 0.0
    %574 = vmatprep.subr.mxu0 0.0
    %575 = vmatpush2.msra.mxu0 0.0
    %576 = vmatprep.subr.mxu0 0.0
    %577 = vmatpush2.msra.mxu0 0.0
    %578 = vmatprep.subr.mxu0 0.0
    %579 = vmatpush2.msra.mxu0 0.0
    %580 = vmatprep.subr.mxu0 0.0
    %581 = vmatpush2.msra.mxu0 0.0
    %582 = vmatprep.subr.mxu0 0.0
    %583 = vmatpush2.msra.mxu0 0.0
    %584 = vmatprep.subr.mxu0 0.0
    %585 = vmatpush2.msra.mxu0 0.0
    %586 = vmatprep.subr.mxu0 0.0
    %587 = vmatpush2.msra.mxu0 0.0
    %588 = vmatprep.subr.mxu0 0.0
    %589 = vmatpush2.msra.mxu0 0.0
    %590 = vmatprep.subr.mxu0 0.0
    %591 = vmatpush2.msra.mxu0 0.0
    %592 = vmatprep.subr.mxu0 0.0
    %593 = vmatpush2.msra.mxu0 0.0
    %594 = vmatprep.mubr.f32.mxu0 0.0
    %595 = vmatmul.mubr.f32.gmra.mxu0 %v528
    %v596 = vpop.f32.mrf.mxu0
    %v597 = vadd.f32 %v303, %v596
    %v598 = vpop.f32.mrf.mxu0
    %599 = vdwg.mxu0
    %600 = vrot.lane.b32.xlu0 %v298, 64
    %v601 = vpop.permute.xlu0 %600
    %v602 = vsel %vm126, %v601, 0
    %604 = vmatprep.subr.mxu0 0.0
    %605 = vmatpush1.msra.mxu0 0.0
    %606 = vmatprep.subr.mxu0 0.0
    %607 = vmatpush1.msra.mxu0 0.0
    %608 = vmatprep.subr.mxu0 0.0
    %609 = vmatpush1.msra.mxu0 0.0
    %610 = vmatprep.subr.mxu0 0.0
    %611 = vmatpush1.msra.mxu0 0.0
    %612 = vmatprep.subr.mxu0 0.0
    %613 = vmatpush1.msra.mxu0 0.0
    %614 = vmatprep.subr.mxu0 0.0
    %615 = vmatpush1.msra.mxu0 0.0
    %616 = vmatprep.subr.mxu0 0.0
    %617 = vmatpush1.msra.mxu0 0.0
    %618 = vmatprep.subr.mxu0 0.0
    %619 = vmatpush1.msra.mxu0 0.0
    %620 = vmatprep.subr.mxu0 0.0
    %621 = vmatpush1.msra.mxu0 0.0
    %622 = vmatprep.subr.mxu0 0.0
    %623 = vmatpush1.msra.mxu0 0.0
    %624 = vmatprep.subr.mxu0 0.0
    %625 = vmatpush1.msra.mxu0 0.0
    %626 = vmatprep.subr.mxu0 0.0
    %627 = vmatpush1.msra.mxu0 0.0
    %628 = vmatprep.subr.mxu0 0.0
    %629 = vmatpush1.msra.mxu0 0.0
    %630 = vmatprep.subr.mxu0 0.0
    %631 = vmatpush1.msra.mxu0 0.0
    %632 = vmatprep.subr.mxu0 0.0
    %633 = vmatpush1.msra.mxu0 %v120
    %634 = vmatprep.subr.mxu0 0.0
    %635 = vmatpush1.msra.mxu0 %v119
    %636 = vmatprep.subr.mxu0 0.0
    %637 = vmatpush2.msra.mxu0 0.0
    %638 = vmatprep.subr.mxu0 0.0
    %639 = vmatpush2.msra.mxu0 0.0
    %640 = vmatprep.subr.mxu0 0.0
    %641 = vmatpush2.msra.mxu0 0.0
    %642 = vmatprep.subr.mxu0 0.0
    %643 = vmatpush2.msra.mxu0 0.0
    %644 = vmatprep.subr.mxu0 0.0
    %645 = vmatpush2.msra.mxu0 0.0
    %646 = vmatprep.subr.mxu0 0.0
    %647 = vmatpush2.msra.mxu0 0.0
    %648 = vmatprep.subr.mxu0 0.0
    %649 = vmatpush2.msra.mxu0 0.0
    %650 = vmatprep.subr.mxu0 0.0
    %651 = vmatpush2.msra.mxu0 0.0
    %652 = vmatprep.subr.mxu0 0.0
    %653 = vmatpush2.msra.mxu0 0.0
    %654 = vmatprep.subr.mxu0 0.0
    %655 = vmatpush2.msra.mxu0 0.0
    %656 = vmatprep.subr.mxu0 0.0
    %657 = vmatpush2.msra.mxu0 0.0
    %658 = vmatprep.subr.mxu0 0.0
    %659 = vmatpush2.msra.mxu0 0.0
    %660 = vmatprep.subr.mxu0 0.0
    %661 = vmatpush2.msra.mxu0 0.0
    %662 = vmatprep.subr.mxu0 0.0
    %663 = vmatpush2.msra.mxu0 0.0
    %664 = vmatprep.subr.mxu0 0.0
    %665 = vmatpush2.msra.mxu0 0.0
    %666 = vmatprep.subr.mxu0 0.0
    %667 = vmatpush2.msra.mxu0 0.0
    %668 = vmatprep.mubr.f32.mxu0 0.0
    %669 = vmatmul.mubr.f32.gmra.mxu0 %v602
    %v670 = vpop.f32.mrf.mxu0
    %v671 = vadd.f32 %v303, %v670
    %v672 = vpop.f32.mrf.mxu0
    %673 = vdwg.mxu0
    %v674 = vld [vmem:[%s2] sm:$0xff]
    %v675 = vld [vmem:[%s2 + $0x8] sm:$0xff]
    %v676 = vld [vmem:[%s2 + $0x10] sm:$0xff]
    %v677 = vld [vmem:[%s2 + $0x18] sm:$0xff]
    %vm678 = vcmask 261120
    %v680 = vsel %vm678, 0.0, 0
    %682 = vmatprep.subr.mxu0 0.0
    %683 = vmatpush1.msra.mxu0 0.0
    %684 = vmatprep.subr.mxu0 0.0
    %685 = vmatpush1.msra.mxu0 0.0
    %686 = vmatprep.subr.mxu0 0.0
    %687 = vmatpush1.msra.mxu0 0.0
    %688 = vmatprep.subr.mxu0 0.0
    %689 = vmatpush1.msra.mxu0 0.0
    %690 = vmatprep.subr.mxu0 0.0
    %691 = vmatpush1.msra.mxu0 0.0
    %692 = vmatprep.subr.mxu0 0.0
    %693 = vmatpush1.msra.mxu0 0.0
    %694 = vmatprep.subr.mxu0 0.0
    %695 = vmatpush1.msra.mxu0 0.0
    %696 = vmatprep.subr.mxu0 0.0
    %697 = vmatpush1.msra.mxu0 0.0
    %698 = vmatprep.subr.mxu0 0.0
    %699 = vmatpush1.msra.mxu0 0.0
    %700 = vmatprep.subr.mxu0 0.0
    %701 = vmatpush1.msra.mxu0 0.0
    %702 = vmatprep.subr.mxu0 0.0
    %703 = vmatpush1.msra.mxu0 0.0
    %704 = vmatprep.subr.mxu0 0.0
    %705 = vmatpush1.msra.mxu0 0.0
    %706 = vmatprep.subr.mxu0 0.0
    %707 = vmatpush1.msra.mxu0 %v677
    %708 = vmatprep.subr.mxu0 0.0
    %709 = vmatpush1.msra.mxu0 %v676
    %710 = vmatprep.subr.mxu0 0.0
    %711 = vmatpush1.msra.mxu0 %v675
    %712 = vmatprep.subr.mxu0 0.0
    %713 = vmatpush1.msra.mxu0 %v674
    %714 = vmatprep.subr.mxu0 0.0
    %715 = vmatpush2.msra.mxu0 0.0
    %716 = vmatprep.subr.mxu0 0.0
    %717 = vmatpush2.msra.mxu0 0.0
    %718 = vmatprep.subr.mxu0 0.0
    %719 = vmatpush2.msra.mxu0 0.0
    %720 = vmatprep.subr.mxu0 0.0
    %721 = vmatpush2.msra.mxu0 0.0
    %722 = vmatprep.subr.mxu0 0.0
    %723 = vmatpush2.msra.mxu0 0.0
    %724 = vmatprep.subr.mxu0 0.0
    %725 = vmatpush2.msra.mxu0 0.0
    %726 = vmatprep.subr.mxu0 0.0
    %727 = vmatpush2.msra.mxu0 0.0
    %728 = vmatprep.subr.mxu0 0.0
    %729 = vmatpush2.msra.mxu0 0.0
    %730 = vmatprep.subr.mxu0 0.0
    %731 = vmatpush2.msra.mxu0 0.0
    %732 = vmatprep.subr.mxu0 0.0
    %733 = vmatpush2.msra.mxu0 0.0
    %734 = vmatprep.subr.mxu0 0.0
    %735 = vmatpush2.msra.mxu0 0.0
    %736 = vmatprep.subr.mxu0 0.0
    %737 = vmatpush2.msra.mxu0 0.0
    %738 = vmatprep.subr.mxu0 0.0
    %739 = vmatpush2.msra.mxu0 0.0
    %740 = vmatprep.subr.mxu0 0.0
    %741 = vmatpush2.msra.mxu0 0.0
    %742 = vmatprep.subr.mxu0 0.0
    %743 = vmatpush2.msra.mxu0 0.0
    %744 = vmatprep.subr.mxu0 0.0
    %745 = vmatpush2.msra.mxu0 0.0
    %746 = vmatprep.mubr.f32.mxu0 0.0
    %747 = vmatmul.mubr.f32.gmra.mxu0 %v680
    %v748 = vpop.f32.mrf.mxu0
    %v749 = vadd.f32 0.0, %v748
    %v750 = vpop.f32.mrf.mxu0
    %751 = vdwg.mxu0
    %v752 = vadd.f32 %v375, %v749
    %v753 = vmul.f32 %v752, 0.5
    %v754 = vtanh.pop %v753
    %v755 = vadd.f32 %v754, 1.0
    %v756 = vmul.f32 %v755, 0.5
    %v757 = vtanh.pop %v752
    %v758 = vmul.f32 %v756, 0.0
    %760 = vrot.lane.b32.xlu0 %v757, 64
    %v761 = vpop.permute.xlu0 %760
    %v763 = vmul.f32 %v756, %v761
    %765 = vrot.lane.b32.xlu0 %v763, 32
    %v766 = vpop.permute.xlu0 %765
    %v768 = vadd.f32 %v758, %v766
    %v769 = vtanh.pop %v768
    %771 = vrot.lane.b32.xlu0 %v769, 64
    %v772 = vpop.permute.xlu0 %771
    %v774 = vmul.f32 %v756, %v772
    %v775 = vld [vmem:[%s4] sm:$0xff]
    %v776 = vld [vmem:[%s4 + $0x8] sm:$0xff]
    %v777 = vld [vmem:[%s4 + $0x10] sm:$0xff]
    %v778 = vld [vmem:[%s4 + $0x18] sm:$0xff]
    %v779 = vld [vmem:[#allocation6] sm:$0xff]
    %v780 = vld [vmem:[#allocation6 + $0x8] sm:$0xff]
    %v781 = vld [vmem:[#allocation6 + $0x10] sm:$0xff]
    %v782 = vld [vmem:[#allocation6 + $0x18] sm:$0xff]
    %783 = vmatprep.subr.mxu0 0.0
    %784 = vmatpush1.msra.mxu0 0.0
    %785 = vmatprep.subr.mxu0 0.0
    %786 = vmatpush1.msra.mxu0 0.0
    %787 = vmatprep.subr.mxu0 0.0
    %788 = vmatpush1.msra.mxu0 0.0
    %789 = vmatprep.subr.mxu0 0.0
    %790 = vmatpush1.msra.mxu0 0.0
    %791 = vmatprep.subr.mxu0 0.0
    %792 = vmatpush1.msra.mxu0 0.0
    %793 = vmatprep.subr.mxu0 0.0
    %794 = vmatpush1.msra.mxu0 0.0
    %795 = vmatprep.subr.mxu0 0.0
    %796 = vmatpush1.msra.mxu0 0.0
    %797 = vmatprep.subr.mxu0 0.0
    %798 = vmatpush1.msra.mxu0 0.0
    %799 = vmatprep.subr.mxu0 0.0
    %800 = vmatpush1.msra.mxu0 0.0
    %801 = vmatprep.subr.mxu0 0.0
    %802 = vmatpush1.msra.mxu0 0.0
    %803 = vmatprep.subr.mxu0 0.0
    %804 = vmatpush1.msra.mxu0 0.0
    %805 = vmatprep.subr.mxu0 0.0
    %806 = vmatpush1.msra.mxu0 0.0
    %807 = vmatprep.subr.mxu0 0.0
    %808 = vmatpush1.msra.mxu0 %v782
    %809 = vmatprep.subr.mxu0 0.0
    %810 = vmatpush1.msra.mxu0 %v781
    %811 = vmatprep.subr.mxu0 0.0
    %812 = vmatpush1.msra.mxu0 %v780
    %813 = vmatprep.subr.mxu0 0.0
    %814 = vmatpush1.msra.mxu0 %v779
    %815 = vmatprep.subr.mxu0 0.0
    %816 = vmatpush2.msra.mxu0 0.0
    %817 = vmatprep.subr.mxu0 0.0
    %818 = vmatpush2.msra.mxu0 0.0
    %819 = vmatprep.subr.mxu0 0.0
    %820 = vmatpush2.msra.mxu0 0.0
    %821 = vmatprep.subr.mxu0 0.0
    %822 = vmatpush2.msra.mxu0 0.0
    %823 = vmatprep.subr.mxu0 0.0
    %824 = vmatpush2.msra.mxu0 0.0
    %825 = vmatprep.subr.mxu0 0.0
    %826 = vmatpush2.msra.mxu0 0.0
    %827 = vmatprep.subr.mxu0 0.0
    %828 = vmatpush2.msra.mxu0 0.0
    %829 = vmatprep.subr.mxu0 0.0
    %830 = vmatpush2.msra.mxu0 0.0
    %831 = vmatprep.subr.mxu0 0.0
    %832 = vmatpush2.msra.mxu0 0.0
    %833 = vmatprep.subr.mxu0 0.0
    %834 = vmatpush2.msra.mxu0 0.0
    %835 = vmatprep.subr.mxu0 0.0
    %836 = vmatpush2.msra.mxu0 0.0
    %837 = vmatprep.subr.mxu0 0.0
    %838 = vmatpush2.msra.mxu0 0.0
    %839 = vmatprep.subr.mxu0 0.0
    %840 = vmatpush2.msra.mxu0 0.0
    %841 = vmatprep.subr.mxu0 0.0
    %842 = vmatpush2.msra.mxu0 0.0
    %843 = vmatprep.subr.mxu0 0.0
    %844 = vmatpush2.msra.mxu0 0.0
    %845 = vmatprep.subr.mxu0 0.0
    %846 = vmatpush2.msra.mxu0 0.0
    %847 = vmatprep.mubr.f32.mxu0 0.0
    %848 = vmatmul.mubr.f32.gmra.mxu0 %v680
    %v849 = vpop.f32.mrf.mxu0
    %v850 = vadd.f32 0.0, %v849
    %v851 = vpop.f32.mrf.mxu0
    %852 = vdwg.mxu0
    %854 = vrot.lane.b32.xlu0 %v774, 32
    %v855 = vpop.permute.xlu0 %854
    %v856 = vsel %vm678, %v855, 0
    %858 = vmatprep.subr.mxu0 0.0
    %859 = vmatpush1.msra.mxu0 0.0
    %860 = vmatprep.subr.mxu0 0.0
    %861 = vmatpush1.msra.mxu0 0.0
    %862 = vmatprep.subr.mxu0 0.0
    %863 = vmatpush1.msra.mxu0 0.0
    %864 = vmatprep.subr.mxu0 0.0
    %865 = vmatpush1.msra.mxu0 0.0
    %866 = vmatprep.subr.mxu0 0.0
    %867 = vmatpush1.msra.mxu0 0.0
    %868 = vmatprep.subr.mxu0 0.0
    %869 = vmatpush1.msra.mxu0 0.0
    %870 = vmatprep.subr.mxu0 0.0
    %871 = vmatpush1.msra.mxu0 0.0
    %872 = vmatprep.subr.mxu0 0.0
    %873 = vmatpush1.msra.mxu0 0.0
    %874 = vmatprep.subr.mxu0 0.0
    %875 = vmatpush1.msra.mxu0 0.0
    %876 = vmatprep.subr.mxu0 0.0
    %877 = vmatpush1.msra.mxu0 0.0
    %878 = vmatprep.subr.mxu0 0.0
    %879 = vmatpush1.msra.mxu0 0.0
    %880 = vmatprep.subr.mxu0 0.0
    %881 = vmatpush1.msra.mxu0 0.0
    %882 = vmatprep.subr.mxu0 0.0
    %883 = vmatpush1.msra.mxu0 %v778
    %884 = vmatprep.subr.mxu0 0.0
    %885 = vmatpush1.msra.mxu0 %v777
    %886 = vmatprep.subr.mxu0 0.0
    %887 = vmatpush1.msra.mxu0 %v776
    %888 = vmatprep.subr.mxu0 0.0
    %889 = vmatpush1.msra.mxu0 %v775
    %890 = vmatprep.subr.mxu0 0.0
    %891 = vmatpush2.msra.mxu0 0.0
    %892 = vmatprep.subr.mxu0 0.0
    %893 = vmatpush2.msra.mxu0 0.0
    %894 = vmatprep.subr.mxu0 0.0
    %895 = vmatpush2.msra.mxu0 0.0
    %896 = vmatprep.subr.mxu0 0.0
    %897 = vmatpush2.msra.mxu0 0.0
    %898 = vmatprep.subr.mxu0 0.0
    %899 = vmatpush2.msra.mxu0 0.0
    %900 = vmatprep.subr.mxu0 0.0
    %901 = vmatpush2.msra.mxu0 0.0
    %902 = vmatprep.subr.mxu0 0.0
    %903 = vmatpush2.msra.mxu0 0.0
    %904 = vmatprep.subr.mxu0 0.0
    %905 = vmatpush2.msra.mxu0 0.0
    %906 = vmatprep.subr.mxu0 0.0
    %907 = vmatpush2.msra.mxu0 0.0
    %908 = vmatprep.subr.mxu0 0.0
    %909 = vmatpush2.msra.mxu0 0.0
    %910 = vmatprep.subr.mxu0 0.0
    %911 = vmatpush2.msra.mxu0 0.0
    %912 = vmatprep.subr.mxu0 0.0
    %913 = vmatpush2.msra.mxu0 0.0
    %914 = vmatprep.subr.mxu0 0.0
    %915 = vmatpush2.msra.mxu0 0.0
    %916 = vmatprep.subr.mxu0 0.0
    %917 = vmatpush2.msra.mxu0 0.0
    %918 = vmatprep.subr.mxu0 0.0
    %919 = vmatpush2.msra.mxu0 0.0
    %920 = vmatprep.subr.mxu0 0.0
    %921 = vmatpush2.msra.mxu0 0.0
    %922 = vmatprep.mubr.f32.mxu0 0.0
    %923 = vmatmul.mubr.f32.gmra.mxu0 %v856
    %v924 = vpop.f32.mrf.mxu0
    %v925 = vadd.f32 %v850, %v924
    %v926 = vpop.f32.mrf.mxu0
    %927 = vdwg.mxu0
    %v928 = vld [vmem:[#allocation7] sm:$0x1]
    %v930 = vlaneseq
    %v931 = vshrl.u32 %v930, 7
    %v932 = vsub.s32 0, %v931
    %v933 = vrot.slane %v928, %v932
    %v935 = vadd.f32 %v925, %v933
    %v936 = vmul.f32 %v935, 0.5
    %v937 = vtanh.pop %v936
    %v938 = vadd.f32 %v937, 1.0
    %v939 = vmul.f32 %v938, 0.5
    %v940 = vtanh.pop %v935
    %v941 = vmul.f32 %v939, 0.0
    %943 = vrot.lane.b32.xlu0 %v940, 64
    %v944 = vpop.permute.xlu0 %943
    %v946 = vmul.f32 %v939, %v944
    %948 = vrot.lane.b32.xlu0 %v946, 32
    %v949 = vpop.permute.xlu0 %948
    %v951 = vadd.f32 %v941, %v949
    %v952 = vtanh.pop %v951
    %954 = vrot.lane.b32.xlu0 %v952, 64
    %v955 = vpop.permute.xlu0 %954
    %v957 = vmul.f32 %v939, %v955
    %v958 = vld [vmem:[#allocation9] sm:$0xff]
    %v959 = vld [vmem:[#allocation9 + $0x8] sm:$0xff]
    %v960 = vld [vmem:[#allocation9 + $0x10] sm:$0xff]
    %v961 = vld [vmem:[#allocation9 + $0x18] sm:$0xff]
    %v962 = vld [vmem:[#allocation10] sm:$0xff]
    %v963 = vld [vmem:[#allocation10 + $0x8] sm:$0xff]
    %v964 = vld [vmem:[#allocation10 + $0x10] sm:$0xff]
    %v965 = vld [vmem:[#allocation10 + $0x18] sm:$0xff]
    %966 = vmatprep.subr.mxu0 0.0
    %967 = vmatpush1.msra.mxu0 0.0
    %968 = vmatprep.subr.mxu0 0.0
    %969 = vmatpush1.msra.mxu0 0.0
    %970 = vmatprep.subr.mxu0 0.0
    %971 = vmatpush1.msra.mxu0 0.0
    %972 = vmatprep.subr.mxu0 0.0
    %973 = vmatpush1.msra.mxu0 0.0
    %974 = vmatprep.subr.mxu0 0.0
    %975 = vmatpush1.msra.mxu0 0.0
    %976 = vmatprep.subr.mxu0 0.0
    %977 = vmatpush1.msra.mxu0 0.0
    %978 = vmatprep.subr.mxu0 0.0
    %979 = vmatpush1.msra.mxu0 0.0
    %980 = vmatprep.subr.mxu0 0.0
    %981 = vmatpush1.msra.mxu0 0.0
    %982 = vmatprep.subr.mxu0 0.0
    %983 = vmatpush1.msra.mxu0 0.0
    %984 = vmatprep.subr.mxu0 0.0
    %985 = vmatpush1.msra.mxu0 0.0
    %986 = vmatprep.subr.mxu0 0.0
    %987 = vmatpush1.msra.mxu0 0.0
    %988 = vmatprep.subr.mxu0 0.0
    %989 = vmatpush1.msra.mxu0 0.0
    %990 = vmatprep.subr.mxu0 0.0
    %991 = vmatpush1.msra.mxu0 %v965
    %992 = vmatprep.subr.mxu0 0.0
    %993 = vmatpush1.msra.mxu0 %v964
    %994 = vmatprep.subr.mxu0 0.0
    %995 = vmatpush1.msra.mxu0 %v963
    %996 = vmatprep.subr.mxu0 0.0
    %997 = vmatpush1.msra.mxu0 %v962
    %998 = vmatprep.subr.mxu0 0.0
    %999 = vmatpush2.msra.mxu0 0.0
    %1000 = vmatprep.subr.mxu0 0.0
    %1001 = vmatpush2.msra.mxu0 0.0
    %1002 = vmatprep.subr.mxu0 0.0
    %1003 = vmatpush2.msra.mxu0 0.0
    %1004 = vmatprep.subr.mxu0 0.0
    %1005 = vmatpush2.msra.mxu0 0.0
    %1006 = vmatprep.subr.mxu0 0.0
    %1007 = vmatpush2.msra.mxu0 0.0
    %1008 = vmatprep.subr.mxu0 0.0
    %1009 = vmatpush2.msra.mxu0 0.0
    %1010 = vmatprep.subr.mxu0 0.0
    %1011 = vmatpush2.msra.mxu0 0.0
    %1012 = vmatprep.subr.mxu0 0.0
    %1013 = vmatpush2.msra.mxu0 0.0
    %1014 = vmatprep.subr.mxu0 0.0
    %1015 = vmatpush2.msra.mxu0 0.0
    %1016 = vmatprep.subr.mxu0 0.0
    %1017 = vmatpush2.msra.mxu0 0.0
    %1018 = vmatprep.subr.mxu0 0.0
    %1019 = vmatpush2.msra.mxu0 0.0
    %1020 = vmatprep.subr.mxu0 0.0
    %1021 = vmatpush2.msra.mxu0 0.0
    %1022 = vmatprep.subr.mxu0 0.0
    %1023 = vmatpush2.msra.mxu0 0.0
    %1024 = vmatprep.subr.mxu0 0.0
    %1025 = vmatpush2.msra.mxu0 0.0
    %1026 = vmatprep.subr.mxu0 0.0
    %1027 = vmatpush2.msra.mxu0 0.0
    %1028 = vmatprep.subr.mxu0 0.0
    %1029 = vmatpush2.msra.mxu0 0.0
    %1030 = vmatprep.mubr.f32.mxu0 0.0
    %1031 = vmatmul.mubr.f32.gmra.mxu0 %v680
    %v1032 = vpop.f32.mrf.mxu0
    %v1033 = vadd.f32 0.0, %v1032
    %v1034 = vpop.f32.mrf.mxu0
    %1035 = vdwg.mxu0
    %1037 = vrot.lane.b32.xlu0 %v957, 32
    %v1038 = vpop.permute.xlu0 %1037
    %v1039 = vsel %vm678, %v1038, 0
    %1041 = vmatprep.subr.mxu0 0.0
    %1042 = vmatpush1.msra.mxu0 0.0
    %1043 = vmatprep.subr.mxu0 0.0
    %1044 = vmatpush1.msra.mxu0 0.0
    %1045 = vmatprep.subr.mxu0 0.0
    %1046 = vmatpush1.msra.mxu0 0.0
    %1047 = vmatprep.subr.mxu0 0.0
    %1048 = vmatpush1.msra.mxu0 0.0
    %1049 = vmatprep.subr.mxu0 0.0
    %1050 = vmatpush1.msra.mxu0 0.0
    %1051 = vmatprep.subr.mxu0 0.0
    %1052 = vmatpush1.msra.mxu0 0.0
    %1053 = vmatprep.subr.mxu0 0.0
    %1054 = vmatpush1.msra.mxu0 0.0
    %1055 = vmatprep.subr.mxu0 0.0
    %1056 = vmatpush1.msra.mxu0 0.0
    %1057 = vmatprep.subr.mxu0 0.0
    %1058 = vmatpush1.msra.mxu0 0.0
    %1059 = vmatprep.subr.mxu0 0.0
    %1060 = vmatpush1.msra.mxu0 0.0
    %1061 = vmatprep.subr.mxu0 0.0
    %1062 = vmatpush1.msra.mxu0 0.0
    %1063 = vmatprep.subr.mxu0 0.0
    %1064 = vmatpush1.msra.mxu0 0.0
    %1065 = vmatprep.subr.mxu0 0.0
    %1066 = vmatpush1.msra.mxu0 %v961
    %1067 = vmatprep.subr.mxu0 0.0
    %1068 = vmatpush1.msra.mxu0 %v960
    %1069 = vmatprep.subr.mxu0 0.0
    %1070 = vmatpush1.msra.mxu0 %v959
    %1071 = vmatprep.subr.mxu0 0.0
    %1072 = vmatpush1.msra.mxu0 %v958
    %1073 = vmatprep.subr.mxu0 0.0
    %1074 = vmatpush2.msra.mxu0 0.0
    %1075 = vmatprep.subr.mxu0 0.0
    %1076 = vmatpush2.msra.mxu0 0.0
    %1077 = vmatprep.subr.mxu0 0.0
    %1078 = vmatpush2.msra.mxu0 0.0
    %1079 = vmatprep.subr.mxu0 0.0
    %1080 = vmatpush2.msra.mxu0 0.0
    %1081 = vmatprep.subr.mxu0 0.0
    %1082 = vmatpush2.msra.mxu0 0.0
    %1083 = vmatprep.subr.mxu0 0.0
    %1084 = vmatpush2.msra.mxu0 0.0
    %1085 = vmatprep.subr.mxu0 0.0
    %1086 = vmatpush2.msra.mxu0 0.0
    %1087 = vmatprep.subr.mxu0 0.0
    %1088 = vmatpush2.msra.mxu0 0.0
    %1089 = vmatprep.subr.mxu0 0.0
    %1090 = vmatpush2.msra.mxu0 0.0
    %1091 = vmatprep.subr.mxu0 0.0
    %1092 = vmatpush2.msra.mxu0 0.0
    %1093 = vmatprep.subr.mxu0 0.0
    %1094 = vmatpush2.msra.mxu0 0.0
    %1095 = vmatprep.subr.mxu0 0.0
    %1096 = vmatpush2.msra.mxu0 0.0
    %1097 = vmatprep.subr.mxu0 0.0
    %1098 = vmatpush2.msra.mxu0 0.0
    %1099 = vmatprep.subr.mxu0 0.0
    %1100 = vmatpush2.msra.mxu0 0.0
    %1101 = vmatprep.subr.mxu0 0.0
    %1102 = vmatpush2.msra.mxu0 0.0
    %1103 = vmatprep.subr.mxu0 0.0
    %1104 = vmatpush2.msra.mxu0 0.0
    %1105 = vmatprep.mubr.f32.mxu0 0.0
    %1106 = vmatmul.mubr.f32.gmra.mxu0 %v1039
    %v1107 = vpop.f32.mrf.mxu0
    %v1108 = vadd.f32 %v1033, %v1107
    %v1109 = vpop.f32.mrf.mxu0
    %1110 = vdwg.mxu0
    %v1111 = vld [vmem:[%s9] sm:$0x1]
    %v1113 = vlaneseq
    %v1114 = vshrl.u32 %v1113, 7
    %v1115 = vsub.s32 0, %v1114
    %v1116 = vrot.slane %v1111, %v1115
    %v1118 = vadd.f32 %v1108, %v1116
    %v1119 = vmul.f32 %v1118, 0.5
    %v1120 = vtanh.pop %v1119
    %v1121 = vadd.f32 %v1120, 1.0
    %v1122 = vmul.f32 %v1121, 0.5
    %v1123 = vtanh.pop %v1118
    %v1124 = vmul.f32 %v1122, 0.0
    %1126 = vrot.lane.b32.xlu0 %v1123, 64
    %v1127 = vpop.permute.xlu0 %1126
    %v1129 = vmul.f32 %v1122, %v1127
    %1131 = vrot.lane.b32.xlu0 %v1129, 32
    %v1132 = vpop.permute.xlu0 %1131
    %v1134 = vadd.f32 %v1124, %v1132
    %v1135 = vtanh.pop %v1134
    %1137 = vrot.lane.b32.xlu0 %v1135, 64
    %v1138 = vpop.permute.xlu0 %1137
    %v1140 = vmul.f32 %v1122, %v1138
    %1141 = vmatprep.subr.mxu0 0.0
    %1142 = vmatpush1.msra.mxu0 0.0
    %1143 = vmatprep.subr.mxu0 0.0
    %1144 = vmatpush1.msra.mxu0 0.0
    %1145 = vmatprep.subr.mxu0 0.0
    %1146 = vmatpush1.msra.mxu0 0.0
    %1147 = vmatprep.subr.mxu0 0.0
    %1148 = vmatpush1.msra.mxu0 0.0
    %1149 = vmatprep.subr.mxu0 0.0
    %1150 = vmatpush1.msra.mxu0 0.0
    %1151 = vmatprep.subr.mxu0 0.0
    %1152 = vmatpush1.msra.mxu0 0.0
    %1153 = vmatprep.subr.mxu0 0.0
    %1154 = vmatpush1.msra.mxu0 0.0
    %1155 = vmatprep.subr.mxu0 0.0
    %1156 = vmatpush1.msra.mxu0 0.0
    %1157 = vmatprep.subr.mxu0 0.0
    %1158 = vmatpush1.msra.mxu0 0.0
    %1159 = vmatprep.subr.mxu0 0.0
    %1160 = vmatpush1.msra.mxu0 0.0
    %1161 = vmatprep.subr.mxu0 0.0
    %1162 = vmatpush1.msra.mxu0 0.0
    %1163 = vmatprep.subr.mxu0 0.0
    %1164 = vmatpush1.msra.mxu0 0.0
    %1165 = vmatprep.subr.mxu0 0.0
    %1166 = vmatpush1.msra.mxu0 %v677
    %1167 = vmatprep.subr.mxu0 0.0
    %1168 = vmatpush1.msra.mxu0 %v676
    %1169 = vmatprep.subr.mxu0 0.0
    %1170 = vmatpush1.msra.mxu0 %v675
    %1171 = vmatprep.subr.mxu0 0.0
    %1172 = vmatpush1.msra.mxu0 %v674
    %1173 = vmatprep.subr.mxu0 0.0
    %1174 = vmatpush2.msra.mxu0 0.0
    %1175 = vmatprep.subr.mxu0 0.0
    %1176 = vmatpush2.msra.mxu0 0.0
    %1177 = vmatprep.subr.mxu0 0.0
    %1178 = vmatpush2.msra.mxu0 0.0
    %1179 = vmatprep.subr.mxu0 0.0
    %1180 = vmatpush2.msra.mxu0 0.0
    %1181 = vmatprep.subr.mxu0 0.0
    %1182 = vmatpush2.msra.mxu0 0.0
    %1183 = vmatprep.subr.mxu0 0.0
    %1184 = vmatpush2.msra.mxu0 0.0
    %1185 = vmatprep.subr.mxu0 0.0
    %1186 = vmatpush2.msra.mxu0 0.0
    %1187 = vmatprep.subr.mxu0 0.0
    %1188 = vmatpush2.msra.mxu0 0.0
    %1189 = vmatprep.subr.mxu0 0.0
    %1190 = vmatpush2.msra.mxu0 0.0
    %1191 = vmatprep.subr.mxu0 0.0
    %1192 = vmatpush2.msra.mxu0 0.0
    %1193 = vmatprep.subr.mxu0 0.0
    %1194 = vmatpush2.msra.mxu0 0.0
    %1195 = vmatprep.subr.mxu0 0.0
    %1196 = vmatpush2.msra.mxu0 0.0
    %1197 = vmatprep.subr.mxu0 0.0
    %1198 = vmatpush2.msra.mxu0 0.0
    %1199 = vmatprep.subr.mxu0 0.0
    %1200 = vmatpush2.msra.mxu0 0.0
    %1201 = vmatprep.subr.mxu0 0.0
    %1202 = vmatpush2.msra.mxu0 0.0
    %1203 = vmatprep.subr.mxu0 0.0
    %1204 = vmatpush2.msra.mxu0 0.0
    %1205 = vmatprep.mubr.f32.mxu0 0.0
    %1206 = vmatmul.mubr.f32.gmra.mxu0 %v856
    %v1207 = vpop.f32.mrf.mxu0
    %v1208 = vadd.f32 0.0, %v1207
    %v1209 = vpop.f32.mrf.mxu0
    %1210 = vdwg.mxu0
    %v1211 = vadd.f32 %v449, %v1208
    %v1212 = vmul.f32 %v1211, 0.5
    %v1213 = vtanh.pop %v1212
    %v1214 = vadd.f32 %v1213, 1.0
    %v1215 = vmul.f32 %v1214, 0.5
    %v1216 = vtanh.pop %v1211
    %v1217 = vmul.f32 %v1215, %v768
    %1219 = vrot.lane.b32.xlu0 %v1216, 64
    %v1220 = vpop.permute.xlu0 %1219
    %v1222 = vmul.f32 %v1215, %v1220
    %1224 = vrot.lane.b32.xlu0 %v1222, 32
    %v1225 = vpop.permute.xlu0 %1224
    %v1227 = vadd.f32 %v1217, %v1225
    %v1228 = vtanh.pop %v1227
    %1230 = vrot.lane.b32.xlu0 %v1228, 64
    %v1231 = vpop.permute.xlu0 %1230
    %v1233 = vmul.f32 %v1215, %v1231
    %1234 = vmatprep.subr.mxu0 0.0
    %1235 = vmatpush1.msra.mxu0 0.0
    %1236 = vmatprep.subr.mxu0 0.0
    %1237 = vmatpush1.msra.mxu0 0.0
    %1238 = vmatprep.subr.mxu0 0.0
    %1239 = vmatpush1.msra.mxu0 0.0
    %1240 = vmatprep.subr.mxu0 0.0
    %1241 = vmatpush1.msra.mxu0 0.0
    %1242 = vmatprep.subr.mxu0 0.0
    %1243 = vmatpush1.msra.mxu0 0.0
    %1244 = vmatprep.subr.mxu0 0.0
    %1245 = vmatpush1.msra.mxu0 0.0
    %1246 = vmatprep.subr.mxu0 0.0
    %1247 = vmatpush1.msra.mxu0 0.0
    %1248 = vmatprep.subr.mxu0 0.0
    %1249 = vmatpush1.msra.mxu0 0.0
    %1250 = vmatprep.subr.mxu0 0.0
    %1251 = vmatpush1.msra.mxu0 0.0
    %1252 = vmatprep.subr.mxu0 0.0
    %1253 = vmatpush1.msra.mxu0 0.0
    %1254 = vmatprep.subr.mxu0 0.0
    %1255 = vmatpush1.msra.mxu0 0.0
    %1256 = vmatprep.subr.mxu0 0.0
    %1257 = vmatpush1.msra.mxu0 0.0
    %1258 = vmatprep.subr.mxu0 0.0
    %1259 = vmatpush1.msra.mxu0 %v782
    %1260 = vmatprep.subr.mxu0 0.0
    %1261 = vmatpush1.msra.mxu0 %v781
    %1262 = vmatprep.subr.mxu0 0.0
    %1263 = vmatpush1.msra.mxu0 %v780
    %1264 = vmatprep.subr.mxu0 0.0
    %1265 = vmatpush1.msra.mxu0 %v779
    %1266 = vmatprep.subr.mxu0 0.0
    %1267 = vmatpush2.msra.mxu0 0.0
    %1268 = vmatprep.subr.mxu0 0.0
    %1269 = vmatpush2.msra.mxu0 0.0
    %1270 = vmatprep.subr.mxu0 0.0
    %1271 = vmatpush2.msra.mxu0 0.0
    %1272 = vmatprep.subr.mxu0 0.0
    %1273 = vmatpush2.msra.mxu0 0.0
    %1274 = vmatprep.subr.mxu0 0.0
    %1275 = vmatpush2.msra.mxu0 0.0
    %1276 = vmatprep.subr.mxu0 0.0
    %1277 = vmatpush2.msra.mxu0 0.0
    %1278 = vmatprep.subr.mxu0 0.0
    %1279 = vmatpush2.msra.mxu0 0.0
    %1280 = vmatprep.subr.mxu0 0.0
    %1281 = vmatpush2.msra.mxu0 0.0
    %1282 = vmatprep.subr.mxu0 0.0
    %1283 = vmatpush2.msra.mxu0 0.0
    %1284 = vmatprep.subr.mxu0 0.0
    %1285 = vmatpush2.msra.mxu0 0.0
    %1286 = vmatprep.subr.mxu0 0.0
    %1287 = vmatpush2.msra.mxu0 0.0
    %1288 = vmatprep.subr.mxu0 0.0
    %1289 = vmatpush2.msra.mxu0 0.0
    %1290 = vmatprep.subr.mxu0 0.0
    %1291 = vmatpush2.msra.mxu0 0.0
    %1292 = vmatprep.subr.mxu0 0.0
    %1293 = vmatpush2.msra.mxu0 0.0
    %1294 = vmatprep.subr.mxu0 0.0
    %1295 = vmatpush2.msra.mxu0 0.0
    %1296 = vmatprep.subr.mxu0 0.0
    %1297 = vmatpush2.msra.mxu0 0.0
    %1298 = vmatprep.mubr.f32.mxu0 0.0
    %1299 = vmatmul.mubr.f32.gmra.mxu0 %v1039
    %v1300 = vpop.f32.mrf.mxu0
    %v1301 = vadd.f32 0.0, %v1300
    %v1302 = vpop.f32.mrf.mxu0
    %1303 = vdwg.mxu0
    %1305 = vrot.lane.b32.xlu0 %v1233, 32
    %v1306 = vpop.permute.xlu0 %1305
    %v1307 = vsel %vm678, %v1306, 0
    %1309 = vmatprep.subr.mxu0 0.0
    %1310 = vmatpush1.msra.mxu0 0.0
    %1311 = vmatprep.subr.mxu0 0.0
    %1312 = vmatpush1.msra.mxu0 0.0
    %1313 = vmatprep.subr.mxu0 0.0
    %1314 = vmatpush1.msra.mxu0 0.0
    %1315 = vmatprep.subr.mxu0 0.0
    %1316 = vmatpush1.msra.mxu0 0.0
    %1317 = vmatprep.subr.mxu0 0.0
    %1318 = vmatpush1.msra.mxu0 0.0
    %1319 = vmatprep.subr.mxu0 0.0
    %1320 = vmatpush1.msra.mxu0 0.0
    %1321 = vmatprep.subr.mxu0 0.0
    %1322 = vmatpush1.msra.mxu0 0.0
    %1323 = vmatprep.subr.mxu0 0.0
    %1324 = vmatpush1.msra.mxu0 0.0
    %1325 = vmatprep.subr.mxu0 0.0
    %1326 = vmatpush1.msra.mxu0 0.0
    %1327 = vmatprep.subr.mxu0 0.0
    %1328 = vmatpush1.msra.mxu0 0.0
    %1329 = vmatprep.subr.mxu0 0.0
    %1330 = vmatpush1.msra.mxu0 0.0
    %1331 = vmatprep.subr.mxu0 0.0
    %1332 = vmatpush1.msra.mxu0 0.0
    %1333 = vmatprep.subr.mxu0 0.0
    %1334 = vmatpush1.msra.mxu0 %v778
    %1335 = vmatprep.subr.mxu0 0.0
    %1336 = vmatpush1.msra.mxu0 %v777
    %1337 = vmatprep.subr.mxu0 0.0
    %1338 = vmatpush1.msra.mxu0 %v776
    %1339 = vmatprep.subr.mxu0 0.0
    %1340 = vmatpush1.msra.mxu0 %v775
    %1341 = vmatprep.subr.mxu0 0.0
    %1342 = vmatpush2.msra.mxu0 0.0
    %1343 = vmatprep.subr.mxu0 0.0
    %1344 = vmatpush2.msra.mxu0 0.0
    %1345 = vmatprep.subr.mxu0 0.0
    %1346 = vmatpush2.msra.mxu0 0.0
    %1347 = vmatprep.subr.mxu0 0.0
    %1348 = vmatpush2.msra.mxu0 0.0
    %1349 = vmatprep.subr.mxu0 0.0
    %1350 = vmatpush2.msra.mxu0 0.0
    %1351 = vmatprep.subr.mxu0 0.0
    %1352 = vmatpush2.msra.mxu0 0.0
    %1353 = vmatprep.subr.mxu0 0.0
    %1354 = vmatpush2.msra.mxu0 0.0
    %1355 = vmatprep.subr.mxu0 0.0
    %1356 = vmatpush2.msra.mxu0 0.0
    %1357 = vmatprep.subr.mxu0 0.0
    %1358 = vmatpush2.msra.mxu0 0.0
    %1359 = vmatprep.subr.mxu0 0.0
    %1360 = vmatpush2.msra.mxu0 0.0
    %1361 = vmatprep.subr.mxu0 0.0
    %1362 = vmatpush2.msra.mxu0 0.0
    %1363 = vmatprep.subr.mxu0 0.0
    %1364 = vmatpush2.msra.mxu0 0.0
    %1365 = vmatprep.subr.mxu0 0.0
    %1366 = vmatpush2.msra.mxu0 0.0
    %1367 = vmatprep.subr.mxu0 0.0
    %1368 = vmatpush2.msra.mxu0 0.0
    %1369 = vmatprep.subr.mxu0 0.0
    %1370 = vmatpush2.msra.mxu0 0.0
    %1371 = vmatprep.subr.mxu0 0.0
    %1372 = vmatpush2.msra.mxu0 0.0
    %1373 = vmatprep.mubr.f32.mxu0 0.0
    %1374 = vmatmul.mubr.f32.gmra.mxu0 %v1307
    %v1375 = vpop.f32.mrf.mxu0
    %v1376 = vadd.f32 %v1301, %v1375
    %v1377 = vpop.f32.mrf.mxu0
    %1378 = vdwg.mxu0
    %v1379 = vadd.f32 %v1376, %v933
    %v1380 = vmul.f32 %v1379, 0.5
    %v1381 = vtanh.pop %v1380
    %v1382 = vadd.f32 %v1381, 1.0
    %v1383 = vmul.f32 %v1382, 0.5
    %v1384 = vtanh.pop %v1379
    %v1385 = vmul.f32 %v1383, %v951
    %1387 = vrot.lane.b32.xlu0 %v1384, 64
    %v1388 = vpop.permute.xlu0 %1387
    %v1390 = vmul.f32 %v1383, %v1388
    %1392 = vrot.lane.b32.xlu0 %v1390, 32
    %v1393 = vpop.permute.xlu0 %1392
    %v1395 = vadd.f32 %v1385, %v1393
    %v1396 = vtanh.pop %v1395
    %1398 = vrot.lane.b32.xlu0 %v1396, 64
    %v1399 = vpop.permute.xlu0 %1398
    %v1401 = vmul.f32 %v1383, %v1399
    %1403 = vrot.lane.b32.xlu0 %v1140, 32
    %v1404 = vpop.permute.xlu0 %1403
    %v1405 = vsel %vm678, %v1404, 0
    %1407 = vmatprep.subr.mxu0 0.0
    %1408 = vmatpush1.msra.mxu0 0.0
    %1409 = vmatprep.subr.mxu0 0.0
    %1410 = vmatpush1.msra.mxu0 0.0
    %1411 = vmatprep.subr.mxu0 0.0
    %1412 = vmatpush1.msra.mxu0 0.0
    %1413 = vmatprep.subr.mxu0 0.0
    %1414 = vmatpush1.msra.mxu0 0.0
    %1415 = vmatprep.subr.mxu0 0.0
    %1416 = vmatpush1.msra.mxu0 0.0
    %1417 = vmatprep.subr.mxu0 0.0
    %1418 = vmatpush1.msra.mxu0 0.0
    %1419 = vmatprep.subr.mxu0 0.0
    %1420 = vmatpush1.msra.mxu0 0.0
    %1421 = vmatprep.subr.mxu0 0.0
    %1422 = vmatpush1.msra.mxu0 0.0
    %1423 = vmatprep.subr.mxu0 0.0
    %1424 = vmatpush1.msra.mxu0 0.0
    %1425 = vmatprep.subr.mxu0 0.0
    %1426 = vmatpush1.msra.mxu0 0.0
    %1427 = vmatprep.subr.mxu0 0.0
    %1428 = vmatpush1.msra.mxu0 0.0
    %1429 = vmatprep.subr.mxu0 0.0
    %1430 = vmatpush1.msra.mxu0 0.0
    %1431 = vmatprep.subr.mxu0 0.0
    %1432 = vmatpush1.msra.mxu0 %v965
    %1433 = vmatprep.subr.mxu0 0.0
    %1434 = vmatpush1.msra.mxu0 %v964
    %1435 = vmatprep.subr.mxu0 0.0
    %1436 = vmatpush1.msra.mxu0 %v963
    %1437 = vmatprep.subr.mxu0 0.0
    %1438 = vmatpush1.msra.mxu0 %v962
    %1439 = vmatprep.subr.mxu0 0.0
    %1440 = vmatpush2.msra.mxu0 0.0
    %1441 = vmatprep.subr.mxu0 0.0
    %1442 = vmatpush2.msra.mxu0 0.0
    %1443 = vmatprep.subr.mxu0 0.0
    %1444 = vmatpush2.msra.mxu0 0.0
    %1445 = vmatprep.subr.mxu0 0.0
    %1446 = vmatpush2.msra.mxu0 0.0
    %1447 = vmatprep.subr.mxu0 0.0
    %1448 = vmatpush2.msra.mxu0 0.0
    %1449 = vmatprep.subr.mxu0 0.0
    %1450 = vmatpush2.msra.mxu0 0.0
    %1451 = vmatprep.subr.mxu0 0.0
    %1452 = vmatpush2.msra.mxu0 0.0
    %1453 = vmatprep.subr.mxu0 0.0
    %1454 = vmatpush2.msra.mxu0 0.0
    %1455 = vmatprep.subr.mxu0 0.0
    %1456 = vmatpush2.msra.mxu0 0.0
    %1457 = vmatprep.subr.mxu0 0.0
    %1458 = vmatpush2.msra.mxu0 0.0
    %1459 = vmatprep.subr.mxu0 0.0
    %1460 = vmatpush2.msra.mxu0 0.0
    %1461 = vmatprep.subr.mxu0 0.0
    %1462 = vmatpush2.msra.mxu0 0.0
    %1463 = vmatprep.subr.mxu0 0.0
    %1464 = vmatpush2.msra.mxu0 0.0
    %1465 = vmatprep.subr.mxu0 0.0
    %1466 = vmatpush2.msra.mxu0 0.0
    %1467 = vmatprep.subr.mxu0 0.0
    %1468 = vmatpush2.msra.mxu0 0.0
    %1469 = vmatprep.subr.mxu0 0.0
    %1470 = vmatpush2.msra.mxu0 0.0
    %1471 = vmatprep.mubr.f32.mxu0 0.0
    %1472 = vmatmul.mubr.f32.gmra.mxu0 %v1405
    %v1473 = vpop.f32.mrf.mxu0
    %v1474 = vadd.f32 0.0, %v1473
    %v1475 = vpop.f32.mrf.mxu0
    %1476 = vdwg.mxu0
    %1478 = vrot.lane.b32.xlu0 %v1401, 32
    %v1479 = vpop.permute.xlu0 %1478
    %v1480 = vsel %vm678, %v1479, 0
    %1482 = vmatprep.subr.mxu0 0.0
    %1483 = vmatpush1.msra.mxu0 0.0
    %1484 = vmatprep.subr.mxu0 0.0
    %1485 = vmatpush1.msra.mxu0 0.0
    %1486 = vmatprep.subr.mxu0 0.0
    %1487 = vmatpush1.msra.mxu0 0.0
    %1488 = vmatprep.subr.mxu0 0.0
    %1489 = vmatpush1.msra.mxu0 0.0
    %1490 = vmatprep.subr.mxu0 0.0
    %1491 = vmatpush1.msra.mxu0 0.0
    %1492 = vmatprep.subr.mxu0 0.0
    %1493 = vmatpush1.msra.mxu0 0.0
    %1494 = vmatprep.subr.mxu0 0.0
    %1495 = vmatpush1.msra.mxu0 0.0
    %1496 = vmatprep.subr.mxu0 0.0
    %1497 = vmatpush1.msra.mxu0 0.0
    %1498 = vmatprep.subr.mxu0 0.0
    %1499 = vmatpush1.msra.mxu0 0.0
    %1500 = vmatprep.subr.mxu0 0.0
    %1501 = vmatpush1.msra.mxu0 0.0
    %1502 = vmatprep.subr.mxu0 0.0
    %1503 = vmatpush1.msra.mxu0 0.0
    %1504 = vmatprep.subr.mxu0 0.0
    %1505 = vmatpush1.msra.mxu0 0.0
    %1506 = vmatprep.subr.mxu0 0.0
    %1507 = vmatpush1.msra.mxu0 %v961
    %1508 = vmatprep.subr.mxu0 0.0
    %1509 = vmatpush1.msra.mxu0 %v960
    %1510 = vmatprep.subr.mxu0 0.0
    %1511 = vmatpush1.msra.mxu0 %v959
    %1512 = vmatprep.subr.mxu0 0.0
    %1513 = vmatpush1.msra.mxu0 %v958
    %1514 = vmatprep.subr.mxu0 0.0
    %1515 = vmatpush2.msra.mxu0 0.0
    %1516 = vmatprep.subr.mxu0 0.0
    %1517 = vmatpush2.msra.mxu0 0.0
    %1518 = vmatprep.subr.mxu0 0.0
    %1519 = vmatpush2.msra.mxu0 0.0
    %1520 = vmatprep.subr.mxu0 0.0
    %1521 = vmatpush2.msra.mxu0 0.0
    %1522 = vmatprep.subr.mxu0 0.0
    %1523 = vmatpush2.msra.mxu0 0.0
    %1524 = vmatprep.subr.mxu0 0.0
    %1525 = vmatpush2.msra.mxu0 0.0
    %1526 = vmatprep.subr.mxu0 0.0
    %1527 = vmatpush2.msra.mxu0 0.0
    %1528 = vmatprep.subr.mxu0 0.0
    %1529 = vmatpush2.msra.mxu0 0.0
    %1530 = vmatprep.subr.mxu0 0.0
    %1531 = vmatpush2.msra.mxu0 0.0
    %1532 = vmatprep.subr.mxu0 0.0
    %1533 = vmatpush2.msra.mxu0 0.0
    %1534 = vmatprep.subr.mxu0 0.0
    %1535 = vmatpush2.msra.mxu0 0.0
    %1536 = vmatprep.subr.mxu0 0.0
    %1537 = vmatpush2.msra.mxu0 0.0
    %1538 = vmatprep.subr.mxu0 0.0
    %1539 = vmatpush2.msra.mxu0 0.0
    %1540 = vmatprep.subr.mxu0 0.0
    %1541 = vmatpush2.msra.mxu0 0.0
    %1542 = vmatprep.subr.mxu0 0.0
    %1543 = vmatpush2.msra.mxu0 0.0
    %1544 = vmatprep.subr.mxu0 0.0
    %1545 = vmatpush2.msra.mxu0 0.0
    %1546 = vmatprep.mubr.f32.mxu0 0.0
    %1547 = vmatmul.mubr.f32.gmra.mxu0 %v1480
    %v1548 = vpop.f32.mrf.mxu0
    %v1549 = vadd.f32 %v1474, %v1548
    %v1550 = vpop.f32.mrf.mxu0
    %1551 = vdwg.mxu0
    %v1552 = vadd.f32 %v1549, %v1116
    %v1553 = vmul.f32 %v1552, 0.5
    %v1554 = vtanh.pop %v1553
    %v1555 = vadd.f32 %v1554, 1.0
    %v1556 = vmul.f32 %v1555, 0.5
    %v1557 = vtanh.pop %v1552
    %v1558 = vmul.f32 %v1556, %v1134
    %1560 = vrot.lane.b32.xlu0 %v1557, 64
    %v1561 = vpop.permute.xlu0 %1560
    %v1563 = vmul.f32 %v1556, %v1561
    %1565 = vrot.lane.b32.xlu0 %v1563, 32
    %v1566 = vpop.permute.xlu0 %1565
    %v1568 = vadd.f32 %v1558, %v1566
    %v1569 = vtanh.pop %v1568
    %1571 = vrot.lane.b32.xlu0 %v1569, 64
    %v1572 = vpop.permute.xlu0 %1571
    %v1574 = vmul.f32 %v1556, %v1572
    %1575 = vmatprep.subr.mxu0 0.0
    %1576 = vmatpush1.msra.mxu0 0.0
    %1577 = vmatprep.subr.mxu0 0.0
    %1578 = vmatpush1.msra.mxu0 0.0
    %1579 = vmatprep.subr.mxu0 0.0
    %1580 = vmatpush1.msra.mxu0 0.0
    %1581 = vmatprep.subr.mxu0 0.0
    %1582 = vmatpush1.msra.mxu0 0.0
    %1583 = vmatprep.subr.mxu0 0.0
    %1584 = vmatpush1.msra.mxu0 0.0
    %1585 = vmatprep.subr.mxu0 0.0
    %1586 = vmatpush1.msra.mxu0 0.0
    %1587 = vmatprep.subr.mxu0 0.0
    %1588 = vmatpush1.msra.mxu0 0.0
    %1589 = vmatprep.subr.mxu0 0.0
    %1590 = vmatpush1.msra.mxu0 0.0
    %1591 = vmatprep.subr.mxu0 0.0
    %1592 = vmatpush1.msra.mxu0 0.0
    %1593 = vmatprep.subr.mxu0 0.0
    %1594 = vmatpush1.msra.mxu0 0.0
    %1595 = vmatprep.subr.mxu0 0.0
    %1596 = vmatpush1.msra.mxu0 0.0
    %1597 = vmatprep.subr.mxu0 0.0
    %1598 = vmatpush1.msra.mxu0 0.0
    %1599 = vmatprep.subr.mxu0 0.0
    %1600 = vmatpush1.msra.mxu0 %v677
    %1601 = vmatprep.subr.mxu0 0.0
    %1602 = vmatpush1.msra.mxu0 %v676
    %1603 = vmatprep.subr.mxu0 0.0
    %1604 = vmatpush1.msra.mxu0 %v675
    %1605 = vmatprep.subr.mxu0 0.0
    %1606 = vmatpush1.msra.mxu0 %v674
    %1607 = vmatprep.subr.mxu0 0.0
    %1608 = vmatpush2.msra.mxu0 0.0
    %1609 = vmatprep.subr.mxu0 0.0
    %1610 = vmatpush2.msra.mxu0 0.0
    %1611 = vmatprep.subr.mxu0 0.0
    %1612 = vmatpush2.msra.mxu0 0.0
    %1613 = vmatprep.subr.mxu0 0.0
    %1614 = vmatpush2.msra.mxu0 0.0
    %1615 = vmatprep.subr.mxu0 0.0
    %1616 = vmatpush2.msra.mxu0 0.0
    %1617 = vmatprep.subr.mxu0 0.0
    %1618 = vmatpush2.msra.mxu0 0.0
    %1619 = vmatprep.subr.mxu0 0.0
    %1620 = vmatpush2.msra.mxu0 0.0
    %1621 = vmatprep.subr.mxu0 0.0
    %1622 = vmatpush2.msra.mxu0 0.0
    %1623 = vmatprep.subr.mxu0 0.0
    %1624 = vmatpush2.msra.mxu0 0.0
    %1625 = vmatprep.subr.mxu0 0.0
    %1626 = vmatpush2.msra.mxu0 0.0
    %1627 = vmatprep.subr.mxu0 0.0
    %1628 = vmatpush2.msra.mxu0 0.0
    %1629 = vmatprep.subr.mxu0 0.0
    %1630 = vmatpush2.msra.mxu0 0.0
    %1631 = vmatprep.subr.mxu0 0.0
    %1632 = vmatpush2.msra.mxu0 0.0
    %1633 = vmatprep.subr.mxu0 0.0
    %1634 = vmatpush2.msra.mxu0 0.0
    %1635 = vmatprep.subr.mxu0 0.0
    %1636 = vmatpush2.msra.mxu0 0.0
    %1637 = vmatprep.subr.mxu0 0.0
    %1638 = vmatpush2.msra.mxu0 0.0
    %1639 = vmatprep.mubr.f32.mxu0 0.0
    %1640 = vmatmul.mubr.f32.gmra.mxu0 %v1307
    %v1641 = vpop.f32.mrf.mxu0
    %v1642 = vadd.f32 0.0, %v1641
    %v1643 = vpop.f32.mrf.mxu0
    %1644 = vdwg.mxu0
    %v1645 = vadd.f32 %v523, %v1642
    %v1646 = vmul.f32 %v1645, 0.5
    %v1647 = vtanh.pop %v1646
    %v1648 = vadd.f32 %v1647, 1.0
    %v1649 = vmul.f32 %v1648, 0.5
    %v1650 = vtanh.pop %v1645
    %v1651 = vmul.f32 %v1649, %v1227
    %1653 = vrot.lane.b32.xlu0 %v1650, 64
    %v1654 = vpop.permute.xlu0 %1653
    %v1656 = vmul.f32 %v1649, %v1654
    %1658 = vrot.lane.b32.xlu0 %v1656, 32
    %v1659 = vpop.permute.xlu0 %1658
    %v1661 = vadd.f32 %v1651, %v1659
    %v1662 = vtanh.pop %v1661
    %1664 = vrot.lane.b32.xlu0 %v1662, 64
    %v1665 = vpop.permute.xlu0 %1664
    %v1667 = vmul.f32 %v1649, %v1665
    %1668 = vmatprep.subr.mxu0 0.0
    %1669 = vmatpush1.msra.mxu0 0.0
    %1670 = vmatprep.subr.mxu0 0.0
    %1671 = vmatpush1.msra.mxu0 0.0
    %1672 = vmatprep.subr.mxu0 0.0
    %1673 = vmatpush1.msra.mxu0 0.0
    %1674 = vmatprep.subr.mxu0 0.0
    %1675 = vmatpush1.msra.mxu0 0.0
    %1676 = vmatprep.subr.mxu0 0.0
    %1677 = vmatpush1.msra.mxu0 0.0
    %1678 = vmatprep.subr.mxu0 0.0
    %1679 = vmatpush1.msra.mxu0 0.0
    %1680 = vmatprep.subr.mxu0 0.0
    %1681 = vmatpush1.msra.mxu0 0.0
    %1682 = vmatprep.subr.mxu0 0.0
    %1683 = vmatpush1.msra.mxu0 0.0
    %1684 = vmatprep.subr.mxu0 0.0
    %1685 = vmatpush1.msra.mxu0 0.0
    %1686 = vmatprep.subr.mxu0 0.0
    %1687 = vmatpush1.msra.mxu0 0.0
    %1688 = vmatprep.subr.mxu0 0.0
    %1689 = vmatpush1.msra.mxu0 0.0
    %1690 = vmatprep.subr.mxu0 0.0
    %1691 = vmatpush1.msra.mxu0 0.0
    %1692 = vmatprep.subr.mxu0 0.0
    %1693 = vmatpush1.msra.mxu0 %v782
    %1694 = vmatprep.subr.mxu0 0.0
    %1695 = vmatpush1.msra.mxu0 %v781
    %1696 = vmatprep.subr.mxu0 0.0
    %1697 = vmatpush1.msra.mxu0 %v780
    %1698 = vmatprep.subr.mxu0 0.0
    %1699 = vmatpush1.msra.mxu0 %v779
    %1700 = vmatprep.subr.mxu0 0.0
    %1701 = vmatpush2.msra.mxu0 0.0
    %1702 = vmatprep.subr.mxu0 0.0
    %1703 = vmatpush2.msra.mxu0 0.0
    %1704 = vmatprep.subr.mxu0 0.0
    %1705 = vmatpush2.msra.mxu0 0.0
    %1706 = vmatprep.subr.mxu0 0.0
    %1707 = vmatpush2.msra.mxu0 0.0
    %1708 = vmatprep.subr.mxu0 0.0
    %1709 = vmatpush2.msra.mxu0 0.0
    %1710 = vmatprep.subr.mxu0 0.0
    %1711 = vmatpush2.msra.mxu0 0.0
    %1712 = vmatprep.subr.mxu0 0.0
    %1713 = vmatpush2.msra.mxu0 0.0
    %1714 = vmatprep.subr.mxu0 0.0
    %1715 = vmatpush2.msra.mxu0 0.0
    %1716 = vmatprep.subr.mxu0 0.0
    %1717 = vmatpush2.msra.mxu0 0.0
    %1718 = vmatprep.subr.mxu0 0.0
    %1719 = vmatpush2.msra.mxu0 0.0
    %1720 = vmatprep.subr.mxu0 0.0
    %1721 = vmatpush2.msra.mxu0 0.0
    %1722 = vmatprep.subr.mxu0 0.0
    %1723 = vmatpush2.msra.mxu0 0.0
    %1724 = vmatprep.subr.mxu0 0.0
    %1725 = vmatpush2.msra.mxu0 0.0
    %1726 = vmatprep.subr.mxu0 0.0
    %1727 = vmatpush2.msra.mxu0 0.0
    %1728 = vmatprep.subr.mxu0 0.0
    %1729 = vmatpush2.msra.mxu0 0.0
    %1730 = vmatprep.subr.mxu0 0.0
    %1731 = vmatpush2.msra.mxu0 0.0
    %1732 = vmatprep.mubr.f32.mxu0 0.0
    %1733 = vmatmul.mubr.f32.gmra.mxu0 %v1480
    %v1734 = vpop.f32.mrf.mxu0
    %v1735 = vadd.f32 0.0, %v1734
    %v1736 = vpop.f32.mrf.mxu0
    %1737 = vdwg.mxu0
    %1739 = vrot.lane.b32.xlu0 %v1667, 32
    %v1740 = vpop.permute.xlu0 %1739
    %v1741 = vsel %vm678, %v1740, 0
    %1743 = vmatprep.subr.mxu0 0.0
    %1744 = vmatpush1.msra.mxu0 0.0
    %1745 = vmatprep.subr.mxu0 0.0
    %1746 = vmatpush1.msra.mxu0 0.0
    %1747 = vmatprep.subr.mxu0 0.0
    %1748 = vmatpush1.msra.mxu0 0.0
    %1749 = vmatprep.subr.mxu0 0.0
    %1750 = vmatpush1.msra.mxu0 0.0
    %1751 = vmatprep.subr.mxu0 0.0
    %1752 = vmatpush1.msra.mxu0 0.0
    %1753 = vmatprep.subr.mxu0 0.0
    %1754 = vmatpush1.msra.mxu0 0.0
    %1755 = vmatprep.subr.mxu0 0.0
    %1756 = vmatpush1.msra.mxu0 0.0
    %1757 = vmatprep.subr.mxu0 0.0
    %1758 = vmatpush1.msra.mxu0 0.0
    %1759 = vmatprep.subr.mxu0 0.0
    %1760 = vmatpush1.msra.mxu0 0.0
    %1761 = vmatprep.subr.mxu0 0.0
    %1762 = vmatpush1.msra.mxu0 0.0
    %1763 = vmatprep.subr.mxu0 0.0
    %1764 = vmatpush1.msra.mxu0 0.0
    %1765 = vmatprep.subr.mxu0 0.0
    %1766 = vmatpush1.msra.mxu0 0.0
    %1767 = vmatprep.subr.mxu0 0.0
    %1768 = vmatpush1.msra.mxu0 %v778
    %1769 = vmatprep.subr.mxu0 0.0
    %1770 = vmatpush1.msra.mxu0 %v777
    %1771 = vmatprep.subr.mxu0 0.0
    %1772 = vmatpush1.msra.mxu0 %v776
    %1773 = vmatprep.subr.mxu0 0.0
    %1774 = vmatpush1.msra.mxu0 %v775
    %1775 = vmatprep.subr.mxu0 0.0
    %1776 = vmatpush2.msra.mxu0 0.0
    %1777 = vmatprep.subr.mxu0 0.0
    %1778 = vmatpush2.msra.mxu0 0.0
    %1779 = vmatprep.subr.mxu0 0.0
    %1780 = vmatpush2.msra.mxu0 0.0
    %1781 = vmatprep.subr.mxu0 0.0
    %1782 = vmatpush2.msra.mxu0 0.0
    %1783 = vmatprep.subr.mxu0 0.0
    %1784 = vmatpush2.msra.mxu0 0.0
    %1785 = vmatprep.subr.mxu0 0.0
    %1786 = vmatpush2.msra.mxu0 0.0
    %1787 = vmatprep.subr.mxu0 0.0
    %1788 = vmatpush2.msra.mxu0 0.0
    %1789 = vmatprep.subr.mxu0 0.0
    %1790 = vmatpush2.msra.mxu0 0.0
    %1791 = vmatprep.subr.mxu0 0.0
    %1792 = vmatpush2.msra.mxu0 0.0
    %1793 = vmatprep.subr.mxu0 0.0
    %1794 = vmatpush2.msra.mxu0 0.0
    %1795 = vmatprep.subr.mxu0 0.0
    %1796 = vmatpush2.msra.mxu0 0.0
    %1797 = vmatprep.subr.mxu0 0.0
    %1798 = vmatpush2.msra.mxu0 0.0
    %1799 = vmatprep.subr.mxu0 0.0
    %1800 = vmatpush2.msra.mxu0 0.0
    %1801 = vmatprep.subr.mxu0 0.0
    %1802 = vmatpush2.msra.mxu0 0.0
    %1803 = vmatprep.subr.mxu0 0.0
    %1804 = vmatpush2.msra.mxu0 0.0
    %1805 = vmatprep.subr.mxu0 0.0
    %1806 = vmatpush2.msra.mxu0 0.0
    %1807 = vmatprep.mubr.f32.mxu0 0.0
    %1808 = vmatmul.mubr.f32.gmra.mxu0 %v1741
    %v1809 = vpop.f32.mrf.mxu0
    %v1810 = vadd.f32 %v1735, %v1809
    %v1811 = vpop.f32.mrf.mxu0
    %1812 = vdwg.mxu0
    %v1813 = vadd.f32 %v1810, %v933
    %v1814 = vmul.f32 %v1813, 0.5
    %v1815 = vtanh.pop %v1814
    %v1816 = vadd.f32 %v1815, 1.0
    %v1817 = vmul.f32 %v1816, 0.5
    %v1818 = vtanh.pop %v1813
    %v1819 = vmul.f32 %v1817, %v1395
    %1821 = vrot.lane.b32.xlu0 %v1818, 64
    %v1822 = vpop.permute.xlu0 %1821
    %v1824 = vmul.f32 %v1817, %v1822
    %1826 = vrot.lane.b32.xlu0 %v1824, 32
    %v1827 = vpop.permute.xlu0 %1826
    %v1829 = vadd.f32 %v1819, %v1827
    %v1830 = vtanh.pop %v1829
    %1832 = vrot.lane.b32.xlu0 %v1830, 64
    %v1833 = vpop.permute.xlu0 %1832
    %v1835 = vmul.f32 %v1817, %v1833
    %1837 = vrot.lane.b32.xlu0 %v1574, 32
    %v1838 = vpop.permute.xlu0 %1837
    %v1839 = vsel %vm678, %v1838, 0
    %1841 = vmatprep.subr.mxu0 0.0
    %1842 = vmatpush1.msra.mxu0 0.0
    %1843 = vmatprep.subr.mxu0 0.0
    %1844 = vmatpush1.msra.mxu0 0.0
    %1845 = vmatprep.subr.mxu0 0.0
    %1846 = vmatpush1.msra.mxu0 0.0
    %1847 = vmatprep.subr.mxu0 0.0
    %1848 = vmatpush1.msra.mxu0 0.0
    %1849 = vmatprep.subr.mxu0 0.0
    %1850 = vmatpush1.msra.mxu0 0.0
    %1851 = vmatprep.subr.mxu0 0.0
    %1852 = vmatpush1.msra.mxu0 0.0
    %1853 = vmatprep.subr.mxu0 0.0
    %1854 = vmatpush1.msra.mxu0 0.0
    %1855 = vmatprep.subr.mxu0 0.0
    %1856 = vmatpush1.msra.mxu0 0.0
    %1857 = vmatprep.subr.mxu0 0.0
    %1858 = vmatpush1.msra.mxu0 0.0
    %1859 = vmatprep.subr.mxu0 0.0
    %1860 = vmatpush1.msra.mxu0 0.0
    %1861 = vmatprep.subr.mxu0 0.0
    %1862 = vmatpush1.msra.mxu0 0.0
    %1863 = vmatprep.subr.mxu0 0.0
    %1864 = vmatpush1.msra.mxu0 0.0
    %1865 = vmatprep.subr.mxu0 0.0
    %1866 = vmatpush1.msra.mxu0 %v965
    %1867 = vmatprep.subr.mxu0 0.0
    %1868 = vmatpush1.msra.mxu0 %v964
    %1869 = vmatprep.subr.mxu0 0.0
    %1870 = vmatpush1.msra.mxu0 %v963
    %1871 = vmatprep.subr.mxu0 0.0
    %1872 = vmatpush1.msra.mxu0 %v962
    %1873 = vmatprep.subr.mxu0 0.0
    %1874 = vmatpush2.msra.mxu0 0.0
    %1875 = vmatprep.subr.mxu0 0.0
    %1876 = vmatpush2.msra.mxu0 0.0
    %1877 = vmatprep.subr.mxu0 0.0
    %1878 = vmatpush2.msra.mxu0 0.0
    %1879 = vmatprep.subr.mxu0 0.0
    %1880 = vmatpush2.msra.mxu0 0.0
    %1881 = vmatprep.subr.mxu0 0.0
    %1882 = vmatpush2.msra.mxu0 0.0
    %1883 = vmatprep.subr.mxu0 0.0
    %1884 = vmatpush2.msra.mxu0 0.0
    %1885 = vmatprep.subr.mxu0 0.0
    %1886 = vmatpush2.msra.mxu0 0.0
    %1887 = vmatprep.subr.mxu0 0.0
    %1888 = vmatpush2.msra.mxu0 0.0
    %1889 = vmatprep.subr.mxu0 0.0
    %1890 = vmatpush2.msra.mxu0 0.0
    %1891 = vmatprep.subr.mxu0 0.0
    %1892 = vmatpush2.msra.mxu0 0.0
    %1893 = vmatprep.subr.mxu0 0.0
    %1894 = vmatpush2.msra.mxu0 0.0
    %1895 = vmatprep.subr.mxu0 0.0
    %1896 = vmatpush2.msra.mxu0 0.0
    %1897 = vmatprep.subr.mxu0 0.0
    %1898 = vmatpush2.msra.mxu0 0.0
    %1899 = vmatprep.subr.mxu0 0.0
    %1900 = vmatpush2.msra.mxu0 0.0
    %1901 = vmatprep.subr.mxu0 0.0
    %1902 = vmatpush2.msra.mxu0 0.0
    %1903 = vmatprep.subr.mxu0 0.0
    %1904 = vmatpush2.msra.mxu0 0.0
    %1905 = vmatprep.mubr.f32.mxu0 0.0
    %1906 = vmatmul.mubr.f32.gmra.mxu0 %v1839
    %v1907 = vpop.f32.mrf.mxu0
    %v1908 = vadd.f32 0.0, %v1907
    %v1909 = vpop.f32.mrf.mxu0
    %1910 = vdwg.mxu0
    %1912 = vrot.lane.b32.xlu0 %v1835, 32
    %v1913 = vpop.permute.xlu0 %1912
    %v1914 = vsel %vm678, %v1913, 0
    %1916 = vmatprep.subr.mxu0 0.0
    %1917 = vmatpush1.msra.mxu0 0.0
    %1918 = vmatprep.subr.mxu0 0.0
    %1919 = vmatpush1.msra.mxu0 0.0
    %1920 = vmatprep.subr.mxu0 0.0
    %1921 = vmatpush1.msra.mxu0 0.0
    %1922 = vmatprep.subr.mxu0 0.0
    %1923 = vmatpush1.msra.mxu0 0.0
    %1924 = vmatprep.subr.mxu0 0.0
    %1925 = vmatpush1.msra.mxu0 0.0
    %1926 = vmatprep.subr.mxu0 0.0
    %1927 = vmatpush1.msra.mxu0 0.0
    %1928 = vmatprep.subr.mxu0 0.0
    %1929 = vmatpush1.msra.mxu0 0.0
    %1930 = vmatprep.subr.mxu0 0.0
    %1931 = vmatpush1.msra.mxu0 0.0
    %1932 = vmatprep.subr.mxu0 0.0
    %1933 = vmatpush1.msra.mxu0 0.0
    %1934 = vmatprep.subr.mxu0 0.0
    %1935 = vmatpush1.msra.mxu0 0.0
    %1936 = vmatprep.subr.mxu0 0.0
    %1937 = vmatpush1.msra.mxu0 0.0
    %1938 = vmatprep.subr.mxu0 0.0
    %1939 = vmatpush1.msra.mxu0 0.0
    %1940 = vmatprep.subr.mxu0 0.0
    %1941 = vmatpush1.msra.mxu0 %v961
    %1942 = vmatprep.subr.mxu0 0.0
    %1943 = vmatpush1.msra.mxu0 %v960
    %1944 = vmatprep.subr.mxu0 0.0
    %1945 = vmatpush1.msra.mxu0 %v959
    %1946 = vmatprep.subr.mxu0 0.0
    %1947 = vmatpush1.msra.mxu0 %v958
    %1948 = vmatprep.subr.mxu0 0.0
    %1949 = vmatpush2.msra.mxu0 0.0
    %1950 = vmatprep.subr.mxu0 0.0
    %1951 = vmatpush2.msra.mxu0 0.0
    %1952 = vmatprep.subr.mxu0 0.0
    %1953 = vmatpush2.msra.mxu0 0.0
    %1954 = vmatprep.subr.mxu0 0.0
    %1955 = vmatpush2.msra.mxu0 0.0
    %1956 = vmatprep.subr.mxu0 0.0
    %1957 = vmatpush2.msra.mxu0 0.0
    %1958 = vmatprep.subr.mxu0 0.0
    %1959 = vmatpush2.msra.mxu0 0.0
    %1960 = vmatprep.subr.mxu0 0.0
    %1961 = vmatpush2.msra.mxu0 0.0
    %1962 = vmatprep.subr.mxu0 0.0
    %1963 = vmatpush2.msra.mxu0 0.0
    %1964 = vmatprep.subr.mxu0 0.0
    %1965 = vmatpush2.msra.mxu0 0.0
    %1966 = vmatprep.subr.mxu0 0.0
    %1967 = vmatpush2.msra.mxu0 0.0
    %1968 = vmatprep.subr.mxu0 0.0
    %1969 = vmatpush2.msra.mxu0 0.0
    %1970 = vmatprep.subr.mxu0 0.0
    %1971 = vmatpush2.msra.mxu0 0.0
    %1972 = vmatprep.subr.mxu0 0.0
    %1973 = vmatpush2.msra.mxu0 0.0
    %1974 = vmatprep.subr.mxu0 0.0
    %1975 = vmatpush2.msra.mxu0 0.0
    %1976 = vmatprep.subr.mxu0 0.0
    %1977 = vmatpush2.msra.mxu0 0.0
    %1978 = vmatprep.subr.mxu0 0.0
    %1979 = vmatpush2.msra.mxu0 0.0
    %1980 = vmatprep.mubr.f32.mxu0 0.0
    %1981 = vmatmul.mubr.f32.gmra.mxu0 %v1914
    %v1982 = vpop.f32.mrf.mxu0
    %v1983 = vadd.f32 %v1908, %v1982
    %v1984 = vpop.f32.mrf.mxu0
    %1985 = vdwg.mxu0
    %v1986 = vadd.f32 %v1983, %v1116
    %v1987 = vmul.f32 %v1986, 0.5
    %v1988 = vtanh.pop %v1987
    %v1989 = vadd.f32 %v1988, 1.0
    %v1990 = vmul.f32 %v1989, 0.5
    %v1991 = vtanh.pop %v1986
    %v1992 = vmul.f32 %v1990, %v1568
    %1994 = vrot.lane.b32.xlu0 %v1991, 64
    %v1995 = vpop.permute.xlu0 %1994
    %v1997 = vmul.f32 %v1990, %v1995
    %1999 = vrot.lane.b32.xlu0 %v1997, 32
    %v2000 = vpop.permute.xlu0 %1999
    %v2002 = vadd.f32 %v1992, %v2000
    %v2003 = vtanh.pop %v2002
    %2005 = vrot.lane.b32.xlu0 %v2003, 64
    %v2006 = vpop.permute.xlu0 %2005
    %v2008 = vmul.f32 %v1990, %v2006
    %2009 = vmatprep.subr.mxu0 0.0
    %2010 = vmatpush1.msra.mxu0 0.0
    %2011 = vmatprep.subr.mxu0 0.0
    %2012 = vmatpush1.msra.mxu0 0.0
    %2013 = vmatprep.subr.mxu0 0.0
    %2014 = vmatpush1.msra.mxu0 0.0
    %2015 = vmatprep.subr.mxu0 0.0
    %2016 = vmatpush1.msra.mxu0 0.0
    %2017 = vmatprep.subr.mxu0 0.0
    %2018 = vmatpush1.msra.mxu0 0.0
    %2019 = vmatprep.subr.mxu0 0.0
    %2020 = vmatpush1.msra.mxu0 0.0
    %2021 = vmatprep.subr.mxu0 0.0
    %2022 = vmatpush1.msra.mxu0 0.0
    %2023 = vmatprep.subr.mxu0 0.0
    %2024 = vmatpush1.msra.mxu0 0.0
    %2025 = vmatprep.subr.mxu0 0.0
    %2026 = vmatpush1.msra.mxu0 0.0
    %2027 = vmatprep.subr.mxu0 0.0
    %2028 = vmatpush1.msra.mxu0 0.0
    %2029 = vmatprep.subr.mxu0 0.0
    %2030 = vmatpush1.msra.mxu0 0.0
    %2031 = vmatprep.subr.mxu0 0.0
    %2032 = vmatpush1.msra.mxu0 0.0
    %2033 = vmatprep.subr.mxu0 0.0
    %2034 = vmatpush1.msra.mxu0 %v677
    %2035 = vmatprep.subr.mxu0 0.0
    %2036 = vmatpush1.msra.mxu0 %v676
    %2037 = vmatprep.subr.mxu0 0.0
    %2038 = vmatpush1.msra.mxu0 %v675
    %2039 = vmatprep.subr.mxu0 0.0
    %2040 = vmatpush1.msra.mxu0 %v674
    %2041 = vmatprep.subr.mxu0 0.0
    %2042 = vmatpush2.msra.mxu0 0.0
    %2043 = vmatprep.subr.mxu0 0.0
    %2044 = vmatpush2.msra.mxu0 0.0
    %2045 = vmatprep.subr.mxu0 0.0
    %2046 = vmatpush2.msra.mxu0 0.0
    %2047 = vmatprep.subr.mxu0 0.0
    %2048 = vmatpush2.msra.mxu0 0.0
    %2049 = vmatprep.subr.mxu0 0.0
    %2050 = vmatpush2.msra.mxu0 0.0
    %2051 = vmatprep.subr.mxu0 0.0
    %2052 = vmatpush2.msra.mxu0 0.0
    %2053 = vmatprep.subr.mxu0 0.0
    %2054 = vmatpush2.msra.mxu0 0.0
    %2055 = vmatprep.subr.mxu0 0.0
    %2056 = vmatpush2.msra.mxu0 0.0
    %2057 = vmatprep.subr.mxu0 0.0
    %2058 = vmatpush2.msra.mxu0 0.0
    %2059 = vmatprep.subr.mxu0 0.0
    %2060 = vmatpush2.msra.mxu0 0.0
    %2061 = vmatprep.subr.mxu0 0.0
    %2062 = vmatpush2.msra.mxu0 0.0
    %2063 = vmatprep.subr.mxu0 0.0
    %2064 = vmatpush2.msra.mxu0 0.0
    %2065 = vmatprep.subr.mxu0 0.0
    %2066 = vmatpush2.msra.mxu0 0.0
    %2067 = vmatprep.subr.mxu0 0.0
    %2068 = vmatpush2.msra.mxu0 0.0
    %2069 = vmatprep.subr.mxu0 0.0
    %2070 = vmatpush2.msra.mxu0 0.0
    %2071 = vmatprep.subr.mxu0 0.0
    %2072 = vmatpush2.msra.mxu0 0.0
    %2073 = vmatprep.mubr.f32.mxu0 0.0
    %2074 = vmatmul.mubr.f32.gmra.mxu0 %v1741
    %v2075 = vpop.f32.mrf.mxu0
    %v2076 = vadd.f32 0.0, %v2075
    %v2077 = vpop.f32.mrf.mxu0
    %2078 = vdwg.mxu0
    %v2079 = vadd.f32 %v597, %v2076
    %v2080 = vmul.f32 %v2079, 0.5
    %v2081 = vtanh.pop %v2080
    %v2082 = vadd.f32 %v2081, 1.0
    %v2083 = vmul.f32 %v2082, 0.5
    %v2084 = vtanh.pop %v2079
    %v2085 = vmul.f32 %v2083, %v1661
    %2087 = vrot.lane.b32.xlu0 %v2084, 64
    %v2088 = vpop.permute.xlu0 %2087
    %v2090 = vmul.f32 %v2083, %v2088
    %2092 = vrot.lane.b32.xlu0 %v2090, 32
    %v2093 = vpop.permute.xlu0 %2092
    %v2095 = vadd.f32 %v2085, %v2093
    %v2096 = vtanh.pop %v2095
    %2098 = vrot.lane.b32.xlu0 %v2096, 64
    %v2099 = vpop.permute.xlu0 %2098
    %v2101 = vmul.f32 %v2083, %v2099
    %2102 = vmatprep.subr.mxu0 0.0
    %2103 = vmatpush1.msra.mxu0 0.0
    %2104 = vmatprep.subr.mxu0 0.0
    %2105 = vmatpush1.msra.mxu0 0.0
    %2106 = vmatprep.subr.mxu0 0.0
    %2107 = vmatpush1.msra.mxu0 0.0
    %2108 = vmatprep.subr.mxu0 0.0
    %2109 = vmatpush1.msra.mxu0 0.0
    %2110 = vmatprep.subr.mxu0 0.0
    %2111 = vmatpush1.msra.mxu0 0.0
    %2112 = vmatprep.subr.mxu0 0.0
    %2113 = vmatpush1.msra.mxu0 0.0
    %2114 = vmatprep.subr.mxu0 0.0
    %2115 = vmatpush1.msra.mxu0 0.0
    %2116 = vmatprep.subr.mxu0 0.0
    %2117 = vmatpush1.msra.mxu0 0.0
    %2118 = vmatprep.subr.mxu0 0.0
    %2119 = vmatpush1.msra.mxu0 0.0
    %2120 = vmatprep.subr.mxu0 0.0
    %2121 = vmatpush1.msra.mxu0 0.0
    %2122 = vmatprep.subr.mxu0 0.0
    %2123 = vmatpush1.msra.mxu0 0.0
    %2124 = vmatprep.subr.mxu0 0.0
    %2125 = vmatpush1.msra.mxu0 0.0
    %2126 = vmatprep.subr.mxu0 0.0
    %2127 = vmatpush1.msra.mxu0 %v782
    %2128 = vmatprep.subr.mxu0 0.0
    %2129 = vmatpush1.msra.mxu0 %v781
    %2130 = vmatprep.subr.mxu0 0.0
    %2131 = vmatpush1.msra.mxu0 %v780
    %2132 = vmatprep.subr.mxu0 0.0
    %2133 = vmatpush1.msra.mxu0 %v779
    %2134 = vmatprep.subr.mxu0 0.0
    %2135 = vmatpush2.msra.mxu0 0.0
    %2136 = vmatprep.subr.mxu0 0.0
    %2137 = vmatpush2.msra.mxu0 0.0
    %2138 = vmatprep.subr.mxu0 0.0
    %2139 = vmatpush2.msra.mxu0 0.0
    %2140 = vmatprep.subr.mxu0 0.0
    %2141 = vmatpush2.msra.mxu0 0.0
    %2142 = vmatprep.subr.mxu0 0.0
    %2143 = vmatpush2.msra.mxu0 0.0
    %2144 = vmatprep.subr.mxu0 0.0
    %2145 = vmatpush2.msra.mxu0 0.0
    %2146 = vmatprep.subr.mxu0 0.0
    %2147 = vmatpush2.msra.mxu0 0.0
    %2148 = vmatprep.subr.mxu0 0.0
    %2149 = vmatpush2.msra.mxu0 0.0
    %2150 = vmatprep.subr.mxu0 0.0
    %2151 = vmatpush2.msra.mxu0 0.0
    %2152 = vmatprep.subr.mxu0 0.0
    %2153 = vmatpush2.msra.mxu0 0.0
    %2154 = vmatprep.subr.mxu0 0.0
    %2155 = vmatpush2.msra.mxu0 0.0
    %2156 = vmatprep.subr.mxu0 0.0
    %2157 = vmatpush2.msra.mxu0 0.0
    %2158 = vmatprep.subr.mxu0 0.0
    %2159 = vmatpush2.msra.mxu0 0.0
    %2160 = vmatprep.subr.mxu0 0.0
    %2161 = vmatpush2.msra.mxu0 0.0
    %2162 = vmatprep.subr.mxu0 0.0
    %2163 = vmatpush2.msra.mxu0 0.0
    %2164 = vmatprep.subr.mxu0 0.0
    %2165 = vmatpush2.msra.mxu0 0.0
    %2166 = vmatprep.mubr.f32.mxu0 0.0
    %2167 = vmatmul.mubr.f32.gmra.mxu0 %v1914
    %v2168 = vpop.f32.mrf.mxu0
    %v2169 = vadd.f32 0.0, %v2168
    %v2170 = vpop.f32.mrf.mxu0
    %2171 = vdwg.mxu0
    %2173 = vrot.lane.b32.xlu0 %v2101, 32
    %v2174 = vpop.permute.xlu0 %2173
    %v2175 = vsel %vm678, %v2174, 0
    %2177 = vmatprep.subr.mxu0 0.0
    %2178 = vmatpush1.msra.mxu0 0.0
    %2179 = vmatprep.subr.mxu0 0.0
    %2180 = vmatpush1.msra.mxu0 0.0
    %2181 = vmatprep.subr.mxu0 0.0
    %2182 = vmatpush1.msra.mxu0 0.0
    %2183 = vmatprep.subr.mxu0 0.0
    %2184 = vmatpush1.msra.mxu0 0.0
    %2185 = vmatprep.subr.mxu0 0.0
    %2186 = vmatpush1.msra.mxu0 0.0
    %2187 = vmatprep.subr.mxu0 0.0
    %2188 = vmatpush1.msra.mxu0 0.0
    %2189 = vmatprep.subr.mxu0 0.0
    %2190 = vmatpush1.msra.mxu0 0.0
    %2191 = vmatprep.subr.mxu0 0.0
    %2192 = vmatpush1.msra.mxu0 0.0
    %2193 = vmatprep.subr.mxu0 0.0
    %2194 = vmatpush1.msra.mxu0 0.0
    %2195 = vmatprep.subr.mxu0 0.0
    %2196 = vmatpush1.msra.mxu0 0.0
    %2197 = vmatprep.subr.mxu0 0.0
    %2198 = vmatpush1.msra.mxu0 0.0
    %2199 = vmatprep.subr.mxu0 0.0
    %2200 = vmatpush1.msra.mxu0 0.0
    %2201 = vmatprep.subr.mxu0 0.0
    %2202 = vmatpush1.msra.mxu0 %v778
    %2203 = vmatprep.subr.mxu0 0.0
    %2204 = vmatpush1.msra.mxu0 %v777
    %2205 = vmatprep.subr.mxu0 0.0
    %2206 = vmatpush1.msra.mxu0 %v776
    %2207 = vmatprep.subr.mxu0 0.0
    %2208 = vmatpush1.msra.mxu0 %v775
    %2209 = vmatprep.subr.mxu0 0.0
    %2210 = vmatpush2.msra.mxu0 0.0
    %2211 = vmatprep.subr.mxu0 0.0
    %2212 = vmatpush2.msra.mxu0 0.0
    %2213 = vmatprep.subr.mxu0 0.0
    %2214 = vmatpush2.msra.mxu0 0.0
    %2215 = vmatprep.subr.mxu0 0.0
    %2216 = vmatpush2.msra.mxu0 0.0
    %2217 = vmatprep.subr.mxu0 0.0
    %2218 = vmatpush2.msra.mxu0 0.0
    %2219 = vmatprep.subr.mxu0 0.0
    %2220 = vmatpush2.msra.mxu0 0.0
    %2221 = vmatprep.subr.mxu0 0.0
    %2222 = vmatpush2.msra.mxu0 0.0
    %2223 = vmatprep.subr.mxu0 0.0
    %2224 = vmatpush2.msra.mxu0 0.0
    %2225 = vmatprep.subr.mxu0 0.0
    %2226 = vmatpush2.msra.mxu0 0.0
    %2227 = vmatprep.subr.mxu0 0.0
    %2228 = vmatpush2.msra.mxu0 0.0
    %2229 = vmatprep.subr.mxu0 0.0
    %2230 = vmatpush2.msra.mxu0 0.0
    %2231 = vmatprep.subr.mxu0 0.0
    %2232 = vmatpush2.msra.mxu0 0.0
    %2233 = vmatprep.subr.mxu0 0.0
    %2234 = vmatpush2.msra.mxu0 0.0
    %2235 = vmatprep.subr.mxu0 0.0
    %2236 = vmatpush2.msra.mxu0 0.0
    %2237 = vmatprep.subr.mxu0 0.0
    %2238 = vmatpush2.msra.mxu0 0.0
    %2239 = vmatprep.subr.mxu0 0.0
    %2240 = vmatpush2.msra.mxu0 0.0
    %2241 = vmatprep.mubr.f32.mxu0 0.0
    %2242 = vmatmul.mubr.f32.gmra.mxu0 %v2175
    %v2243 = vpop.f32.mrf.mxu0
    %v2244 = vadd.f32 %v2169, %v2243
    %v2245 = vpop.f32.mrf.mxu0
    %2246 = vdwg.mxu0
    %v2247 = vadd.f32 %v2244, %v933
    %v2248 = vmul.f32 %v2247, 0.5
    %v2249 = vtanh.pop %v2248
    %v2250 = vadd.f32 %v2249, 1.0
    %v2251 = vmul.f32 %v2250, 0.5
    %v2252 = vtanh.pop %v2247
    %v2253 = vmul.f32 %v2251, %v1829
    %2255 = vrot.lane.b32.xlu0 %v2252, 64
    %v2256 = vpop.permute.xlu0 %2255
    %v2258 = vmul.f32 %v2251, %v2256
    %2260 = vrot.lane.b32.xlu0 %v2258, 32
    %v2261 = vpop.permute.xlu0 %2260
    %v2263 = vadd.f32 %v2253, %v2261
    %v2264 = vtanh.pop %v2263
    %2266 = vrot.lane.b32.xlu0 %v2264, 64
    %v2267 = vpop.permute.xlu0 %2266
    %v2269 = vmul.f32 %v2251, %v2267
    %2271 = vrot.lane.b32.xlu0 %v2008, 32
    %v2272 = vpop.permute.xlu0 %2271
    %v2273 = vsel %vm678, %v2272, 0
    %2275 = vmatprep.subr.mxu0 0.0
    %2276 = vmatpush1.msra.mxu0 0.0
    %2277 = vmatprep.subr.mxu0 0.0
    %2278 = vmatpush1.msra.mxu0 0.0
    %2279 = vmatprep.subr.mxu0 0.0
    %2280 = vmatpush1.msra.mxu0 0.0
    %2281 = vmatprep.subr.mxu0 0.0
    %2282 = vmatpush1.msra.mxu0 0.0
    %2283 = vmatprep.subr.mxu0 0.0
    %2284 = vmatpush1.msra.mxu0 0.0
    %2285 = vmatprep.subr.mxu0 0.0
    %2286 = vmatpush1.msra.mxu0 0.0
    %2287 = vmatprep.subr.mxu0 0.0
    %2288 = vmatpush1.msra.mxu0 0.0
    %2289 = vmatprep.subr.mxu0 0.0
    %2290 = vmatpush1.msra.mxu0 0.0
    %2291 = vmatprep.subr.mxu0 0.0
    %2292 = vmatpush1.msra.mxu0 0.0
    %2293 = vmatprep.subr.mxu0 0.0
    %2294 = vmatpush1.msra.mxu0 0.0
    %2295 = vmatprep.subr.mxu0 0.0
    %2296 = vmatpush1.msra.mxu0 0.0
    %2297 = vmatprep.subr.mxu0 0.0
    %2298 = vmatpush1.msra.mxu0 0.0
    %2299 = vmatprep.subr.mxu0 0.0
    %2300 = vmatpush1.msra.mxu0 %v965
    %2301 = vmatprep.subr.mxu0 0.0
    %2302 = vmatpush1.msra.mxu0 %v964
    %2303 = vmatprep.subr.mxu0 0.0
    %2304 = vmatpush1.msra.mxu0 %v963
    %2305 = vmatprep.subr.mxu0 0.0
    %2306 = vmatpush1.msra.mxu0 %v962
    %2307 = vmatprep.subr.mxu0 0.0
    %2308 = vmatpush2.msra.mxu0 0.0
    %2309 = vmatprep.subr.mxu0 0.0
    %2310 = vmatpush2.msra.mxu0 0.0
    %2311 = vmatprep.subr.mxu0 0.0
    %2312 = vmatpush2.msra.mxu0 0.0
    %2313 = vmatprep.subr.mxu0 0.0
    %2314 = vmatpush2.msra.mxu0 0.0
    %2315 = vmatprep.subr.mxu0 0.0
    %2316 = vmatpush2.msra.mxu0 0.0
    %2317 = vmatprep.subr.mxu0 0.0
    %2318 = vmatpush2.msra.mxu0 0.0
    %2319 = vmatprep.subr.mxu0 0.0
    %2320 = vmatpush2.msra.mxu0 0.0
    %2321 = vmatprep.subr.mxu0 0.0
    %2322 = vmatpush2.msra.mxu0 0.0
    %2323 = vmatprep.subr.mxu0 0.0
    %2324 = vmatpush2.msra.mxu0 0.0
    %2325 = vmatprep.subr.mxu0 0.0
    %2326 = vmatpush2.msra.mxu0 0.0
    %2327 = vmatprep.subr.mxu0 0.0
    %2328 = vmatpush2.msra.mxu0 0.0
    %2329 = vmatprep.subr.mxu0 0.0
    %2330 = vmatpush2.msra.mxu0 0.0
    %2331 = vmatprep.subr.mxu0 0.0
    %2332 = vmatpush2.msra.mxu0 0.0
    %2333 = vmatprep.subr.mxu0 0.0
    %2334 = vmatpush2.msra.mxu0 0.0
    %2335 = vmatprep.subr.mxu0 0.0
    %2336 = vmatpush2.msra.mxu0 0.0
    %2337 = vmatprep.subr.mxu0 0.0
    %2338 = vmatpush2.msra.mxu0 0.0
    %2339 = vmatprep.mubr.f32.mxu0 0.0
    %2340 = vmatmul.mubr.f32.gmra.mxu0 %v2273
    %v2341 = vpop.f32.mrf.mxu0
    %v2342 = vadd.f32 0.0, %v2341
    %v2343 = vpop.f32.mrf.mxu0
    %2344 = vdwg.mxu0
    %2346 = vrot.lane.b32.xlu0 %v2269, 32
    %v2347 = vpop.permute.xlu0 %2346
    %v2348 = vsel %vm678, %v2347, 0
    %2350 = vmatprep.subr.mxu0 0.0
    %2351 = vmatpush1.msra.mxu0 0.0
    %2352 = vmatprep.subr.mxu0 0.0
    %2353 = vmatpush1.msra.mxu0 0.0
    %2354 = vmatprep.subr.mxu0 0.0
    %2355 = vmatpush1.msra.mxu0 0.0
    %2356 = vmatprep.subr.mxu0 0.0
    %2357 = vmatpush1.msra.mxu0 0.0
    %2358 = vmatprep.subr.mxu0 0.0
    %2359 = vmatpush1.msra.mxu0 0.0
    %2360 = vmatprep.subr.mxu0 0.0
    %2361 = vmatpush1.msra.mxu0 0.0
    %2362 = vmatprep.subr.mxu0 0.0
    %2363 = vmatpush1.msra.mxu0 0.0
    %2364 = vmatprep.subr.mxu0 0.0
    %2365 = vmatpush1.msra.mxu0 0.0
    %2366 = vmatprep.subr.mxu0 0.0
    %2367 = vmatpush1.msra.mxu0 0.0
    %2368 = vmatprep.subr.mxu0 0.0
    %2369 = vmatpush1.msra.mxu0 0.0
    %2370 = vmatprep.subr.mxu0 0.0
    %2371 = vmatpush1.msra.mxu0 0.0
    %2372 = vmatprep.subr.mxu0 0.0
    %2373 = vmatpush1.msra.mxu0 0.0
    %2374 = vmatprep.subr.mxu0 0.0
    %2375 = vmatpush1.msra.mxu0 %v961
    %2376 = vmatprep.subr.mxu0 0.0
    %2377 = vmatpush1.msra.mxu0 %v960
    %2378 = vmatprep.subr.mxu0 0.0
    %2379 = vmatpush1.msra.mxu0 %v959
    %2380 = vmatprep.subr.mxu0 0.0
    %2381 = vmatpush1.msra.mxu0 %v958
    %2382 = vmatprep.subr.mxu0 0.0
    %2383 = vmatpush2.msra.mxu0 0.0
    %2384 = vmatprep.subr.mxu0 0.0
    %2385 = vmatpush2.msra.mxu0 0.0
    %2386 = vmatprep.subr.mxu0 0.0
    %2387 = vmatpush2.msra.mxu0 0.0
    %2388 = vmatprep.subr.mxu0 0.0
    %2389 = vmatpush2.msra.mxu0 0.0
    %2390 = vmatprep.subr.mxu0 0.0
    %2391 = vmatpush2.msra.mxu0 0.0
    %2392 = vmatprep.subr.mxu0 0.0
    %2393 = vmatpush2.msra.mxu0 0.0
    %2394 = vmatprep.subr.mxu0 0.0
    %2395 = vmatpush2.msra.mxu0 0.0
    %2396 = vmatprep.subr.mxu0 0.0
    %2397 = vmatpush2.msra.mxu0 0.0
    %2398 = vmatprep.subr.mxu0 0.0
    %2399 = vmatpush2.msra.mxu0 0.0
    %2400 = vmatprep.subr.mxu0 0.0
    %2401 = vmatpush2.msra.mxu0 0.0
    %2402 = vmatprep.subr.mxu0 0.0
    %2403 = vmatpush2.msra.mxu0 0.0
    %2404 = vmatprep.subr.mxu0 0.0
    %2405 = vmatpush2.msra.mxu0 0.0
    %2406 = vmatprep.subr.mxu0 0.0
    %2407 = vmatpush2.msra.mxu0 0.0
    %2408 = vmatprep.subr.mxu0 0.0
    %2409 = vmatpush2.msra.mxu0 0.0
    %2410 = vmatprep.subr.mxu0 0.0
    %2411 = vmatpush2.msra.mxu0 0.0
    %2412 = vmatprep.subr.mxu0 0.0
    %2413 = vmatpush2.msra.mxu0 0.0
    %2414 = vmatprep.mubr.f32.mxu0 0.0
    %2415 = vmatmul.mubr.f32.gmra.mxu0 %v2348
    %v2416 = vpop.f32.mrf.mxu0
    %v2417 = vadd.f32 %v2342, %v2416
    %v2418 = vpop.f32.mrf.mxu0
    %2419 = vdwg.mxu0
    %v2420 = vadd.f32 %v2417, %v1116
    %v2421 = vmul.f32 %v2420, 0.5
    %v2422 = vtanh.pop %v2421
    %v2423 = vadd.f32 %v2422, 1.0
    %v2424 = vmul.f32 %v2423, 0.5
    %v2425 = vtanh.pop %v2420
    %v2426 = vmul.f32 %v2424, %v2002
    %2428 = vrot.lane.b32.xlu0 %v2425, 64
    %v2429 = vpop.permute.xlu0 %2428
    %v2431 = vmul.f32 %v2424, %v2429
    %2433 = vrot.lane.b32.xlu0 %v2431, 32
    %v2434 = vpop.permute.xlu0 %2433
    %v2436 = vadd.f32 %v2426, %v2434
    %v2437 = vtanh.pop %v2436
    %2439 = vrot.lane.b32.xlu0 %v2437, 64
    %v2440 = vpop.permute.xlu0 %2439
    %v2442 = vmul.f32 %v2424, %v2440
    %2443 = vmatprep.subr.mxu0 0.0
    %2444 = vmatpush1.msra.mxu0 0.0
    %2445 = vmatprep.subr.mxu0 0.0
    %2446 = vmatpush1.msra.mxu0 0.0
    %2447 = vmatprep.subr.mxu0 0.0
    %2448 = vmatpush1.msra.mxu0 0.0
    %2449 = vmatprep.subr.mxu0 0.0
    %2450 = vmatpush1.msra.mxu0 0.0
    %2451 = vmatprep.subr.mxu0 0.0
    %2452 = vmatpush1.msra.mxu0 0.0
    %2453 = vmatprep.subr.mxu0 0.0
    %2454 = vmatpush1.msra.mxu0 0.0
    %2455 = vmatprep.subr.mxu0 0.0
    %2456 = vmatpush1.msra.mxu0 0.0
    %2457 = vmatprep.subr.mxu0 0.0
    %2458 = vmatpush1.msra.mxu0 0.0
    %2459 = vmatprep.subr.mxu0 0.0
    %2460 = vmatpush1.msra.mxu0 0.0
    %2461 = vmatprep.subr.mxu0 0.0
    %2462 = vmatpush1.msra.mxu0 0.0
    %2463 = vmatprep.subr.mxu0 0.0
    %2464 = vmatpush1.msra.mxu0 0.0
    %2465 = vmatprep.subr.mxu0 0.0
    %2466 = vmatpush1.msra.mxu0 0.0
    %2467 = vmatprep.subr.mxu0 0.0
    %2468 = vmatpush1.msra.mxu0 %v677
    %2469 = vmatprep.subr.mxu0 0.0
    %2470 = vmatpush1.msra.mxu0 %v676
    %2471 = vmatprep.subr.mxu0 0.0
    %2472 = vmatpush1.msra.mxu0 %v675
    %2473 = vmatprep.subr.mxu0 0.0
    %2474 = vmatpush1.msra.mxu0 %v674
    %2475 = vmatprep.subr.mxu0 0.0
    %2476 = vmatpush2.msra.mxu0 0.0
    %2477 = vmatprep.subr.mxu0 0.0
    %2478 = vmatpush2.msra.mxu0 0.0
    %2479 = vmatprep.subr.mxu0 0.0
    %2480 = vmatpush2.msra.mxu0 0.0
    %2481 = vmatprep.subr.mxu0 0.0
    %2482 = vmatpush2.msra.mxu0 0.0
    %2483 = vmatprep.subr.mxu0 0.0
    %2484 = vmatpush2.msra.mxu0 0.0
    %2485 = vmatprep.subr.mxu0 0.0
    %2486 = vmatpush2.msra.mxu0 0.0
    %2487 = vmatprep.subr.mxu0 0.0
    %2488 = vmatpush2.msra.mxu0 0.0
    %2489 = vmatprep.subr.mxu0 0.0
    %2490 = vmatpush2.msra.mxu0 0.0
    %2491 = vmatprep.subr.mxu0 0.0
    %2492 = vmatpush2.msra.mxu0 0.0
    %2493 = vmatprep.subr.mxu0 0.0
    %2494 = vmatpush2.msra.mxu0 0.0
    %2495 = vmatprep.subr.mxu0 0.0
    %2496 = vmatpush2.msra.mxu0 0.0
    %2497 = vmatprep.subr.mxu0 0.0
    %2498 = vmatpush2.msra.mxu0 0.0
    %2499 = vmatprep.subr.mxu0 0.0
    %2500 = vmatpush2.msra.mxu0 0.0
    %2501 = vmatprep.subr.mxu0 0.0
    %2502 = vmatpush2.msra.mxu0 0.0
    %2503 = vmatprep.subr.mxu0 0.0
    %2504 = vmatpush2.msra.mxu0 0.0
    %2505 = vmatprep.subr.mxu0 0.0
    %2506 = vmatpush2.msra.mxu0 0.0
    %2507 = vmatprep.mubr.f32.mxu0 0.0
    %2508 = vmatmul.mubr.f32.gmra.mxu0 %v2175
    %v2509 = vpop.f32.mrf.mxu0
    %v2510 = vadd.f32 0.0, %v2509
    %v2511 = vpop.f32.mrf.mxu0
    %2512 = vdwg.mxu0
    %v2513 = vadd.f32 %v671, %v2510
    %v2514 = vmul.f32 %v2513, 0.5
    %v2515 = vtanh.pop %v2514
    %v2516 = vadd.f32 %v2515, 1.0
    %v2517 = vmul.f32 %v2516, 0.5
    %v2518 = vtanh.pop %v2513
    %v2519 = vmul.f32 %v2517, %v2095
    %2521 = vrot.lane.b32.xlu0 %v2518, 64
    %v2522 = vpop.permute.xlu0 %2521
    %v2524 = vmul.f32 %v2517, %v2522
    %2526 = vrot.lane.b32.xlu0 %v2524, 32
    %v2527 = vpop.permute.xlu0 %2526
    %v2529 = vadd.f32 %v2519, %v2527
    %v2530 = vtanh.pop %v2529
    %2532 = vrot.lane.b32.xlu0 %v2530, 64
    %v2533 = vpop.permute.xlu0 %2532
    %v2535 = vmul.f32 %v2517, %v2533
    %2536 = vmatprep.subr.mxu0 0.0
    %2537 = vmatpush1.msra.mxu0 0.0
    %2538 = vmatprep.subr.mxu0 0.0
    %2539 = vmatpush1.msra.mxu0 0.0
    %2540 = vmatprep.subr.mxu0 0.0
    %2541 = vmatpush1.msra.mxu0 0.0
    %2542 = vmatprep.subr.mxu0 0.0
    %2543 = vmatpush1.msra.mxu0 0.0
    %2544 = vmatprep.subr.mxu0 0.0
    %2545 = vmatpush1.msra.mxu0 0.0
    %2546 = vmatprep.subr.mxu0 0.0
    %2547 = vmatpush1.msra.mxu0 0.0
    %2548 = vmatprep.subr.mxu0 0.0
    %2549 = vmatpush1.msra.mxu0 0.0
    %2550 = vmatprep.subr.mxu0 0.0
    %2551 = vmatpush1.msra.mxu0 0.0
    %2552 = vmatprep.subr.mxu0 0.0
    %2553 = vmatpush1.msra.mxu0 0.0
    %2554 = vmatprep.subr.mxu0 0.0
    %2555 = vmatpush1.msra.mxu0 0.0
    %2556 = vmatprep.subr.mxu0 0.0
    %2557 = vmatpush1.msra.mxu0 0.0
    %2558 = vmatprep.subr.mxu0 0.0
    %2559 = vmatpush1.msra.mxu0 0.0
    %2560 = vmatprep.subr.mxu0 0.0
    %2561 = vmatpush1.msra.mxu0 %v782
    %2562 = vmatprep.subr.mxu0 0.0
    %2563 = vmatpush1.msra.mxu0 %v781
    %2564 = vmatprep.subr.mxu0 0.0
    %2565 = vmatpush1.msra.mxu0 %v780
    %2566 = vmatprep.subr.mxu0 0.0
    %2567 = vmatpush1.msra.mxu0 %v779
    %2568 = vmatprep.subr.mxu0 0.0
    %2569 = vmatpush2.msra.mxu0 0.0
    %2570 = vmatprep.subr.mxu0 0.0
    %2571 = vmatpush2.msra.mxu0 0.0
    %2572 = vmatprep.subr.mxu0 0.0
    %2573 = vmatpush2.msra.mxu0 0.0
    %2574 = vmatprep.subr.mxu0 0.0
    %2575 = vmatpush2.msra.mxu0 0.0
    %2576 = vmatprep.subr.mxu0 0.0
    %2577 = vmatpush2.msra.mxu0 0.0
    %2578 = vmatprep.subr.mxu0 0.0
    %2579 = vmatpush2.msra.mxu0 0.0
    %2580 = vmatprep.subr.mxu0 0.0
    %2581 = vmatpush2.msra.mxu0 0.0
    %2582 = vmatprep.subr.mxu0 0.0
    %2583 = vmatpush2.msra.mxu0 0.0
    %2584 = vmatprep.subr.mxu0 0.0
    %2585 = vmatpush2.msra.mxu0 0.0
    %2586 = vmatprep.subr.mxu0 0.0
    %2587 = vmatpush2.msra.mxu0 0.0
    %2588 = vmatprep.subr.mxu0 0.0
    %2589 = vmatpush2.msra.mxu0 0.0
    %2590 = vmatprep.subr.mxu0 0.0
    %2591 = vmatpush2.msra.mxu0 0.0
    %2592 = vmatprep.subr.mxu0 0.0
    %2593 = vmatpush2.msra.mxu0 0.0
    %2594 = vmatprep.subr.mxu0 0.0
    %2595 = vmatpush2.msra.mxu0 0.0
    %2596 = vmatprep.subr.mxu0 0.0
    %2597 = vmatpush2.msra.mxu0 0.0
    %2598 = vmatprep.subr.mxu0 0.0
    %2599 = vmatpush2.msra.mxu0 0.0
    %2600 = vmatprep.mubr.f32.mxu0 0.0
    %2601 = vmatmul.mubr.f32.gmra.mxu0 %v2348
    %v2602 = vpop.f32.mrf.mxu0
    %v2603 = vadd.f32 0.0, %v2602
    %v2604 = vpop.f32.mrf.mxu0
    %2605 = vdwg.mxu0
    %2607 = vrot.lane.b32.xlu0 %v2535, 32
    %v2608 = vpop.permute.xlu0 %2607
    %v2609 = vsel %vm678, %v2608, 0
    %2611 = vmatprep.subr.mxu0 0.0
    %2612 = vmatpush1.msra.mxu0 0.0
    %2613 = vmatprep.subr.mxu0 0.0
    %2614 = vmatpush1.msra.mxu0 0.0
    %2615 = vmatprep.subr.mxu0 0.0
    %2616 = vmatpush1.msra.mxu0 0.0
    %2617 = vmatprep.subr.mxu0 0.0
    %2618 = vmatpush1.msra.mxu0 0.0
    %2619 = vmatprep.subr.mxu0 0.0
    %2620 = vmatpush1.msra.mxu0 0.0
    %2621 = vmatprep.subr.mxu0 0.0
    %2622 = vmatpush1.msra.mxu0 0.0
    %2623 = vmatprep.subr.mxu0 0.0
    %2624 = vmatpush1.msra.mxu0 0.0
    %2625 = vmatprep.subr.mxu0 0.0
    %2626 = vmatpush1.msra.mxu0 0.0
    %2627 = vmatprep.subr.mxu0 0.0
    %2628 = vmatpush1.msra.mxu0 0.0
    %2629 = vmatprep.subr.mxu0 0.0
    %2630 = vmatpush1.msra.mxu0 0.0
    %2631 = vmatprep.subr.mxu0 0.0
    %2632 = vmatpush1.msra.mxu0 0.0
    %2633 = vmatprep.subr.mxu0 0.0
    %2634 = vmatpush1.msra.mxu0 0.0
    %2635 = vmatprep.subr.mxu0 0.0
    %2636 = vmatpush1.msra.mxu0 %v778
    %2637 = vmatprep.subr.mxu0 0.0
    %2638 = vmatpush1.msra.mxu0 %v777
    %2639 = vmatprep.subr.mxu0 0.0
    %2640 = vmatpush1.msra.mxu0 %v776
    %2641 = vmatprep.subr.mxu0 0.0
    %2642 = vmatpush1.msra.mxu0 %v775
    %2643 = vmatprep.subr.mxu0 0.0
    %2644 = vmatpush2.msra.mxu0 0.0
    %2645 = vmatprep.subr.mxu0 0.0
    %2646 = vmatpush2.msra.mxu0 0.0
    %2647 = vmatprep.subr.mxu0 0.0
    %2648 = vmatpush2.msra.mxu0 0.0
    %2649 = vmatprep.subr.mxu0 0.0
    %2650 = vmatpush2.msra.mxu0 0.0
    %2651 = vmatprep.subr.mxu0 0.0
    %2652 = vmatpush2.msra.mxu0 0.0
    %2653 = vmatprep.subr.mxu0 0.0
    %2654 = vmatpush2.msra.mxu0 0.0
    %2655 = vmatprep.subr.mxu0 0.0
    %2656 = vmatpush2.msra.mxu0 0.0
    %2657 = vmatprep.subr.mxu0 0.0
    %2658 = vmatpush2.msra.mxu0 0.0
    %2659 = vmatprep.subr.mxu0 0.0
    %2660 = vmatpush2.msra.mxu0 0.0
    %2661 = vmatprep.subr.mxu0 0.0
    %2662 = vmatpush2.msra.mxu0 0.0
    %2663 = vmatprep.subr.mxu0 0.0
    %2664 = vmatpush2.msra.mxu0 0.0
    %2665 = vmatprep.subr.mxu0 0.0
    %2666 = vmatpush2.msra.mxu0 0.0
    %2667 = vmatprep.subr.mxu0 0.0
    %2668 = vmatpush2.msra.mxu0 0.0
    %2669 = vmatprep.subr.mxu0 0.0
    %2670 = vmatpush2.msra.mxu0 0.0
    %2671 = vmatprep.subr.mxu0 0.0
    %2672 = vmatpush2.msra.mxu0 0.0
    %2673 = vmatprep.subr.mxu0 0.0
    %2674 = vmatpush2.msra.mxu0 0.0
    %2675 = vmatprep.mubr.f32.mxu0 0.0
    %2676 = vmatmul.mubr.f32.gmra.mxu0 %v2609
    %v2677 = vpop.f32.mrf.mxu0
    %v2678 = vadd.f32 %v2603, %v2677
    %v2679 = vpop.f32.mrf.mxu0
    %2680 = vdwg.mxu0
    %v2681 = vadd.f32 %v2678, %v933
    %v2682 = vmul.f32 %v2681, 0.5
    %v2683 = vtanh.pop %v2682
    %v2684 = vadd.f32 %v2683, 1.0
    %v2685 = vmul.f32 %v2684, 0.5
    %v2686 = vtanh.pop %v2681
    %v2687 = vmul.f32 %v2685, %v2263
    %2689 = vrot.lane.b32.xlu0 %v2686, 64
    %v2690 = vpop.permute.xlu0 %2689
    %v2692 = vmul.f32 %v2685, %v2690
    %2694 = vrot.lane.b32.xlu0 %v2692, 32
    %v2695 = vpop.permute.xlu0 %2694
    %v2697 = vadd.f32 %v2687, %v2695
    %v2698 = vtanh.pop %v2697
    %2700 = vrot.lane.b32.xlu0 %v2698, 64
    %v2701 = vpop.permute.xlu0 %2700
    %v2703 = vmul.f32 %v2685, %v2701
    %2705 = vrot.lane.b32.xlu0 %v2442, 32
    %v2706 = vpop.permute.xlu0 %2705
    %v2707 = vsel %vm678, %v2706, 0
    %2709 = vmatprep.subr.mxu0 0.0
    %2710 = vmatpush1.msra.mxu0 0.0
    %2711 = vmatprep.subr.mxu0 0.0
    %2712 = vmatpush1.msra.mxu0 0.0
    %2713 = vmatprep.subr.mxu0 0.0
    %2714 = vmatpush1.msra.mxu0 0.0
    %2715 = vmatprep.subr.mxu0 0.0
    %2716 = vmatpush1.msra.mxu0 0.0
    %2717 = vmatprep.subr.mxu0 0.0
    %2718 = vmatpush1.msra.mxu0 0.0
    %2719 = vmatprep.subr.mxu0 0.0
    %2720 = vmatpush1.msra.mxu0 0.0
    %2721 = vmatprep.subr.mxu0 0.0
    %2722 = vmatpush1.msra.mxu0 0.0
    %2723 = vmatprep.subr.mxu0 0.0
    %2724 = vmatpush1.msra.mxu0 0.0
    %2725 = vmatprep.subr.mxu0 0.0
    %2726 = vmatpush1.msra.mxu0 0.0
    %2727 = vmatprep.subr.mxu0 0.0
    %2728 = vmatpush1.msra.mxu0 0.0
    %2729 = vmatprep.subr.mxu0 0.0
    %2730 = vmatpush1.msra.mxu0 0.0
    %2731 = vmatprep.subr.mxu0 0.0
    %2732 = vmatpush1.msra.mxu0 0.0
    %2733 = vmatprep.subr.mxu0 0.0
    %2734 = vmatpush1.msra.mxu0 %v965
    %2735 = vmatprep.subr.mxu0 0.0
    %2736 = vmatpush1.msra.mxu0 %v964
    %2737 = vmatprep.subr.mxu0 0.0
    %2738 = vmatpush1.msra.mxu0 %v963
    %2739 = vmatprep.subr.mxu0 0.0
    %2740 = vmatpush1.msra.mxu0 %v962
    %2741 = vmatprep.subr.mxu0 0.0
    %2742 = vmatpush2.msra.mxu0 0.0
    %2743 = vmatprep.subr.mxu0 0.0
    %2744 = vmatpush2.msra.mxu0 0.0
    %2745 = vmatprep.subr.mxu0 0.0
    %2746 = vmatpush2.msra.mxu0 0.0
    %2747 = vmatprep.subr.mxu0 0.0
    %2748 = vmatpush2.msra.mxu0 0.0
    %2749 = vmatprep.subr.mxu0 0.0
    %2750 = vmatpush2.msra.mxu0 0.0
    %2751 = vmatprep.subr.mxu0 0.0
    %2752 = vmatpush2.msra.mxu0 0.0
    %2753 = vmatprep.subr.mxu0 0.0
    %2754 = vmatpush2.msra.mxu0 0.0
    %2755 = vmatprep.subr.mxu0 0.0
    %2756 = vmatpush2.msra.mxu0 0.0
    %2757 = vmatprep.subr.mxu0 0.0
    %2758 = vmatpush2.msra.mxu0 0.0
    %2759 = vmatprep.subr.mxu0 0.0
    %2760 = vmatpush2.msra.mxu0 0.0
    %2761 = vmatprep.subr.mxu0 0.0
    %2762 = vmatpush2.msra.mxu0 0.0
    %2763 = vmatprep.subr.mxu0 0.0
    %2764 = vmatpush2.msra.mxu0 0.0
    %2765 = vmatprep.subr.mxu0 0.0
    %2766 = vmatpush2.msra.mxu0 0.0
    %2767 = vmatprep.subr.mxu0 0.0
    %2768 = vmatpush2.msra.mxu0 0.0
    %2769 = vmatprep.subr.mxu0 0.0
    %2770 = vmatpush2.msra.mxu0 0.0
    %2771 = vmatprep.subr.mxu0 0.0
    %2772 = vmatpush2.msra.mxu0 0.0
    %2773 = vmatprep.mubr.f32.mxu0 0.0
    %2774 = vmatmul.mubr.f32.gmra.mxu0 %v2707
    %v2775 = vpop.f32.mrf.mxu0
    %v2776 = vadd.f32 0.0, %v2775
    %v2777 = vpop.f32.mrf.mxu0
    %2778 = vdwg.mxu0
    %2780 = vrot.lane.b32.xlu0 %v2703, 32
    %v2781 = vpop.permute.xlu0 %2780
    %v2782 = vsel %vm678, %v2781, 0
    %2784 = vmatprep.subr.mxu0 0.0
    %2785 = vmatpush1.msra.mxu0 0.0
    %2786 = vmatprep.subr.mxu0 0.0
    %2787 = vmatpush1.msra.mxu0 0.0
    %2788 = vmatprep.subr.mxu0 0.0
    %2789 = vmatpush1.msra.mxu0 0.0
    %2790 = vmatprep.subr.mxu0 0.0
    %2791 = vmatpush1.msra.mxu0 0.0
    %2792 = vmatprep.subr.mxu0 0.0
    %2793 = vmatpush1.msra.mxu0 0.0
    %2794 = vmatprep.subr.mxu0 0.0
    %2795 = vmatpush1.msra.mxu0 0.0
    %2796 = vmatprep.subr.mxu0 0.0
    %2797 = vmatpush1.msra.mxu0 0.0
    %2798 = vmatprep.subr.mxu0 0.0
    %2799 = vmatpush1.msra.mxu0 0.0
    %2800 = vmatprep.subr.mxu0 0.0
    %2801 = vmatpush1.msra.mxu0 0.0
    %2802 = vmatprep.subr.mxu0 0.0
    %2803 = vmatpush1.msra.mxu0 0.0
    %2804 = vmatprep.subr.mxu0 0.0
    %2805 = vmatpush1.msra.mxu0 0.0
    %2806 = vmatprep.subr.mxu0 0.0
    %2807 = vmatpush1.msra.mxu0 0.0
    %2808 = vmatprep.subr.mxu0 0.0
    %2809 = vmatpush1.msra.mxu0 %v961
    %2810 = vmatprep.subr.mxu0 0.0
    %2811 = vmatpush1.msra.mxu0 %v960
    %2812 = vmatprep.subr.mxu0 0.0
    %2813 = vmatpush1.msra.mxu0 %v959
    %2814 = vmatprep.subr.mxu0 0.0
    %2815 = vmatpush1.msra.mxu0 %v958
    %2816 = vmatprep.subr.mxu0 0.0
    %2817 = vmatpush2.msra.mxu0 0.0
    %2818 = vmatprep.subr.mxu0 0.0
    %2819 = vmatpush2.msra.mxu0 0.0
    %2820 = vmatprep.subr.mxu0 0.0
    %2821 = vmatpush2.msra.mxu0 0.0
    %2822 = vmatprep.subr.mxu0 0.0
    %2823 = vmatpush2.msra.mxu0 0.0
    %2824 = vmatprep.subr.mxu0 0.0
    %2825 = vmatpush2.msra.mxu0 0.0
    %2826 = vmatprep.subr.mxu0 0.0
    %2827 = vmatpush2.msra.mxu0 0.0
    %2828 = vmatprep.subr.mxu0 0.0
    %2829 = vmatpush2.msra.mxu0 0.0
    %2830 = vmatprep.subr.mxu0 0.0
    %2831 = vmatpush2.msra.mxu0 0.0
    %2832 = vmatprep.subr.mxu0 0.0
    %2833 = vmatpush2.msra.mxu0 0.0
    %2834 = vmatprep.subr.mxu0 0.0
    %2835 = vmatpush2.msra.mxu0 0.0
    %2836 = vmatprep.subr.mxu0 0.0
    %2837 = vmatpush2.msra.mxu0 0.0
    %2838 = vmatprep.subr.mxu0 0.0
    %2839 = vmatpush2.msra.mxu0 0.0
    %2840 = vmatprep.subr.mxu0 0.0
    %2841 = vmatpush2.msra.mxu0 0.0
    %2842 = vmatprep.subr.mxu0 0.0
    %2843 = vmatpush2.msra.mxu0 0.0
    %2844 = vmatprep.subr.mxu0 0.0
    %2845 = vmatpush2.msra.mxu0 0.0
    %2846 = vmatprep.subr.mxu0 0.0
    %2847 = vmatpush2.msra.mxu0 0.0
    %2848 = vmatprep.mubr.f32.mxu0 0.0
    %2849 = vmatmul.mubr.f32.gmra.mxu0 %v2782
    %v2850 = vpop.f32.mrf.mxu0
    %v2851 = vadd.f32 %v2776, %v2850
    %v2852 = vpop.f32.mrf.mxu0
    %2853 = vdwg.mxu0
    %v2854 = vadd.f32 %v2851, %v1116
    %v2855 = vmul.f32 %v2854, 0.5
    %v2856 = vtanh.pop %v2855
    %v2857 = vadd.f32 %v2856, 1.0
    %v2858 = vmul.f32 %v2857, 0.5
    %v2859 = vtanh.pop %v2854
    %v2860 = vmul.f32 %v2858, %v2436
    %2862 = vrot.lane.b32.xlu0 %v2859, 64
    %v2863 = vpop.permute.xlu0 %2862
    %v2865 = vmul.f32 %v2858, %v2863
    %2867 = vrot.lane.b32.xlu0 %v2865, 32
    %v2868 = vpop.permute.xlu0 %2867
    %v2870 = vadd.f32 %v2860, %v2868
    %v2871 = vtanh.pop %v2870
    %2873 = vrot.lane.b32.xlu0 %v2871, 64
    %v2874 = vpop.permute.xlu0 %2873
    %v2876 = vmul.f32 %v2858, %v2874
    %2877 = vmatprep.subr.mxu0 0.0
    %2878 = vmatpush1.msra.mxu0 0.0
    %2879 = vmatprep.subr.mxu0 0.0
    %2880 = vmatpush1.msra.mxu0 0.0
    %2881 = vmatprep.subr.mxu0 0.0
    %2882 = vmatpush1.msra.mxu0 0.0
    %2883 = vmatprep.subr.mxu0 0.0
    %2884 = vmatpush1.msra.mxu0 0.0
    %2885 = vmatprep.subr.mxu0 0.0
    %2886 = vmatpush1.msra.mxu0 0.0
    %2887 = vmatprep.subr.mxu0 0.0
    %2888 = vmatpush1.msra.mxu0 0.0
    %2889 = vmatprep.subr.mxu0 0.0
    %2890 = vmatpush1.msra.mxu0 0.0
    %2891 = vmatprep.subr.mxu0 0.0
    %2892 = vmatpush1.msra.mxu0 0.0
    %2893 = vmatprep.subr.mxu0 0.0
    %2894 = vmatpush1.msra.mxu0 0.0
    %2895 = vmatprep.subr.mxu0 0.0
    %2896 = vmatpush1.msra.mxu0 0.0
    %2897 = vmatprep.subr.mxu0 0.0
    %2898 = vmatpush1.msra.mxu0 0.0
    %2899 = vmatprep.subr.mxu0 0.0
    %2900 = vmatpush1.msra.mxu0 0.0
    %2901 = vmatprep.subr.mxu0 0.0
    %2902 = vmatpush1.msra.mxu0 %v677
    %2903 = vmatprep.subr.mxu0 0.0
    %2904 = vmatpush1.msra.mxu0 %v676
    %2905 = vmatprep.subr.mxu0 0.0
    %2906 = vmatpush1.msra.mxu0 %v675
    %2907 = vmatprep.subr.mxu0 0.0
    %2908 = vmatpush1.msra.mxu0 %v674
    %2909 = vmatprep.subr.mxu0 0.0
    %2910 = vmatpush2.msra.mxu0 0.0
    %2911 = vmatprep.subr.mxu0 0.0
    %2912 = vmatpush2.msra.mxu0 0.0
    %2913 = vmatprep.subr.mxu0 0.0
    %2914 = vmatpush2.msra.mxu0 0.0
    %2915 = vmatprep.subr.mxu0 0.0
    %2916 = vmatpush2.msra.mxu0 0.0
    %2917 = vmatprep.subr.mxu0 0.0
    %2918 = vmatpush2.msra.mxu0 0.0
    %2919 = vmatprep.subr.mxu0 0.0
    %2920 = vmatpush2.msra.mxu0 0.0
    %2921 = vmatprep.subr.mxu0 0.0
    %2922 = vmatpush2.msra.mxu0 0.0
    %2923 = vmatprep.subr.mxu0 0.0
    %2924 = vmatpush2.msra.mxu0 0.0
    %2925 = vmatprep.subr.mxu0 0.0
    %2926 = vmatpush2.msra.mxu0 0.0
    %2927 = vmatprep.subr.mxu0 0.0
    %2928 = vmatpush2.msra.mxu0 0.0
    %2929 = vmatprep.subr.mxu0 0.0
    %2930 = vmatpush2.msra.mxu0 0.0
    %2931 = vmatprep.subr.mxu0 0.0
    %2932 = vmatpush2.msra.mxu0 0.0
    %2933 = vmatprep.subr.mxu0 0.0
    %2934 = vmatpush2.msra.mxu0 0.0
    %2935 = vmatprep.subr.mxu0 0.0
    %2936 = vmatpush2.msra.mxu0 0.0
    %2937 = vmatprep.subr.mxu0 0.0
    %2938 = vmatpush2.msra.mxu0 0.0
    %2939 = vmatprep.subr.mxu0 0.0
    %2940 = vmatpush2.msra.mxu0 0.0
    %2941 = vmatprep.mubr.f32.mxu0 0.0
    %2942 = vmatmul.mubr.f32.gmra.mxu0 %v2609
    %v2943 = vpop.f32.mrf.mxu0
    %v2944 = vadd.f32 0.0, %v2943
    %v2945 = vpop.f32.mrf.mxu0
    %2946 = vdwg.mxu0
    %2948 = vrot.lane.b32.xlu0 %v2876, 32
    %v2949 = vpop.permute.xlu0 %2948
    %v2950 = vsel %vm678, %v2949, 0
    %2952 = vmatprep.subr.mxu0 0.0
    %2953 = vmatpush1.msra.mxu0 0.0
    %2954 = vmatprep.subr.mxu0 0.0
    %2955 = vmatpush1.msra.mxu0 0.0
    %2956 = vmatprep.subr.mxu0 0.0
    %2957 = vmatpush1.msra.mxu0 0.0
    %2958 = vmatprep.subr.mxu0 0.0
    %2959 = vmatpush1.msra.mxu0 0.0
    %2960 = vmatprep.subr.mxu0 0.0
    %2961 = vmatpush1.msra.mxu0 0.0
    %2962 = vmatprep.subr.mxu0 0.0
    %2963 = vmatpush1.msra.mxu0 0.0
    %2964 = vmatprep.subr.mxu0 0.0
    %2965 = vmatpush1.msra.mxu0 0.0
    %2966 = vmatprep.subr.mxu0 0.0
    %2967 = vmatpush1.msra.mxu0 0.0
    %2968 = vmatprep.subr.mxu0 0.0
    %2969 = vmatpush1.msra.mxu0 0.0
    %2970 = vmatprep.subr.mxu0 0.0
    %2971 = vmatpush1.msra.mxu0 0.0
    %2972 = vmatprep.subr.mxu0 0.0
    %2973 = vmatpush1.msra.mxu0 0.0
    %2974 = vmatprep.subr.mxu0 0.0
    %2975 = vmatpush1.msra.mxu0 0.0
    %2976 = vmatprep.subr.mxu0 0.0
    %2977 = vmatpush1.msra.mxu0 %v221
    %2978 = vmatprep.subr.mxu0 0.0
    %2979 = vmatpush1.msra.mxu0 %v216
    %2980 = vmatprep.subr.mxu0 0.0
    %2981 = vmatpush1.msra.mxu0 %v211
    %2982 = vmatprep.subr.mxu0 0.0
    %2983 = vmatpush1.msra.mxu0 %v206
    %2984 = vmatprep.subr.mxu0 0.0
    %2985 = vmatpush2.msra.mxu0 0.0
    %2986 = vmatprep.subr.mxu0 0.0
    %2987 = vmatpush2.msra.mxu0 0.0
    %2988 = vmatprep.subr.mxu0 0.0
    %2989 = vmatpush2.msra.mxu0 0.0
    %2990 = vmatprep.subr.mxu0 0.0
    %2991 = vmatpush2.msra.mxu0 0.0
    %2992 = vmatprep.subr.mxu0 0.0
    %2993 = vmatpush2.msra.mxu0 0.0
    %2994 = vmatprep.subr.mxu0 0.0
    %2995 = vmatpush2.msra.mxu0 0.0
    %2996 = vmatprep.subr.mxu0 0.0
    %2997 = vmatpush2.msra.mxu0 0.0
    %2998 = vmatprep.subr.mxu0 0.0
    %2999 = vmatpush2.msra.mxu0 0.0
    %3000 = vmatprep.subr.mxu0 0.0
    %3001 = vmatpush2.msra.mxu0 0.0
    %3002 = vmatprep.subr.mxu0 0.0
    %3003 = vmatpush2.msra.mxu0 0.0
    %3004 = vmatprep.subr.mxu0 0.0
    %3005 = vmatpush2.msra.mxu0 0.0
    %3006 = vmatprep.subr.mxu0 0.0
    %3007 = vmatpush2.msra.mxu0 0.0
    %3008 = vmatprep.subr.mxu0 0.0
    %3009 = vmatpush2.msra.mxu0 0.0
    %3010 = vmatprep.subr.mxu0 0.0
    %3011 = vmatpush2.msra.mxu0 0.0
    %3012 = vmatprep.subr.mxu0 0.0
    %3013 = vmatpush2.msra.mxu0 0.0
    %3014 = vmatprep.subr.mxu0 0.0
    %3015 = vmatpush2.msra.mxu0 0.0
    %3016 = vmatprep.mubr.f32.mxu0 0.0
    %3017 = vmatmul.mubr.f32.gmra.mxu0 %v2950
    %v3018 = vpop.f32.mrf.mxu0
    %v3019 = vadd.f32 %v2944, %v3018
    %v3020 = vpop.f32.mrf.mxu0
    %3021 = vdwg.mxu0
    %v3022 = vlaneseq
    %v3023 = vshrl.u32 %v3022, 7
    %v3024 = vsub.s32 0, %v3023
    %v3025 = vrot.slane %v295, %v3024
    %v3026 = vadd.f32 %v3019, %v3025
    %v3027 = vmul.f32 %v3026, 0.5
    %v3028 = vtanh.pop %v3027
    %v3029 = vadd.f32 %v3028, 1.0
    %v3030 = vmul.f32 %v3029, 0.5
    %v3031 = vtanh.pop %v3026
    %v3032 = vmul.f32 %v3030, %v2529
    %3034 = vrot.lane.b32.xlu0 %v3031, 64
    %v3035 = vpop.permute.xlu0 %3034
    %v3037 = vmul.f32 %v3030, %v3035
    %3039 = vrot.lane.b32.xlu0 %v3037, 32
    %v3040 = vpop.permute.xlu0 %3039
    %v3042 = vadd.f32 %v3032, %v3040
    %v3043 = vtanh.pop %v3042
    %3045 = vrot.lane.b32.xlu0 %v3043, 64
    %v3046 = vpop.permute.xlu0 %3045
    %v3048 = vmul.f32 %v3030, %v3046
    %3049 = vmatprep.subr.mxu0 0.0
    %3050 = vmatpush1.msra.mxu0 0.0
    %3051 = vmatprep.subr.mxu0 0.0
    %3052 = vmatpush1.msra.mxu0 0.0
    %3053 = vmatprep.subr.mxu0 0.0
    %3054 = vmatpush1.msra.mxu0 0.0
    %3055 = vmatprep.subr.mxu0 0.0
    %3056 = vmatpush1.msra.mxu0 0.0
    %3057 = vmatprep.subr.mxu0 0.0
    %3058 = vmatpush1.msra.mxu0 0.0
    %3059 = vmatprep.subr.mxu0 0.0
    %3060 = vmatpush1.msra.mxu0 0.0
    %3061 = vmatprep.subr.mxu0 0.0
    %3062 = vmatpush1.msra.mxu0 0.0
    %3063 = vmatprep.subr.mxu0 0.0
    %3064 = vmatpush1.msra.mxu0 0.0
    %3065 = vmatprep.subr.mxu0 0.0
    %3066 = vmatpush1.msra.mxu0 0.0
    %3067 = vmatprep.subr.mxu0 0.0
    %3068 = vmatpush1.msra.mxu0 0.0
    %3069 = vmatprep.subr.mxu0 0.0
    %3070 = vmatpush1.msra.mxu0 0.0
    %3071 = vmatprep.subr.mxu0 0.0
    %3072 = vmatpush1.msra.mxu0 0.0
    %3073 = vmatprep.subr.mxu0 0.0
    %3074 = vmatpush1.msra.mxu0 %v782
    %3075 = vmatprep.subr.mxu0 0.0
    %3076 = vmatpush1.msra.mxu0 %v781
    %3077 = vmatprep.subr.mxu0 0.0
    %3078 = vmatpush1.msra.mxu0 %v780
    %3079 = vmatprep.subr.mxu0 0.0
    %3080 = vmatpush1.msra.mxu0 %v779
    %3081 = vmatprep.subr.mxu0 0.0
    %3082 = vmatpush2.msra.mxu0 0.0
    %3083 = vmatprep.subr.mxu0 0.0
    %3084 = vmatpush2.msra.mxu0 0.0
    %3085 = vmatprep.subr.mxu0 0.0
    %3086 = vmatpush2.msra.mxu0 0.0
    %3087 = vmatprep.subr.mxu0 0.0
    %3088 = vmatpush2.msra.mxu0 0.0
    %3089 = vmatprep.subr.mxu0 0.0
    %3090 = vmatpush2.msra.mxu0 0.0
    %3091 = vmatprep.subr.mxu0 0.0
    %3092 = vmatpush2.msra.mxu0 0.0
    %3093 = vmatprep.subr.mxu0 0.0
    %3094 = vmatpush2.msra.mxu0 0.0
    %3095 = vmatprep.subr.mxu0 0.0
    %3096 = vmatpush2.msra.mxu0 0.0
    %3097 = vmatprep.subr.mxu0 0.0
    %3098 = vmatpush2.msra.mxu0 0.0
    %3099 = vmatprep.subr.mxu0 0.0
    %3100 = vmatpush2.msra.mxu0 0.0
    %3101 = vmatprep.subr.mxu0 0.0
    %3102 = vmatpush2.msra.mxu0 0.0
    %3103 = vmatprep.subr.mxu0 0.0
    %3104 = vmatpush2.msra.mxu0 0.0
    %3105 = vmatprep.subr.mxu0 0.0
    %3106 = vmatpush2.msra.mxu0 0.0
    %3107 = vmatprep.subr.mxu0 0.0
    %3108 = vmatpush2.msra.mxu0 0.0
    %3109 = vmatprep.subr.mxu0 0.0
    %3110 = vmatpush2.msra.mxu0 0.0
    %3111 = vmatprep.subr.mxu0 0.0
    %3112 = vmatpush2.msra.mxu0 0.0
    %3113 = vmatprep.mubr.f32.mxu0 0.0
    %3114 = vmatmul.mubr.f32.gmra.mxu0 %v2782
    %v3115 = vpop.f32.mrf.mxu0
    %v3116 = vadd.f32 0.0, %v3115
    %v3117 = vpop.f32.mrf.mxu0
    %3118 = vdwg.mxu0
    %3120 = vrot.lane.b32.xlu0 %v3048, 32
    %v3121 = vpop.permute.xlu0 %3120
    %v3122 = vsel %vm678, %v3121, 0
    %3124 = vmatprep.subr.mxu0 0.0
    %3125 = vmatpush1.msra.mxu0 0.0
    %3126 = vmatprep.subr.mxu0 0.0
    %3127 = vmatpush1.msra.mxu0 0.0
    %3128 = vmatprep.subr.mxu0 0.0
    %3129 = vmatpush1.msra.mxu0 0.0
    %3130 = vmatprep.subr.mxu0 0.0
    %3131 = vmatpush1.msra.mxu0 0.0
    %3132 = vmatprep.subr.mxu0 0.0
    %3133 = vmatpush1.msra.mxu0 0.0
    %3134 = vmatprep.subr.mxu0 0.0
    %3135 = vmatpush1.msra.mxu0 0.0
    %3136 = vmatprep.subr.mxu0 0.0
    %3137 = vmatpush1.msra.mxu0 0.0
    %3138 = vmatprep.subr.mxu0 0.0
    %3139 = vmatpush1.msra.mxu0 0.0
    %3140 = vmatprep.subr.mxu0 0.0
    %3141 = vmatpush1.msra.mxu0 0.0
    %3142 = vmatprep.subr.mxu0 0.0
    %3143 = vmatpush1.msra.mxu0 0.0
    %3144 = vmatprep.subr.mxu0 0.0
    %3145 = vmatpush1.msra.mxu0 0.0
    %3146 = vmatprep.subr.mxu0 0.0
    %3147 = vmatpush1.msra.mxu0 0.0
    %3148 = vmatprep.subr.mxu0 0.0
    %3149 = vmatpush1.msra.mxu0 %v778
    %3150 = vmatprep.subr.mxu0 0.0
    %3151 = vmatpush1.msra.mxu0 %v777
    %3152 = vmatprep.subr.mxu0 0.0
    %3153 = vmatpush1.msra.mxu0 %v776
    %3154 = vmatprep.subr.mxu0 0.0
    %3155 = vmatpush1.msra.mxu0 %v775
    %3156 = vmatprep.subr.mxu0 0.0
    %3157 = vmatpush2.msra.mxu0 0.0
    %3158 = vmatprep.subr.mxu0 0.0
    %3159 = vmatpush2.msra.mxu0 0.0
    %3160 = vmatprep.subr.mxu0 0.0
    %3161 = vmatpush2.msra.mxu0 0.0
    %3162 = vmatprep.subr.mxu0 0.0
    %3163 = vmatpush2.msra.mxu0 0.0
    %3164 = vmatprep.subr.mxu0 0.0
    %3165 = vmatpush2.msra.mxu0 0.0
    %3166 = vmatprep.subr.mxu0 0.0
    %3167 = vmatpush2.msra.mxu0 0.0
    %3168 = vmatprep.subr.mxu0 0.0
    %3169 = vmatpush2.msra.mxu0 0.0
    %3170 = vmatprep.subr.mxu0 0.0
    %3171 = vmatpush2.msra.mxu0 0.0
    %3172 = vmatprep.subr.mxu0 0.0
    %3173 = vmatpush2.msra.mxu0 0.0
    %3174 = vmatprep.subr.mxu0 0.0
    %3175 = vmatpush2.msra.mxu0 0.0
    %3176 = vmatprep.subr.mxu0 0.0
    %3177 = vmatpush2.msra.mxu0 0.0
    %3178 = vmatprep.subr.mxu0 0.0
    %3179 = vmatpush2.msra.mxu0 0.0
    %3180 = vmatprep.subr.mxu0 0.0
    %3181 = vmatpush2.msra.mxu0 0.0
    %3182 = vmatprep.subr.mxu0 0.0
    %3183 = vmatpush2.msra.mxu0 0.0
    %3184 = vmatprep.subr.mxu0 0.0
    %3185 = vmatpush2.msra.mxu0 0.0
    %3186 = vmatprep.subr.mxu0 0.0
    %3187 = vmatpush2.msra.mxu0 0.0
    %3188 = vmatprep.mubr.f32.mxu0 0.0
    %3189 = vmatmul.mubr.f32.gmra.mxu0 %v3122
    %v3190 = vpop.f32.mrf.mxu0
    %v3191 = vadd.f32 %v3116, %v3190
    %v3192 = vpop.f32.mrf.mxu0
    %3193 = vdwg.mxu0
    %v3194 = vadd.f32 %v3191, %v933
    %v3195 = vmul.f32 %v3194, 0.5
    %v3196 = vtanh.pop %v3195
    %v3197 = vadd.f32 %v3196, 1.0
    %v3198 = vmul.f32 %v3197, 0.5
    %v3199 = vtanh.pop %v3194
    %v3200 = vmul.f32 %v3198, %v2697
    %3202 = vrot.lane.b32.xlu0 %v3199, 64
    %v3203 = vpop.permute.xlu0 %3202
    %v3205 = vmul.f32 %v3198, %v3203
    %3207 = vrot.lane.b32.xlu0 %v3205, 32
    %v3208 = vpop.permute.xlu0 %3207
    %v3210 = vadd.f32 %v3200, %v3208
    %v3211 = vtanh.pop %v3210
    %3213 = vrot.lane.b32.xlu0 %v3211, 64
    %v3214 = vpop.permute.xlu0 %3213
    %v3216 = vmul.f32 %v3198, %v3214
    %3217 = vmatprep.subr.mxu0 0.0
    %3218 = vmatpush1.msra.mxu0 0.0
    %3219 = vmatprep.subr.mxu0 0.0
    %3220 = vmatpush1.msra.mxu0 0.0
    %3221 = vmatprep.subr.mxu0 0.0
    %3222 = vmatpush1.msra.mxu0 0.0
    %3223 = vmatprep.subr.mxu0 0.0
    %3224 = vmatpush1.msra.mxu0 0.0
    %3225 = vmatprep.subr.mxu0 0.0
    %3226 = vmatpush1.msra.mxu0 0.0
    %3227 = vmatprep.subr.mxu0 0.0
    %3228 = vmatpush1.msra.mxu0 0.0
    %3229 = vmatprep.subr.mxu0 0.0
    %3230 = vmatpush1.msra.mxu0 0.0
    %3231 = vmatprep.subr.mxu0 0.0
    %3232 = vmatpush1.msra.mxu0 0.0
    %3233 = vmatprep.subr.mxu0 0.0
    %3234 = vmatpush1.msra.mxu0 0.0
    %3235 = vmatprep.subr.mxu0 0.0
    %3236 = vmatpush1.msra.mxu0 0.0
    %3237 = vmatprep.subr.mxu0 0.0
    %3238 = vmatpush1.msra.mxu0 0.0
    %3239 = vmatprep.subr.mxu0 0.0
    %3240 = vmatpush1.msra.mxu0 0.0
    %3241 = vmatprep.subr.mxu0 0.0
    %3242 = vmatpush1.msra.mxu0 %v965
    %3243 = vmatprep.subr.mxu0 0.0
    %3244 = vmatpush1.msra.mxu0 %v964
    %3245 = vmatprep.subr.mxu0 0.0
    %3246 = vmatpush1.msra.mxu0 %v963
    %3247 = vmatprep.subr.mxu0 0.0
    %3248 = vmatpush1.msra.mxu0 %v962
    %3249 = vmatprep.subr.mxu0 0.0
    %3250 = vmatpush2.msra.mxu0 0.0
    %3251 = vmatprep.subr.mxu0 0.0
    %3252 = vmatpush2.msra.mxu0 0.0
    %3253 = vmatprep.subr.mxu0 0.0
    %3254 = vmatpush2.msra.mxu0 0.0
    %3255 = vmatprep.subr.mxu0 0.0
    %3256 = vmatpush2.msra.mxu0 0.0
    %3257 = vmatprep.subr.mxu0 0.0
    %3258 = vmatpush2.msra.mxu0 0.0
    %3259 = vmatprep.subr.mxu0 0.0
    %3260 = vmatpush2.msra.mxu0 0.0
    %3261 = vmatprep.subr.mxu0 0.0
    %3262 = vmatpush2.msra.mxu0 0.0
    %3263 = vmatprep.subr.mxu0 0.0
    %3264 = vmatpush2.msra.mxu0 0.0
    %3265 = vmatprep.subr.mxu0 0.0
    %3266 = vmatpush2.msra.mxu0 0.0
    %3267 = vmatprep.subr.mxu0 0.0
    %3268 = vmatpush2.msra.mxu0 0.0
    %3269 = vmatprep.subr.mxu0 0.0
    %3270 = vmatpush2.msra.mxu0 0.0
    %3271 = vmatprep.subr.mxu0 0.0
    %3272 = vmatpush2.msra.mxu0 0.0
    %3273 = vmatprep.subr.mxu0 0.0
    %3274 = vmatpush2.msra.mxu0 0.0
    %3275 = vmatprep.subr.mxu0 0.0
    %3276 = vmatpush2.msra.mxu0 0.0
    %3277 = vmatprep.subr.mxu0 0.0
    %3278 = vmatpush2.msra.mxu0 0.0
    %3279 = vmatprep.subr.mxu0 0.0
    %3280 = vmatpush2.msra.mxu0 0.0
    %3281 = vmatprep.mubr.f32.mxu0 0.0
    %3282 = vmatmul.mubr.f32.gmra.mxu0 %v2950
    %v3283 = vpop.f32.mrf.mxu0
    %v3284 = vadd.f32 0.0, %v3283
    %v3285 = vpop.f32.mrf.mxu0
    %3286 = vdwg.mxu0
    %3288 = vrot.lane.b32.xlu0 %v3216, 32
    %v3289 = vpop.permute.xlu0 %3288
    %v3290 = vsel %vm678, %v3289, 0
    %3292 = vmatprep.subr.mxu0 0.0
    %3293 = vmatpush1.msra.mxu0 0.0
    %3294 = vmatprep.subr.mxu0 0.0
    %3295 = vmatpush1.msra.mxu0 0.0
    %3296 = vmatprep.subr.mxu0 0.0
    %3297 = vmatpush1.msra.mxu0 0.0
    %3298 = vmatprep.subr.mxu0 0.0
    %3299 = vmatpush1.msra.mxu0 0.0
    %3300 = vmatprep.subr.mxu0 0.0
    %3301 = vmatpush1.msra.mxu0 0.0
    %3302 = vmatprep.subr.mxu0 0.0
    %3303 = vmatpush1.msra.mxu0 0.0
    %3304 = vmatprep.subr.mxu0 0.0
    %3305 = vmatpush1.msra.mxu0 0.0
    %3306 = vmatprep.subr.mxu0 0.0
    %3307 = vmatpush1.msra.mxu0 0.0
    %3308 = vmatprep.subr.mxu0 0.0
    %3309 = vmatpush1.msra.mxu0 0.0
    %3310 = vmatprep.subr.mxu0 0.0
    %3311 = vmatpush1.msra.mxu0 0.0
    %3312 = vmatprep.subr.mxu0 0.0
    %3313 = vmatpush1.msra.mxu0 0.0
    %3314 = vmatprep.subr.mxu0 0.0
    %3315 = vmatpush1.msra.mxu0 0.0
    %3316 = vmatprep.subr.mxu0 0.0
    %3317 = vmatpush1.msra.mxu0 %v961
    %3318 = vmatprep.subr.mxu0 0.0
    %3319 = vmatpush1.msra.mxu0 %v960
    %3320 = vmatprep.subr.mxu0 0.0
    %3321 = vmatpush1.msra.mxu0 %v959
    %3322 = vmatprep.subr.mxu0 0.0
    %3323 = vmatpush1.msra.mxu0 %v958
    %3324 = vmatprep.subr.mxu0 0.0
    %3325 = vmatpush2.msra.mxu0 0.0
    %3326 = vmatprep.subr.mxu0 0.0
    %3327 = vmatpush2.msra.mxu0 0.0
    %3328 = vmatprep.subr.mxu0 0.0
    %3329 = vmatpush2.msra.mxu0 0.0
    %3330 = vmatprep.subr.mxu0 0.0
    %3331 = vmatpush2.msra.mxu0 0.0
    %3332 = vmatprep.subr.mxu0 0.0
    %3333 = vmatpush2.msra.mxu0 0.0
    %3334 = vmatprep.subr.mxu0 0.0
    %3335 = vmatpush2.msra.mxu0 0.0
    %3336 = vmatprep.subr.mxu0 0.0
    %3337 = vmatpush2.msra.mxu0 0.0
    %3338 = vmatprep.subr.mxu0 0.0
    %3339 = vmatpush2.msra.mxu0 0.0
    %3340 = vmatprep.subr.mxu0 0.0
    %3341 = vmatpush2.msra.mxu0 0.0
    %3342 = vmatprep.subr.mxu0 0.0
    %3343 = vmatpush2.msra.mxu0 0.0
    %3344 = vmatprep.subr.mxu0 0.0
    %3345 = vmatpush2.msra.mxu0 0.0
    %3346 = vmatprep.subr.mxu0 0.0
    %3347 = vmatpush2.msra.mxu0 0.0
    %3348 = vmatprep.subr.mxu0 0.0
    %3349 = vmatpush2.msra.mxu0 0.0
    %3350 = vmatprep.subr.mxu0 0.0
    %3351 = vmatpush2.msra.mxu0 0.0
    %3352 = vmatprep.subr.mxu0 0.0
    %3353 = vmatpush2.msra.mxu0 0.0
    %3354 = vmatprep.subr.mxu0 0.0
    %3355 = vmatpush2.msra.mxu0 0.0
    %3356 = vmatprep.mubr.f32.mxu0 0.0
    %3357 = vmatmul.mubr.f32.gmra.mxu0 %v3290
    %v3358 = vpop.f32.mrf.mxu0
    %v3359 = vadd.f32 %v3284, %v3358
    %v3360 = vpop.f32.mrf.mxu0
    %3361 = vdwg.mxu0
    %v3362 = vadd.f32 %v3359, %v1116
    %v3363 = vmul.f32 %v3362, 0.5
    %v3364 = vtanh.pop %v3363
    %v3365 = vadd.f32 %v3364, 1.0
    %v3366 = vmul.f32 %v3365, 0.5
    %v3367 = vtanh.pop %v3362
    %v3368 = vmul.f32 %v3366, %v2870
    %3370 = vrot.lane.b32.xlu0 %v3367, 64
    %v3371 = vpop.permute.xlu0 %3370
    %v3373 = vmul.f32 %v3366, %v3371
    %3375 = vrot.lane.b32.xlu0 %v3373, 32
    %v3376 = vpop.permute.xlu0 %3375
    %v3378 = vadd.f32 %v3368, %v3376
    %v3379 = vtanh.pop %v3378
    %3381 = vrot.lane.b32.xlu0 %v3379, 64
    %v3382 = vpop.permute.xlu0 %3381
    %v3384 = vmul.f32 %v3366, %v3382
    %3385 = vmatprep.subr.mxu0 0.0
    %3386 = vmatpush1.msra.mxu0 0.0
    %3387 = vmatprep.subr.mxu0 0.0
    %3388 = vmatpush1.msra.mxu0 0.0
    %3389 = vmatprep.subr.mxu0 0.0
    %3390 = vmatpush1.msra.mxu0 0.0
    %3391 = vmatprep.subr.mxu0 0.0
    %3392 = vmatpush1.msra.mxu0 0.0
    %3393 = vmatprep.subr.mxu0 0.0
    %3394 = vmatpush1.msra.mxu0 0.0
    %3395 = vmatprep.subr.mxu0 0.0
    %3396 = vmatpush1.msra.mxu0 0.0
    %3397 = vmatprep.subr.mxu0 0.0
    %3398 = vmatpush1.msra.mxu0 0.0
    %3399 = vmatprep.subr.mxu0 0.0
    %3400 = vmatpush1.msra.mxu0 0.0
    %3401 = vmatprep.subr.mxu0 0.0
    %3402 = vmatpush1.msra.mxu0 0.0
    %3403 = vmatprep.subr.mxu0 0.0
    %3404 = vmatpush1.msra.mxu0 0.0
    %3405 = vmatprep.subr.mxu0 0.0
    %3406 = vmatpush1.msra.mxu0 0.0
    %3407 = vmatprep.subr.mxu0 0.0
    %3408 = vmatpush1.msra.mxu0 0.0
    %3409 = vmatprep.subr.mxu0 0.0
    %3410 = vmatpush1.msra.mxu0 %v677
    %3411 = vmatprep.subr.mxu0 0.0
    %3412 = vmatpush1.msra.mxu0 %v676
    %3413 = vmatprep.subr.mxu0 0.0
    %3414 = vmatpush1.msra.mxu0 %v675
    %3415 = vmatprep.subr.mxu0 0.0
    %3416 = vmatpush1.msra.mxu0 %v674
    %3417 = vmatprep.subr.mxu0 0.0
    %3418 = vmatpush2.msra.mxu0 0.0
    %3419 = vmatprep.subr.mxu0 0.0
    %3420 = vmatpush2.msra.mxu0 0.0
    %3421 = vmatprep.subr.mxu0 0.0
    %3422 = vmatpush2.msra.mxu0 0.0
    %3423 = vmatprep.subr.mxu0 0.0
    %3424 = vmatpush2.msra.mxu0 0.0
    %3425 = vmatprep.subr.mxu0 0.0
    %3426 = vmatpush2.msra.mxu0 0.0
    %3427 = vmatprep.subr.mxu0 0.0
    %3428 = vmatpush2.msra.mxu0 0.0
    %3429 = vmatprep.subr.mxu0 0.0
    %3430 = vmatpush2.msra.mxu0 0.0
    %3431 = vmatprep.subr.mxu0 0.0
    %3432 = vmatpush2.msra.mxu0 0.0
    %3433 = vmatprep.subr.mxu0 0.0
    %3434 = vmatpush2.msra.mxu0 0.0
    %3435 = vmatprep.subr.mxu0 0.0
    %3436 = vmatpush2.msra.mxu0 0.0
    %3437 = vmatprep.subr.mxu0 0.0
    %3438 = vmatpush2.msra.mxu0 0.0
    %3439 = vmatprep.subr.mxu0 0.0
    %3440 = vmatpush2.msra.mxu0 0.0
    %3441 = vmatprep.subr.mxu0 0.0
    %3442 = vmatpush2.msra.mxu0 0.0
    %3443 = vmatprep.subr.mxu0 0.0
    %3444 = vmatpush2.msra.mxu0 0.0
    %3445 = vmatprep.subr.mxu0 0.0
    %3446 = vmatpush2.msra.mxu0 0.0
    %3447 = vmatprep.subr.mxu0 0.0
    %3448 = vmatpush2.msra.mxu0 0.0
    %3449 = vmatprep.mubr.f32.mxu0 0.0
    %3450 = vmatmul.mubr.f32.gmra.mxu0 %v3122
    %v3451 = vpop.f32.mrf.mxu0
    %v3452 = vadd.f32 0.0, %v3451
    %v3453 = vpop.f32.mrf.mxu0
    %3454 = vdwg.mxu0
    %3456 = vrot.lane.b32.xlu0 %v3384, 32
    %v3457 = vpop.permute.xlu0 %3456
    %v3458 = vsel %vm678, %v3457, 0
    %3460 = vmatprep.subr.mxu0 0.0
    %3461 = vmatpush1.msra.mxu0 0.0
    %3462 = vmatprep.subr.mxu0 0.0
    %3463 = vmatpush1.msra.mxu0 0.0
    %3464 = vmatprep.subr.mxu0 0.0
    %3465 = vmatpush1.msra.mxu0 0.0
    %3466 = vmatprep.subr.mxu0 0.0
    %3467 = vmatpush1.msra.mxu0 0.0
    %3468 = vmatprep.subr.mxu0 0.0
    %3469 = vmatpush1.msra.mxu0 0.0
    %3470 = vmatprep.subr.mxu0 0.0
    %3471 = vmatpush1.msra.mxu0 0.0
    %3472 = vmatprep.subr.mxu0 0.0
    %3473 = vmatpush1.msra.mxu0 0.0
    %3474 = vmatprep.subr.mxu0 0.0
    %3475 = vmatpush1.msra.mxu0 0.0
    %3476 = vmatprep.subr.mxu0 0.0
    %3477 = vmatpush1.msra.mxu0 0.0
    %3478 = vmatprep.subr.mxu0 0.0
    %3479 = vmatpush1.msra.mxu0 0.0
    %3480 = vmatprep.subr.mxu0 0.0
    %3481 = vmatpush1.msra.mxu0 0.0
    %3482 = vmatprep.subr.mxu0 0.0
    %3483 = vmatpush1.msra.mxu0 0.0
    %3484 = vmatprep.subr.mxu0 0.0
    %3485 = vmatpush1.msra.mxu0 %v221
    %3486 = vmatprep.subr.mxu0 0.0
    %3487 = vmatpush1.msra.mxu0 %v216
    %3488 = vmatprep.subr.mxu0 0.0
    %3489 = vmatpush1.msra.mxu0 %v211
    %3490 = vmatprep.subr.mxu0 0.0
    %3491 = vmatpush1.msra.mxu0 %v206
    %3492 = vmatprep.subr.mxu0 0.0
    %3493 = vmatpush2.msra.mxu0 0.0
    %3494 = vmatprep.subr.mxu0 0.0
    %3495 = vmatpush2.msra.mxu0 0.0
    %3496 = vmatprep.subr.mxu0 0.0
    %3497 = vmatpush2.msra.mxu0 0.0
    %3498 = vmatprep.subr.mxu0 0.0
    %3499 = vmatpush2.msra.mxu0 0.0
    %3500 = vmatprep.subr.mxu0 0.0
    %3501 = vmatpush2.msra.mxu0 0.0
    %3502 = vmatprep.subr.mxu0 0.0
    %3503 = vmatpush2.msra.mxu0 0.0
    %3504 = vmatprep.subr.mxu0 0.0
    %3505 = vmatpush2.msra.mxu0 0.0
    %3506 = vmatprep.subr.mxu0 0.0
    %3507 = vmatpush2.msra.mxu0 0.0
    %3508 = vmatprep.subr.mxu0 0.0
    %3509 = vmatpush2.msra.mxu0 0.0
    %3510 = vmatprep.subr.mxu0 0.0
    %3511 = vmatpush2.msra.mxu0 0.0
    %3512 = vmatprep.subr.mxu0 0.0
    %3513 = vmatpush2.msra.mxu0 0.0
    %3514 = vmatprep.subr.mxu0 0.0
    %3515 = vmatpush2.msra.mxu0 0.0
    %3516 = vmatprep.subr.mxu0 0.0
    %3517 = vmatpush2.msra.mxu0 0.0
    %3518 = vmatprep.subr.mxu0 0.0
    %3519 = vmatpush2.msra.mxu0 0.0
    %3520 = vmatprep.subr.mxu0 0.0
    %3521 = vmatpush2.msra.mxu0 0.0
    %3522 = vmatprep.subr.mxu0 0.0
    %3523 = vmatpush2.msra.mxu0 0.0
    %3524 = vmatprep.mubr.f32.mxu0 0.0
    %3525 = vmatmul.mubr.f32.gmra.mxu0 %v3458
    %v3526 = vpop.f32.mrf.mxu0
    %v3527 = vadd.f32 %v3452, %v3526
    %v3528 = vpop.f32.mrf.mxu0
    %3529 = vdwg.mxu0
    %v3530 = vadd.f32 %v3527, %v3025
    %v3531 = vmul.f32 %v3530, 0.5
    %v3532 = vtanh.pop %v3531
    %v3533 = vadd.f32 %v3532, 1.0
    %v3534 = vmul.f32 %v3533, 0.5
    %v3535 = vtanh.pop %v3530
    %v3536 = vmul.f32 %v3534, %v3042
    %3538 = vrot.lane.b32.xlu0 %v3535, 64
    %v3539 = vpop.permute.xlu0 %3538
    %v3541 = vmul.f32 %v3534, %v3539
    %3543 = vrot.lane.b32.xlu0 %v3541, 32
    %v3544 = vpop.permute.xlu0 %3543
    %v3546 = vadd.f32 %v3536, %v3544
    %v3547 = vtanh.pop %v3546
    %3549 = vrot.lane.b32.xlu0 %v3547, 64
    %v3550 = vpop.permute.xlu0 %3549
    %v3552 = vmul.f32 %v3534, %v3550
    %3553 = vmatprep.subr.mxu0 0.0
    %3554 = vmatpush1.msra.mxu0 0.0
    %3555 = vmatprep.subr.mxu0 0.0
    %3556 = vmatpush1.msra.mxu0 0.0
    %3557 = vmatprep.subr.mxu0 0.0
    %3558 = vmatpush1.msra.mxu0 0.0
    %3559 = vmatprep.subr.mxu0 0.0
    %3560 = vmatpush1.msra.mxu0 0.0
    %3561 = vmatprep.subr.mxu0 0.0
    %3562 = vmatpush1.msra.mxu0 0.0
    %3563 = vmatprep.subr.mxu0 0.0
    %3564 = vmatpush1.msra.mxu0 0.0
    %3565 = vmatprep.subr.mxu0 0.0
    %3566 = vmatpush1.msra.mxu0 0.0
    %3567 = vmatprep.subr.mxu0 0.0
    %3568 = vmatpush1.msra.mxu0 0.0
    %3569 = vmatprep.subr.mxu0 0.0
    %3570 = vmatpush1.msra.mxu0 0.0
    %3571 = vmatprep.subr.mxu0 0.0
    %3572 = vmatpush1.msra.mxu0 0.0
    %3573 = vmatprep.subr.mxu0 0.0
    %3574 = vmatpush1.msra.mxu0 0.0
    %3575 = vmatprep.subr.mxu0 0.0
    %3576 = vmatpush1.msra.mxu0 0.0
    %3577 = vmatprep.subr.mxu0 0.0
    %3578 = vmatpush1.msra.mxu0 %v782
    %3579 = vmatprep.subr.mxu0 0.0
    %3580 = vmatpush1.msra.mxu0 %v781
    %3581 = vmatprep.subr.mxu0 0.0
    %3582 = vmatpush1.msra.mxu0 %v780
    %3583 = vmatprep.subr.mxu0 0.0
    %3584 = vmatpush1.msra.mxu0 %v779
    %3585 = vmatprep.subr.mxu0 0.0
    %3586 = vmatpush2.msra.mxu0 0.0
    %3587 = vmatprep.subr.mxu0 0.0
    %3588 = vmatpush2.msra.mxu0 0.0
    %3589 = vmatprep.subr.mxu0 0.0
    %3590 = vmatpush2.msra.mxu0 0.0
    %3591 = vmatprep.subr.mxu0 0.0
    %3592 = vmatpush2.msra.mxu0 0.0
    %3593 = vmatprep.subr.mxu0 0.0
    %3594 = vmatpush2.msra.mxu0 0.0
    %3595 = vmatprep.subr.mxu0 0.0
    %3596 = vmatpush2.msra.mxu0 0.0
    %3597 = vmatprep.subr.mxu0 0.0
    %3598 = vmatpush2.msra.mxu0 0.0
    %3599 = vmatprep.subr.mxu0 0.0
    %3600 = vmatpush2.msra.mxu0 0.0
    %3601 = vmatprep.subr.mxu0 0.0
    %3602 = vmatpush2.msra.mxu0 0.0
    %3603 = vmatprep.subr.mxu0 0.0
    %3604 = vmatpush2.msra.mxu0 0.0
    %3605 = vmatprep.subr.mxu0 0.0
    %3606 = vmatpush2.msra.mxu0 0.0
    %3607 = vmatprep.subr.mxu0 0.0
    %3608 = vmatpush2.msra.mxu0 0.0
    %3609 = vmatprep.subr.mxu0 0.0
    %3610 = vmatpush2.msra.mxu0 0.0
    %3611 = vmatprep.subr.mxu0 0.0
    %3612 = vmatpush2.msra.mxu0 0.0
    %3613 = vmatprep.subr.mxu0 0.0
    %3614 = vmatpush2.msra.mxu0 0.0
    %3615 = vmatprep.subr.mxu0 0.0
    %3616 = vmatpush2.msra.mxu0 0.0
    %3617 = vmatprep.mubr.f32.mxu0 0.0
    %3618 = vmatmul.mubr.f32.gmra.mxu0 %v3290
    %v3619 = vpop.f32.mrf.mxu0
    %v3620 = vadd.f32 0.0, %v3619
    %v3621 = vpop.f32.mrf.mxu0
    %3622 = vdwg.mxu0
    %3624 = vrot.lane.b32.xlu0 %v3552, 32
    %v3625 = vpop.permute.xlu0 %3624
    %v3626 = vsel %vm678, %v3625, 0
    %3628 = vmatprep.subr.mxu0 0.0
    %3629 = vmatpush1.msra.mxu0 0.0
    %3630 = vmatprep.subr.mxu0 0.0
    %3631 = vmatpush1.msra.mxu0 0.0
    %3632 = vmatprep.subr.mxu0 0.0
    %3633 = vmatpush1.msra.mxu0 0.0
    %3634 = vmatprep.subr.mxu0 0.0
    %3635 = vmatpush1.msra.mxu0 0.0
    %3636 = vmatprep.subr.mxu0 0.0
    %3637 = vmatpush1.msra.mxu0 0.0
    %3638 = vmatprep.subr.mxu0 0.0
    %3639 = vmatpush1.msra.mxu0 0.0
    %3640 = vmatprep.subr.mxu0 0.0
    %3641 = vmatpush1.msra.mxu0 0.0
    %3642 = vmatprep.subr.mxu0 0.0
    %3643 = vmatpush1.msra.mxu0 0.0
    %3644 = vmatprep.subr.mxu0 0.0
    %3645 = vmatpush1.msra.mxu0 0.0
    %3646 = vmatprep.subr.mxu0 0.0
    %3647 = vmatpush1.msra.mxu0 0.0
    %3648 = vmatprep.subr.mxu0 0.0
    %3649 = vmatpush1.msra.mxu0 0.0
    %3650 = vmatprep.subr.mxu0 0.0
    %3651 = vmatpush1.msra.mxu0 0.0
    %3652 = vmatprep.subr.mxu0 0.0
    %3653 = vmatpush1.msra.mxu0 %v778
    %3654 = vmatprep.subr.mxu0 0.0
    %3655 = vmatpush1.msra.mxu0 %v777
    %3656 = vmatprep.subr.mxu0 0.0
    %3657 = vmatpush1.msra.mxu0 %v776
    %3658 = vmatprep.subr.mxu0 0.0
    %3659 = vmatpush1.msra.mxu0 %v775
    %3660 = vmatprep.subr.mxu0 0.0
    %3661 = vmatpush2.msra.mxu0 0.0
    %3662 = vmatprep.subr.mxu0 0.0
    %3663 = vmatpush2.msra.mxu0 0.0
    %3664 = vmatprep.subr.mxu0 0.0
    %3665 = vmatpush2.msra.mxu0 0.0
    %3666 = vmatprep.subr.mxu0 0.0
    %3667 = vmatpush2.msra.mxu0 0.0
    %3668 = vmatprep.subr.mxu0 0.0
    %3669 = vmatpush2.msra.mxu0 0.0
    %3670 = vmatprep.subr.mxu0 0.0
    %3671 = vmatpush2.msra.mxu0 0.0
    %3672 = vmatprep.subr.mxu0 0.0
    %3673 = vmatpush2.msra.mxu0 0.0
    %3674 = vmatprep.subr.mxu0 0.0
    %3675 = vmatpush2.msra.mxu0 0.0
    %3676 = vmatprep.subr.mxu0 0.0
    %3677 = vmatpush2.msra.mxu0 0.0
    %3678 = vmatprep.subr.mxu0 0.0
    %3679 = vmatpush2.msra.mxu0 0.0
    %3680 = vmatprep.subr.mxu0 0.0
    %3681 = vmatpush2.msra.mxu0 0.0
    %3682 = vmatprep.subr.mxu0 0.0
    %3683 = vmatpush2.msra.mxu0 0.0
    %3684 = vmatprep.subr.mxu0 0.0
    %3685 = vmatpush2.msra.mxu0 0.0
    %3686 = vmatprep.subr.mxu0 0.0
    %3687 = vmatpush2.msra.mxu0 0.0
    %3688 = vmatprep.subr.mxu0 0.0
    %3689 = vmatpush2.msra.mxu0 0.0
    %3690 = vmatprep.subr.mxu0 0.0
    %3691 = vmatpush2.msra.mxu0 0.0
    %3692 = vmatprep.mubr.f32.mxu0 0.0
    %3693 = vmatmul.mubr.f32.gmra.mxu0 %v3626
    %v3694 = vpop.f32.mrf.mxu0
    %v3695 = vadd.f32 %v3620, %v3694
    %v3696 = vpop.f32.mrf.mxu0
    %3697 = vdwg.mxu0
    %v3698 = vadd.f32 %v3695, %v933
    %v3699 = vmul.f32 %v3698, 0.5
    %v3700 = vtanh.pop %v3699
    %v3701 = vadd.f32 %v3700, 1.0
    %v3702 = vmul.f32 %v3701, 0.5
    %v3703 = vtanh.pop %v3698
    %v3704 = vmul.f32 %v3702, %v3210
    %3706 = vrot.lane.b32.xlu0 %v3703, 64
    %v3707 = vpop.permute.xlu0 %3706
    %v3709 = vmul.f32 %v3702, %v3707
    %3711 = vrot.lane.b32.xlu0 %v3709, 32
    %v3712 = vpop.permute.xlu0 %3711
    %v3714 = vadd.f32 %v3704, %v3712
    %v3715 = vtanh.pop %v3714
    %3717 = vrot.lane.b32.xlu0 %v3715, 64
    %v3718 = vpop.permute.xlu0 %3717
    %v3720 = vmul.f32 %v3702, %v3718
    %3721 = vmatprep.subr.mxu0 0.0
    %3722 = vmatpush1.msra.mxu0 0.0
    %3723 = vmatprep.subr.mxu0 0.0
    %3724 = vmatpush1.msra.mxu0 0.0
    %3725 = vmatprep.subr.mxu0 0.0
    %3726 = vmatpush1.msra.mxu0 0.0
    %3727 = vmatprep.subr.mxu0 0.0
    %3728 = vmatpush1.msra.mxu0 0.0
    %3729 = vmatprep.subr.mxu0 0.0
    %3730 = vmatpush1.msra.mxu0 0.0
    %3731 = vmatprep.subr.mxu0 0.0
    %3732 = vmatpush1.msra.mxu0 0.0
    %3733 = vmatprep.subr.mxu0 0.0
    %3734 = vmatpush1.msra.mxu0 0.0
    %3735 = vmatprep.subr.mxu0 0.0
    %3736 = vmatpush1.msra.mxu0 0.0
    %3737 = vmatprep.subr.mxu0 0.0
    %3738 = vmatpush1.msra.mxu0 0.0
    %3739 = vmatprep.subr.mxu0 0.0
    %3740 = vmatpush1.msra.mxu0 0.0
    %3741 = vmatprep.subr.mxu0 0.0
    %3742 = vmatpush1.msra.mxu0 0.0
    %3743 = vmatprep.subr.mxu0 0.0
    %3744 = vmatpush1.msra.mxu0 0.0
    %3745 = vmatprep.subr.mxu0 0.0
    %3746 = vmatpush1.msra.mxu0 %v965
    %3747 = vmatprep.subr.mxu0 0.0
    %3748 = vmatpush1.msra.mxu0 %v964
    %3749 = vmatprep.subr.mxu0 0.0
    %3750 = vmatpush1.msra.mxu0 %v963
    %3751 = vmatprep.subr.mxu0 0.0
    %3752 = vmatpush1.msra.mxu0 %v962
    %3753 = vmatprep.subr.mxu0 0.0
    %3754 = vmatpush2.msra.mxu0 0.0
    %3755 = vmatprep.subr.mxu0 0.0
    %3756 = vmatpush2.msra.mxu0 0.0
    %3757 = vmatprep.subr.mxu0 0.0
    %3758 = vmatpush2.msra.mxu0 0.0
    %3759 = vmatprep.subr.mxu0 0.0
    %3760 = vmatpush2.msra.mxu0 0.0
    %3761 = vmatprep.subr.mxu0 0.0
    %3762 = vmatpush2.msra.mxu0 0.0
    %3763 = vmatprep.subr.mxu0 0.0
    %3764 = vmatpush2.msra.mxu0 0.0
    %3765 = vmatprep.subr.mxu0 0.0
    %3766 = vmatpush2.msra.mxu0 0.0
    %3767 = vmatprep.subr.mxu0 0.0
    %3768 = vmatpush2.msra.mxu0 0.0
    %3769 = vmatprep.subr.mxu0 0.0
    %3770 = vmatpush2.msra.mxu0 0.0
    %3771 = vmatprep.subr.mxu0 0.0
    %3772 = vmatpush2.msra.mxu0 0.0
    %3773 = vmatprep.subr.mxu0 0.0
    %3774 = vmatpush2.msra.mxu0 0.0
    %3775 = vmatprep.subr.mxu0 0.0
    %3776 = vmatpush2.msra.mxu0 0.0
    %3777 = vmatprep.subr.mxu0 0.0
    %3778 = vmatpush2.msra.mxu0 0.0
    %3779 = vmatprep.subr.mxu0 0.0
    %3780 = vmatpush2.msra.mxu0 0.0
    %3781 = vmatprep.subr.mxu0 0.0
    %3782 = vmatpush2.msra.mxu0 0.0
    %3783 = vmatprep.subr.mxu0 0.0
    %3784 = vmatpush2.msra.mxu0 0.0
    %3785 = vmatprep.mubr.f32.mxu0 0.0
    %3786 = vmatmul.mubr.f32.gmra.mxu0 %v3458
    %v3787 = vpop.f32.mrf.mxu0
    %v3788 = vadd.f32 0.0, %v3787
    %v3789 = vpop.f32.mrf.mxu0
    %3790 = vdwg.mxu0
    %3792 = vrot.lane.b32.xlu0 %v3720, 32
    %v3793 = vpop.permute.xlu0 %3792
    %v3794 = vsel %vm678, %v3793, 0
    %3796 = vmatprep.subr.mxu0 0.0
    %3797 = vmatpush1.msra.mxu0 0.0
    %3798 = vmatprep.subr.mxu0 0.0
    %3799 = vmatpush1.msra.mxu0 0.0
    %3800 = vmatprep.subr.mxu0 0.0
    %3801 = vmatpush1.msra.mxu0 0.0
    %3802 = vmatprep.subr.mxu0 0.0
    %3803 = vmatpush1.msra.mxu0 0.0
    %3804 = vmatprep.subr.mxu0 0.0
    %3805 = vmatpush1.msra.mxu0 0.0
    %3806 = vmatprep.subr.mxu0 0.0
    %3807 = vmatpush1.msra.mxu0 0.0
    %3808 = vmatprep.subr.mxu0 0.0
    %3809 = vmatpush1.msra.mxu0 0.0
    %3810 = vmatprep.subr.mxu0 0.0
    %3811 = vmatpush1.msra.mxu0 0.0
    %3812 = vmatprep.subr.mxu0 0.0
    %3813 = vmatpush1.msra.mxu0 0.0
    %3814 = vmatprep.subr.mxu0 0.0
    %3815 = vmatpush1.msra.mxu0 0.0
    %3816 = vmatprep.subr.mxu0 0.0
    %3817 = vmatpush1.msra.mxu0 0.0
    %3818 = vmatprep.subr.mxu0 0.0
    %3819 = vmatpush1.msra.mxu0 0.0
    %3820 = vmatprep.subr.mxu0 0.0
    %3821 = vmatpush1.msra.mxu0 %v961
    %3822 = vmatprep.subr.mxu0 0.0
    %3823 = vmatpush1.msra.mxu0 %v960
    %3824 = vmatprep.subr.mxu0 0.0
    %3825 = vmatpush1.msra.mxu0 %v959
    %3826 = vmatprep.subr.mxu0 0.0
    %3827 = vmatpush1.msra.mxu0 %v958
    %3828 = vmatprep.subr.mxu0 0.0
    %3829 = vmatpush2.msra.mxu0 0.0
    %3830 = vmatprep.subr.mxu0 0.0
    %3831 = vmatpush2.msra.mxu0 0.0
    %3832 = vmatprep.subr.mxu0 0.0
    %3833 = vmatpush2.msra.mxu0 0.0
    %3834 = vmatprep.subr.mxu0 0.0
    %3835 = vmatpush2.msra.mxu0 0.0
    %3836 = vmatprep.subr.mxu0 0.0
    %3837 = vmatpush2.msra.mxu0 0.0
    %3838 = vmatprep.subr.mxu0 0.0
    %3839 = vmatpush2.msra.mxu0 0.0
    %3840 = vmatprep.subr.mxu0 0.0
    %3841 = vmatpush2.msra.mxu0 0.0
    %3842 = vmatprep.subr.mxu0 0.0
    %3843 = vmatpush2.msra.mxu0 0.0
    %3844 = vmatprep.subr.mxu0 0.0
    %3845 = vmatpush2.msra.mxu0 0.0
    %3846 = vmatprep.subr.mxu0 0.0
    %3847 = vmatpush2.msra.mxu0 0.0
    %3848 = vmatprep.subr.mxu0 0.0
    %3849 = vmatpush2.msra.mxu0 0.0
    %3850 = vmatprep.subr.mxu0 0.0
    %3851 = vmatpush2.msra.mxu0 0.0
    %3852 = vmatprep.subr.mxu0 0.0
    %3853 = vmatpush2.msra.mxu0 0.0
    %3854 = vmatprep.subr.mxu0 0.0
    %3855 = vmatpush2.msra.mxu0 0.0
    %3856 = vmatprep.subr.mxu0 0.0
    %3857 = vmatpush2.msra.mxu0 0.0
    %3858 = vmatprep.subr.mxu0 0.0
    %3859 = vmatpush2.msra.mxu0 0.0
    %3860 = vmatprep.mubr.f32.mxu0 0.0
    %3861 = vmatmul.mubr.f32.gmra.mxu0 %v3794
    %v3862 = vpop.f32.mrf.mxu0
    %v3863 = vadd.f32 %v3788, %v3862
    %v3864 = vpop.f32.mrf.mxu0
    %3865 = vdwg.mxu0
    %v3866 = vadd.f32 %v3863, %v1116
    %v3867 = vmul.f32 %v3866, 0.5
    %v3868 = vtanh.pop %v3867
    %v3869 = vadd.f32 %v3868, 1.0
    %v3870 = vmul.f32 %v3869, 0.5
    %v3871 = vtanh.pop %v3866
    %v3872 = vmul.f32 %v3870, %v3378
    %3874 = vrot.lane.b32.xlu0 %v3871, 64
    %v3875 = vpop.permute.xlu0 %3874
    %v3877 = vmul.f32 %v3870, %v3875
    %3879 = vrot.lane.b32.xlu0 %v3877, 32
    %v3880 = vpop.permute.xlu0 %3879
    %v3882 = vadd.f32 %v3872, %v3880
    %v3883 = vtanh.pop %v3882
    %3885 = vrot.lane.b32.xlu0 %v3883, 64
    %v3886 = vpop.permute.xlu0 %3885
    %v3888 = vmul.f32 %v3870, %v3886
    %3889 = vmatprep.subr.mxu0 0.0
    %3890 = vmatpush1.msra.mxu0 0.0
    %3891 = vmatprep.subr.mxu0 0.0
    %3892 = vmatpush1.msra.mxu0 0.0
    %3893 = vmatprep.subr.mxu0 0.0
    %3894 = vmatpush1.msra.mxu0 0.0
    %3895 = vmatprep.subr.mxu0 0.0
    %3896 = vmatpush1.msra.mxu0 0.0
    %3897 = vmatprep.subr.mxu0 0.0
    %3898 = vmatpush1.msra.mxu0 0.0
    %3899 = vmatprep.subr.mxu0 0.0
    %3900 = vmatpush1.msra.mxu0 0.0
    %3901 = vmatprep.subr.mxu0 0.0
    %3902 = vmatpush1.msra.mxu0 0.0
    %3903 = vmatprep.subr.mxu0 0.0
    %3904 = vmatpush1.msra.mxu0 0.0
    %3905 = vmatprep.subr.mxu0 0.0
    %3906 = vmatpush1.msra.mxu0 0.0
    %3907 = vmatprep.subr.mxu0 0.0
    %3908 = vmatpush1.msra.mxu0 0.0
    %3909 = vmatprep.subr.mxu0 0.0
    %3910 = vmatpush1.msra.mxu0 0.0
    %3911 = vmatprep.subr.mxu0 0.0
    %3912 = vmatpush1.msra.mxu0 0.0
    %3913 = vmatprep.subr.mxu0 0.0
    %3914 = vmatpush1.msra.mxu0 %v677
    %3915 = vmatprep.subr.mxu0 0.0
    %3916 = vmatpush1.msra.mxu0 %v676
    %3917 = vmatprep.subr.mxu0 0.0
    %3918 = vmatpush1.msra.mxu0 %v675
    %3919 = vmatprep.subr.mxu0 0.0
    %3920 = vmatpush1.msra.mxu0 %v674
    %3921 = vmatprep.subr.mxu0 0.0
    %3922 = vmatpush2.msra.mxu0 0.0
    %3923 = vmatprep.subr.mxu0 0.0
    %3924 = vmatpush2.msra.mxu0 0.0
    %3925 = vmatprep.subr.mxu0 0.0
    %3926 = vmatpush2.msra.mxu0 0.0
    %3927 = vmatprep.subr.mxu0 0.0
    %3928 = vmatpush2.msra.mxu0 0.0
    %3929 = vmatprep.subr.mxu0 0.0
    %3930 = vmatpush2.msra.mxu0 0.0
    %3931 = vmatprep.subr.mxu0 0.0
    %3932 = vmatpush2.msra.mxu0 0.0
    %3933 = vmatprep.subr.mxu0 0.0
    %3934 = vmatpush2.msra.mxu0 0.0
    %3935 = vmatprep.subr.mxu0 0.0
    %3936 = vmatpush2.msra.mxu0 0.0
    %3937 = vmatprep.subr.mxu0 0.0
    %3938 = vmatpush2.msra.mxu0 0.0
    %3939 = vmatprep.subr.mxu0 0.0
    %3940 = vmatpush2.msra.mxu0 0.0
    %3941 = vmatprep.subr.mxu0 0.0
    %3942 = vmatpush2.msra.mxu0 0.0
    %3943 = vmatprep.subr.mxu0 0.0
    %3944 = vmatpush2.msra.mxu0 0.0
    %3945 = vmatprep.subr.mxu0 0.0
    %3946 = vmatpush2.msra.mxu0 0.0
    %3947 = vmatprep.subr.mxu0 0.0
    %3948 = vmatpush2.msra.mxu0 0.0
    %3949 = vmatprep.subr.mxu0 0.0
    %3950 = vmatpush2.msra.mxu0 0.0
    %3951 = vmatprep.subr.mxu0 0.0
    %3952 = vmatpush2.msra.mxu0 0.0
    %3953 = vmatprep.mubr.f32.mxu0 0.0
    %3954 = vmatmul.mubr.f32.gmra.mxu0 %v3626
    %v3955 = vpop.f32.mrf.mxu0
    %v3956 = vadd.f32 0.0, %v3955
    %v3957 = vpop.f32.mrf.mxu0
    %3958 = vdwg.mxu0
    %3960 = vrot.lane.b32.xlu0 %v3888, 32
    %v3961 = vpop.permute.xlu0 %3960
    %v3962 = vsel %vm678, %v3961, 0
    %3964 = vmatprep.subr.mxu0 0.0
    %3965 = vmatpush1.msra.mxu0 0.0
    %3966 = vmatprep.subr.mxu0 0.0
    %3967 = vmatpush1.msra.mxu0 0.0
    %3968 = vmatprep.subr.mxu0 0.0
    %3969 = vmatpush1.msra.mxu0 0.0
    %3970 = vmatprep.subr.mxu0 0.0
    %3971 = vmatpush1.msra.mxu0 0.0
    %3972 = vmatprep.subr.mxu0 0.0
    %3973 = vmatpush1.msra.mxu0 0.0
    %3974 = vmatprep.subr.mxu0 0.0
    %3975 = vmatpush1.msra.mxu0 0.0
    %3976 = vmatprep.subr.mxu0 0.0
    %3977 = vmatpush1.msra.mxu0 0.0
    %3978 = vmatprep.subr.mxu0 0.0
    %3979 = vmatpush1.msra.mxu0 0.0
    %3980 = vmatprep.subr.mxu0 0.0
    %3981 = vmatpush1.msra.mxu0 0.0
    %3982 = vmatprep.subr.mxu0 0.0
    %3983 = vmatpush1.msra.mxu0 0.0
    %3984 = vmatprep.subr.mxu0 0.0
    %3985 = vmatpush1.msra.mxu0 0.0
    %3986 = vmatprep.subr.mxu0 0.0
    %3987 = vmatpush1.msra.mxu0 0.0
    %3988 = vmatprep.subr.mxu0 0.0
    %3989 = vmatpush1.msra.mxu0 %v221
    %3990 = vmatprep.subr.mxu0 0.0
    %3991 = vmatpush1.msra.mxu0 %v216
    %3992 = vmatprep.subr.mxu0 0.0
    %3993 = vmatpush1.msra.mxu0 %v211
    %3994 = vmatprep.subr.mxu0 0.0
    %3995 = vmatpush1.msra.mxu0 %v206
    %3996 = vmatprep.subr.mxu0 0.0
    %3997 = vmatpush2.msra.mxu0 0.0
    %3998 = vmatprep.subr.mxu0 0.0
    %3999 = vmatpush2.msra.mxu0 0.0
    %4000 = vmatprep.subr.mxu0 0.0
    %4001 = vmatpush2.msra.mxu0 0.0
    %4002 = vmatprep.subr.mxu0 0.0
    %4003 = vmatpush2.msra.mxu0 0.0
    %4004 = vmatprep.subr.mxu0 0.0
    %4005 = vmatpush2.msra.mxu0 0.0
    %4006 = vmatprep.subr.mxu0 0.0
    %4007 = vmatpush2.msra.mxu0 0.0
    %4008 = vmatprep.subr.mxu0 0.0
    %4009 = vmatpush2.msra.mxu0 0.0
    %4010 = vmatprep.subr.mxu0 0.0
    %4011 = vmatpush2.msra.mxu0 0.0
    %4012 = vmatprep.subr.mxu0 0.0
    %4013 = vmatpush2.msra.mxu0 0.0
    %4014 = vmatprep.subr.mxu0 0.0
    %4015 = vmatpush2.msra.mxu0 0.0
    %4016 = vmatprep.subr.mxu0 0.0
    %4017 = vmatpush2.msra.mxu0 0.0
    %4018 = vmatprep.subr.mxu0 0.0
    %4019 = vmatpush2.msra.mxu0 0.0
    %4020 = vmatprep.subr.mxu0 0.0
    %4021 = vmatpush2.msra.mxu0 0.0
    %4022 = vmatprep.subr.mxu0 0.0
    %4023 = vmatpush2.msra.mxu0 0.0
    %4024 = vmatprep.subr.mxu0 0.0
    %4025 = vmatpush2.msra.mxu0 0.0
    %4026 = vmatprep.subr.mxu0 0.0
    %4027 = vmatpush2.msra.mxu0 0.0
    %4028 = vmatprep.mubr.f32.mxu0 0.0
    %4029 = vmatmul.mubr.f32.gmra.mxu0 %v3962
    %v4030 = vpop.f32.mrf.mxu0
    %v4031 = vadd.f32 %v3956, %v4030
    %v4032 = vpop.f32.mrf.mxu0
    %4033 = vdwg.mxu0
    %v4034 = vadd.f32 %v4031, %v3025
    %v4035 = vmul.f32 %v4034, 0.5
    %v4036 = vtanh.pop %v4035
    %v4037 = vadd.f32 %v4036, 1.0
    %v4038 = vmul.f32 %v4037, 0.5
    %v4039 = vtanh.pop %v4034
    %v4040 = vmul.f32 %v4038, %v3546
    %4042 = vrot.lane.b32.xlu0 %v4039, 64
    %v4043 = vpop.permute.xlu0 %4042
    %v4045 = vmul.f32 %v4038, %v4043
    %4047 = vrot.lane.b32.xlu0 %v4045, 32
    %v4048 = vpop.permute.xlu0 %4047
    %v4050 = vadd.f32 %v4040, %v4048
    %v4051 = vtanh.pop %v4050
    %4053 = vrot.lane.b32.xlu0 %v4051, 64
    %v4054 = vpop.permute.xlu0 %4053
    %v4056 = vmul.f32 %v4038, %v4054
    %4057 = vmatprep.subr.mxu0 0.0
    %4058 = vmatpush1.msra.mxu0 0.0
    %4059 = vmatprep.subr.mxu0 0.0
    %4060 = vmatpush1.msra.mxu0 0.0
    %4061 = vmatprep.subr.mxu0 0.0
    %4062 = vmatpush1.msra.mxu0 0.0
    %4063 = vmatprep.subr.mxu0 0.0
    %4064 = vmatpush1.msra.mxu0 0.0
    %4065 = vmatprep.subr.mxu0 0.0
    %4066 = vmatpush1.msra.mxu0 0.0
    %4067 = vmatprep.subr.mxu0 0.0
    %4068 = vmatpush1.msra.mxu0 0.0
    %4069 = vmatprep.subr.mxu0 0.0
    %4070 = vmatpush1.msra.mxu0 0.0
    %4071 = vmatprep.subr.mxu0 0.0
    %4072 = vmatpush1.msra.mxu0 0.0
    %4073 = vmatprep.subr.mxu0 0.0
    %4074 = vmatpush1.msra.mxu0 0.0
    %4075 = vmatprep.subr.mxu0 0.0
    %4076 = vmatpush1.msra.mxu0 0.0
    %4077 = vmatprep.subr.mxu0 0.0
    %4078 = vmatpush1.msra.mxu0 0.0
    %4079 = vmatprep.subr.mxu0 0.0
    %4080 = vmatpush1.msra.mxu0 0.0
    %4081 = vmatprep.subr.mxu0 0.0
    %4082 = vmatpush1.msra.mxu0 %v782
    %4083 = vmatprep.subr.mxu0 0.0
    %4084 = vmatpush1.msra.mxu0 %v781
    %4085 = vmatprep.subr.mxu0 0.0
    %4086 = vmatpush1.msra.mxu0 %v780
    %4087 = vmatprep.subr.mxu0 0.0
    %4088 = vmatpush1.msra.mxu0 %v779
    %4089 = vmatprep.subr.mxu0 0.0
    %4090 = vmatpush2.msra.mxu0 0.0
    %4091 = vmatprep.subr.mxu0 0.0
    %4092 = vmatpush2.msra.mxu0 0.0
    %4093 = vmatprep.subr.mxu0 0.0
    %4094 = vmatpush2.msra.mxu0 0.0
    %4095 = vmatprep.subr.mxu0 0.0
    %4096 = vmatpush2.msra.mxu0 0.0
    %4097 = vmatprep.subr.mxu0 0.0
    %4098 = vmatpush2.msra.mxu0 0.0
    %4099 = vmatprep.subr.mxu0 0.0
    %4100 = vmatpush2.msra.mxu0 0.0
    %4101 = vmatprep.subr.mxu0 0.0
    %4102 = vmatpush2.msra.mxu0 0.0
    %4103 = vmatprep.subr.mxu0 0.0
    %4104 = vmatpush2.msra.mxu0 0.0
    %4105 = vmatprep.subr.mxu0 0.0
    %4106 = vmatpush2.msra.mxu0 0.0
    %4107 = vmatprep.subr.mxu0 0.0
    %4108 = vmatpush2.msra.mxu0 0.0
    %4109 = vmatprep.subr.mxu0 0.0
    %4110 = vmatpush2.msra.mxu0 0.0
    %4111 = vmatprep.subr.mxu0 0.0
    %4112 = vmatpush2.msra.mxu0 0.0
    %4113 = vmatprep.subr.mxu0 0.0
    %4114 = vmatpush2.msra.mxu0 0.0
    %4115 = vmatprep.subr.mxu0 0.0
    %4116 = vmatpush2.msra.mxu0 0.0
    %4117 = vmatprep.subr.mxu0 0.0
    %4118 = vmatpush2.msra.mxu0 0.0
    %4119 = vmatprep.subr.mxu0 0.0
    %4120 = vmatpush2.msra.mxu0 0.0
    %4121 = vmatprep.mubr.f32.mxu0 0.0
    %4122 = vmatmul.mubr.f32.gmra.mxu0 %v3794
    %v4123 = vpop.f32.mrf.mxu0
    %v4124 = vadd.f32 0.0, %v4123
    %v4125 = vpop.f32.mrf.mxu0
    %4126 = vdwg.mxu0
    %4128 = vrot.lane.b32.xlu0 %v4056, 32
    %v4129 = vpop.permute.xlu0 %4128
    %v4130 = vsel %vm678, %v4129, 0
    %4132 = vmatprep.subr.mxu0 0.0
    %4133 = vmatpush1.msra.mxu0 0.0
    %4134 = vmatprep.subr.mxu0 0.0
    %4135 = vmatpush1.msra.mxu0 0.0
    %4136 = vmatprep.subr.mxu0 0.0
    %4137 = vmatpush1.msra.mxu0 0.0
    %4138 = vmatprep.subr.mxu0 0.0
    %4139 = vmatpush1.msra.mxu0 0.0
    %4140 = vmatprep.subr.mxu0 0.0
    %4141 = vmatpush1.msra.mxu0 0.0
    %4142 = vmatprep.subr.mxu0 0.0
    %4143 = vmatpush1.msra.mxu0 0.0
    %4144 = vmatprep.subr.mxu0 0.0
    %4145 = vmatpush1.msra.mxu0 0.0
    %4146 = vmatprep.subr.mxu0 0.0
    %4147 = vmatpush1.msra.mxu0 0.0
    %4148 = vmatprep.subr.mxu0 0.0
    %4149 = vmatpush1.msra.mxu0 0.0
    %4150 = vmatprep.subr.mxu0 0.0
    %4151 = vmatpush1.msra.mxu0 0.0
    %4152 = vmatprep.subr.mxu0 0.0
    %4153 = vmatpush1.msra.mxu0 0.0
    %4154 = vmatprep.subr.mxu0 0.0
    %4155 = vmatpush1.msra.mxu0 0.0
    %4156 = vmatprep.subr.mxu0 0.0
    %4157 = vmatpush1.msra.mxu0 %v778
    %4158 = vmatprep.subr.mxu0 0.0
    %4159 = vmatpush1.msra.mxu0 %v777
    %4160 = vmatprep.subr.mxu0 0.0
    %4161 = vmatpush1.msra.mxu0 %v776
    %4162 = vmatprep.subr.mxu0 0.0
    %4163 = vmatpush1.msra.mxu0 %v775
    %4164 = vmatprep.subr.mxu0 0.0
    %4165 = vmatpush2.msra.mxu0 0.0
    %4166 = vmatprep.subr.mxu0 0.0
    %4167 = vmatpush2.msra.mxu0 0.0
    %4168 = vmatprep.subr.mxu0 0.0
    %4169 = vmatpush2.msra.mxu0 0.0
    %4170 = vmatprep.subr.mxu0 0.0
    %4171 = vmatpush2.msra.mxu0 0.0
    %4172 = vmatprep.subr.mxu0 0.0
    %4173 = vmatpush2.msra.mxu0 0.0
    %4174 = vmatprep.subr.mxu0 0.0
    %4175 = vmatpush2.msra.mxu0 0.0
    %4176 = vmatprep.subr.mxu0 0.0
    %4177 = vmatpush2.msra.mxu0 0.0
    %4178 = vmatprep.subr.mxu0 0.0
    %4179 = vmatpush2.msra.mxu0 0.0
    %4180 = vmatprep.subr.mxu0 0.0
    %4181 = vmatpush2.msra.mxu0 0.0
    %4182 = vmatprep.subr.mxu0 0.0
    %4183 = vmatpush2.msra.mxu0 0.0
    %4184 = vmatprep.subr.mxu0 0.0
    %4185 = vmatpush2.msra.mxu0 0.0
    %4186 = vmatprep.subr.mxu0 0.0
    %4187 = vmatpush2.msra.mxu0 0.0
    %4188 = vmatprep.subr.mxu0 0.0
    %4189 = vmatpush2.msra.mxu0 0.0
    %4190 = vmatprep.subr.mxu0 0.0
    %4191 = vmatpush2.msra.mxu0 0.0
    %4192 = vmatprep.subr.mxu0 0.0
    %4193 = vmatpush2.msra.mxu0 0.0
    %4194 = vmatprep.subr.mxu0 0.0
    %4195 = vmatpush2.msra.mxu0 0.0
    %4196 = vmatprep.mubr.f32.mxu0 0.0
    %4197 = vmatmul.mubr.f32.gmra.mxu0 %v4130
    %v4198 = vpop.f32.mrf.mxu0
    %v4199 = vadd.f32 %v4124, %v4198
    %v4200 = vpop.f32.mrf.mxu0
    %4201 = vdwg.mxu0
    %v4202 = vadd.f32 %v4199, %v933
    %v4203 = vmul.f32 %v4202, 0.5
    %v4204 = vtanh.pop %v4203
    %v4205 = vadd.f32 %v4204, 1.0
    %v4206 = vmul.f32 %v4205, 0.5
    %v4207 = vtanh.pop %v4202
    %v4208 = vmul.f32 %v4206, %v3714
    %4210 = vrot.lane.b32.xlu0 %v4207, 64
    %v4211 = vpop.permute.xlu0 %4210
    %v4213 = vmul.f32 %v4206, %v4211
    %4215 = vrot.lane.b32.xlu0 %v4213, 32
    %v4216 = vpop.permute.xlu0 %4215
    %v4218 = vadd.f32 %v4208, %v4216
    %v4219 = vtanh.pop %v4218
    %4221 = vrot.lane.b32.xlu0 %v4219, 64
    %v4222 = vpop.permute.xlu0 %4221
    %v4224 = vmul.f32 %v4206, %v4222
    %4225 = vmatprep.subr.mxu0 0.0
    %4226 = vmatpush1.msra.mxu0 0.0
    %4227 = vmatprep.subr.mxu0 0.0
    %4228 = vmatpush1.msra.mxu0 0.0
    %4229 = vmatprep.subr.mxu0 0.0
    %4230 = vmatpush1.msra.mxu0 0.0
    %4231 = vmatprep.subr.mxu0 0.0
    %4232 = vmatpush1.msra.mxu0 0.0
    %4233 = vmatprep.subr.mxu0 0.0
    %4234 = vmatpush1.msra.mxu0 0.0
    %4235 = vmatprep.subr.mxu0 0.0
    %4236 = vmatpush1.msra.mxu0 0.0
    %4237 = vmatprep.subr.mxu0 0.0
    %4238 = vmatpush1.msra.mxu0 0.0
    %4239 = vmatprep.subr.mxu0 0.0
    %4240 = vmatpush1.msra.mxu0 0.0
    %4241 = vmatprep.subr.mxu0 0.0
    %4242 = vmatpush1.msra.mxu0 0.0
    %4243 = vmatprep.subr.mxu0 0.0
    %4244 = vmatpush1.msra.mxu0 0.0
    %4245 = vmatprep.subr.mxu0 0.0
    %4246 = vmatpush1.msra.mxu0 0.0
    %4247 = vmatprep.subr.mxu0 0.0
    %4248 = vmatpush1.msra.mxu0 0.0
    %4249 = vmatprep.subr.mxu0 0.0
    %4250 = vmatpush1.msra.mxu0 %v965
    %4251 = vmatprep.subr.mxu0 0.0
    %4252 = vmatpush1.msra.mxu0 %v964
    %4253 = vmatprep.subr.mxu0 0.0
    %4254 = vmatpush1.msra.mxu0 %v963
    %4255 = vmatprep.subr.mxu0 0.0
    %4256 = vmatpush1.msra.mxu0 %v962
    %4257 = vmatprep.subr.mxu0 0.0
    %4258 = vmatpush2.msra.mxu0 0.0
    %4259 = vmatprep.subr.mxu0 0.0
    %4260 = vmatpush2.msra.mxu0 0.0
    %4261 = vmatprep.subr.mxu0 0.0
    %4262 = vmatpush2.msra.mxu0 0.0
    %4263 = vmatprep.subr.mxu0 0.0
    %4264 = vmatpush2.msra.mxu0 0.0
    %4265 = vmatprep.subr.mxu0 0.0
    %4266 = vmatpush2.msra.mxu0 0.0
    %4267 = vmatprep.subr.mxu0 0.0
    %4268 = vmatpush2.msra.mxu0 0.0
    %4269 = vmatprep.subr.mxu0 0.0
    %4270 = vmatpush2.msra.mxu0 0.0
    %4271 = vmatprep.subr.mxu0 0.0
    %4272 = vmatpush2.msra.mxu0 0.0
    %4273 = vmatprep.subr.mxu0 0.0
    %4274 = vmatpush2.msra.mxu0 0.0
    %4275 = vmatprep.subr.mxu0 0.0
    %4276 = vmatpush2.msra.mxu0 0.0
    %4277 = vmatprep.subr.mxu0 0.0
    %4278 = vmatpush2.msra.mxu0 0.0
    %4279 = vmatprep.subr.mxu0 0.0
    %4280 = vmatpush2.msra.mxu0 0.0
    %4281 = vmatprep.subr.mxu0 0.0
    %4282 = vmatpush2.msra.mxu0 0.0
    %4283 = vmatprep.subr.mxu0 0.0
    %4284 = vmatpush2.msra.mxu0 0.0
    %4285 = vmatprep.subr.mxu0 0.0
    %4286 = vmatpush2.msra.mxu0 0.0
    %4287 = vmatprep.subr.mxu0 0.0
    %4288 = vmatpush2.msra.mxu0 0.0
    %4289 = vmatprep.mubr.f32.mxu0 0.0
    %4290 = vmatmul.mubr.f32.gmra.mxu0 %v3962
    %v4291 = vpop.f32.mrf.mxu0
    %v4292 = vadd.f32 0.0, %v4291
    %v4293 = vpop.f32.mrf.mxu0
    %4294 = vdwg.mxu0
    %4296 = vrot.lane.b32.xlu0 %v4224, 32
    %v4297 = vpop.permute.xlu0 %4296
    %v4298 = vsel %vm678, %v4297, 0
    %4300 = vmatprep.subr.mxu0 0.0
    %4301 = vmatpush1.msra.mxu0 0.0
    %4302 = vmatprep.subr.mxu0 0.0
    %4303 = vmatpush1.msra.mxu0 0.0
    %4304 = vmatprep.subr.mxu0 0.0
    %4305 = vmatpush1.msra.mxu0 0.0
    %4306 = vmatprep.subr.mxu0 0.0
    %4307 = vmatpush1.msra.mxu0 0.0
    %4308 = vmatprep.subr.mxu0 0.0
    %4309 = vmatpush1.msra.mxu0 0.0
    %4310 = vmatprep.subr.mxu0 0.0
    %4311 = vmatpush1.msra.mxu0 0.0
    %4312 = vmatprep.subr.mxu0 0.0
    %4313 = vmatpush1.msra.mxu0 0.0
    %4314 = vmatprep.subr.mxu0 0.0
    %4315 = vmatpush1.msra.mxu0 0.0
    %4316 = vmatprep.subr.mxu0 0.0
    %4317 = vmatpush1.msra.mxu0 0.0
    %4318 = vmatprep.subr.mxu0 0.0
    %4319 = vmatpush1.msra.mxu0 0.0
    %4320 = vmatprep.subr.mxu0 0.0
    %4321 = vmatpush1.msra.mxu0 0.0
    %4322 = vmatprep.subr.mxu0 0.0
    %4323 = vmatpush1.msra.mxu0 0.0
    %4324 = vmatprep.subr.mxu0 0.0
    %4325 = vmatpush1.msra.mxu0 %v961
    %4326 = vmatprep.subr.mxu0 0.0
    %4327 = vmatpush1.msra.mxu0 %v960
    %4328 = vmatprep.subr.mxu0 0.0
    %4329 = vmatpush1.msra.mxu0 %v959
    %4330 = vmatprep.subr.mxu0 0.0
    %4331 = vmatpush1.msra.mxu0 %v958
    %4332 = vmatprep.subr.mxu0 0.0
    %4333 = vmatpush2.msra.mxu0 0.0
    %4334 = vmatprep.subr.mxu0 0.0
    %4335 = vmatpush2.msra.mxu0 0.0
    %4336 = vmatprep.subr.mxu0 0.0
    %4337 = vmatpush2.msra.mxu0 0.0
    %4338 = vmatprep.subr.mxu0 0.0
    %4339 = vmatpush2.msra.mxu0 0.0
    %4340 = vmatprep.subr.mxu0 0.0
    %4341 = vmatpush2.msra.mxu0 0.0
    %4342 = vmatprep.subr.mxu0 0.0
    %4343 = vmatpush2.msra.mxu0 0.0
    %4344 = vmatprep.subr.mxu0 0.0
    %4345 = vmatpush2.msra.mxu0 0.0
    %4346 = vmatprep.subr.mxu0 0.0
    %4347 = vmatpush2.msra.mxu0 0.0
    %4348 = vmatprep.subr.mxu0 0.0
    %4349 = vmatpush2.msra.mxu0 0.0
    %4350 = vmatprep.subr.mxu0 0.0
    %4351 = vmatpush2.msra.mxu0 0.0
    %4352 = vmatprep.subr.mxu0 0.0
    %4353 = vmatpush2.msra.mxu0 0.0
    %4354 = vmatprep.subr.mxu0 0.0
    %4355 = vmatpush2.msra.mxu0 0.0
    %4356 = vmatprep.subr.mxu0 0.0
    %4357 = vmatpush2.msra.mxu0 0.0
    %4358 = vmatprep.subr.mxu0 0.0
    %4359 = vmatpush2.msra.mxu0 0.0
    %4360 = vmatprep.subr.mxu0 0.0
    %4361 = vmatpush2.msra.mxu0 0.0
    %4362 = vmatprep.subr.mxu0 0.0
    %4363 = vmatpush2.msra.mxu0 0.0
    %4364 = vmatprep.mubr.f32.mxu0 0.0
    %4365 = vmatmul.mubr.f32.gmra.mxu0 %v4298
    %v4366 = vpop.f32.mrf.mxu0
    %v4367 = vadd.f32 %v4292, %v4366
    %v4368 = vpop.f32.mrf.mxu0
    %4369 = vdwg.mxu0
    %v4370 = vadd.f32 %v4367, %v1116
    %v4371 = vmul.f32 %v4370, 0.5
    %v4372 = vtanh.pop %v4371
    %v4373 = vadd.f32 %v4372, 1.0
    %v4374 = vmul.f32 %v4373, 0.5
    %v4375 = vtanh.pop %v4370
    %v4376 = vmul.f32 %v4374, %v3882
    %4378 = vrot.lane.b32.xlu0 %v4375, 64
    %v4379 = vpop.permute.xlu0 %4378
    %v4381 = vmul.f32 %v4374, %v4379
    %4383 = vrot.lane.b32.xlu0 %v4381, 32
    %v4384 = vpop.permute.xlu0 %4383
    %v4386 = vadd.f32 %v4376, %v4384
    %v4387 = vtanh.pop %v4386
    %4389 = vrot.lane.b32.xlu0 %v4387, 64
    %v4390 = vpop.permute.xlu0 %4389
    %v4392 = vmul.f32 %v4374, %v4390
    %v4393 = vlaneseq
    %v4394 = vshrl.u32 %v4393, 7
    %v4395 = vsub.s32 0, %v4394
    %v4396 = vrot.slane %v224, %v4395
    %4398 = vmatprep.subr.mxu0 0.0
    %4399 = vmatpush1.msra.mxu0 0.0
    %4400 = vmatprep.subr.mxu0 0.0
    %4401 = vmatpush1.msra.mxu0 0.0
    %4402 = vmatprep.subr.mxu0 0.0
    %4403 = vmatpush1.msra.mxu0 0.0
    %4404 = vmatprep.subr.mxu0 0.0
    %4405 = vmatpush1.msra.mxu0 0.0
    %4406 = vmatprep.subr.mxu0 0.0
    %4407 = vmatpush1.msra.mxu0 0.0
    %4408 = vmatprep.subr.mxu0 0.0
    %4409 = vmatpush1.msra.mxu0 0.0
    %4410 = vmatprep.subr.mxu0 0.0
    %4411 = vmatpush1.msra.mxu0 0.0
    %4412 = vmatprep.subr.mxu0 0.0
    %4413 = vmatpush1.msra.mxu0 0.0
    %4414 = vmatprep.subr.mxu0 0.0
    %4415 = vmatpush1.msra.mxu0 0.0
    %4416 = vmatprep.subr.mxu0 0.0
    %4417 = vmatpush1.msra.mxu0 0.0
    %4418 = vmatprep.subr.mxu0 0.0
    %4419 = vmatpush1.msra.mxu0 0.0
    %4420 = vmatprep.subr.mxu0 0.0
    %4421 = vmatpush1.msra.mxu0 0.0
    %4422 = vmatprep.subr.mxu0 0.0
    %4423 = vmatpush1.msra.mxu0 %v125
    %4424 = vmatprep.subr.mxu0 0.0
    %4425 = vmatpush1.msra.mxu0 %v124
    %4426 = vmatprep.subr.mxu0 0.0
    %4427 = vmatpush1.msra.mxu0 %v123
    %4428 = vmatprep.subr.mxu0 0.0
    %4429 = vmatpush1.msra.mxu0 %v122
    %4430 = vmatprep.subr.mxu0 0.0
    %4431 = vmatpush2.msra.mxu0 0.0
    %4432 = vmatprep.subr.mxu0 0.0
    %4433 = vmatpush2.msra.mxu0 0.0
    %4434 = vmatprep.subr.mxu0 0.0
    %4435 = vmatpush2.msra.mxu0 0.0
    %4436 = vmatprep.subr.mxu0 0.0
    %4437 = vmatpush2.msra.mxu0 0.0
    %4438 = vmatprep.subr.mxu0 0.0
    %4439 = vmatpush2.msra.mxu0 0.0
    %4440 = vmatprep.subr.mxu0 0.0
    %4441 = vmatpush2.msra.mxu0 0.0
    %4442 = vmatprep.subr.mxu0 0.0
    %4443 = vmatpush2.msra.mxu0 0.0
    %4444 = vmatprep.subr.mxu0 0.0
    %4445 = vmatpush2.msra.mxu0 0.0
    %4446 = vmatprep.subr.mxu0 0.0
    %4447 = vmatpush2.msra.mxu0 0.0
    %4448 = vmatprep.subr.mxu0 0.0
    %4449 = vmatpush2.msra.mxu0 0.0
    %4450 = vmatprep.subr.mxu0 0.0
    %4451 = vmatpush2.msra.mxu0 0.0
    %4452 = vmatprep.subr.mxu0 0.0
    %4453 = vmatpush2.msra.mxu0 0.0
    %4454 = vmatprep.subr.mxu0 0.0
    %4455 = vmatpush2.msra.mxu0 0.0
    %4456 = vmatprep.subr.mxu0 0.0
    %4457 = vmatpush2.msra.mxu0 0.0
    %4458 = vmatprep.subr.mxu0 0.0
    %4459 = vmatpush2.msra.mxu0 0.0
    %4460 = vmatprep.subr.mxu0 0.0
    %4461 = vmatpush2.msra.mxu0 0.0
    %4462 = vmatprep.mubr.f32.mxu0 0.0
    %4463 = vmatmul.mubr.f32.gmra.mxu0 %v1405
    %v4464 = vpop.f32.mrf.mxu0
    %v4465 = vadd.f32 %v4396, %v4464
    %v4466 = vpop.f32.mrf.mxu0
    %4467 = vdwg.mxu0
    %4468 = vmatprep.subr.mxu0 0.0
    %4469 = vmatpush1.msra.mxu0 0.0
    %4470 = vmatprep.subr.mxu0 0.0
    %4471 = vmatpush1.msra.mxu0 0.0
    %4472 = vmatprep.subr.mxu0 0.0
    %4473 = vmatpush1.msra.mxu0 0.0
    %4474 = vmatprep.subr.mxu0 0.0
    %4475 = vmatpush1.msra.mxu0 0.0
    %4476 = vmatprep.subr.mxu0 0.0
    %4477 = vmatpush1.msra.mxu0 0.0
    %4478 = vmatprep.subr.mxu0 0.0
    %4479 = vmatpush1.msra.mxu0 0.0
    %4480 = vmatprep.subr.mxu0 0.0
    %4481 = vmatpush1.msra.mxu0 0.0
    %4482 = vmatprep.subr.mxu0 0.0
    %4483 = vmatpush1.msra.mxu0 0.0
    %4484 = vmatprep.subr.mxu0 0.0
    %4485 = vmatpush1.msra.mxu0 0.0
    %4486 = vmatprep.subr.mxu0 0.0
    %4487 = vmatpush1.msra.mxu0 0.0
    %4488 = vmatprep.subr.mxu0 0.0
    %4489 = vmatpush1.msra.mxu0 0.0
    %4490 = vmatprep.subr.mxu0 0.0
    %4491 = vmatpush1.msra.mxu0 0.0
    %4492 = vmatprep.subr.mxu0 0.0
    %4493 = vmatpush1.msra.mxu0 %v125
    %4494 = vmatprep.subr.mxu0 0.0
    %4495 = vmatpush1.msra.mxu0 %v124
    %4496 = vmatprep.subr.mxu0 0.0
    %4497 = vmatpush1.msra.mxu0 %v123
    %4498 = vmatprep.subr.mxu0 0.0
    %4499 = vmatpush1.msra.mxu0 %v122
    %4500 = vmatprep.subr.mxu0 0.0
    %4501 = vmatpush2.msra.mxu0 0.0
    %4502 = vmatprep.subr.mxu0 0.0
    %4503 = vmatpush2.msra.mxu0 0.0
    %4504 = vmatprep.subr.mxu0 0.0
    %4505 = vmatpush2.msra.mxu0 0.0
    %4506 = vmatprep.subr.mxu0 0.0
    %4507 = vmatpush2.msra.mxu0 0.0
    %4508 = vmatprep.subr.mxu0 0.0
    %4509 = vmatpush2.msra.mxu0 0.0
    %4510 = vmatprep.subr.mxu0 0.0
    %4511 = vmatpush2.msra.mxu0 0.0
    %4512 = vmatprep.subr.mxu0 0.0
    %4513 = vmatpush2.msra.mxu0 0.0
    %4514 = vmatprep.subr.mxu0 0.0
    %4515 = vmatpush2.msra.mxu0 0.0
    %4516 = vmatprep.subr.mxu0 0.0
    %4517 = vmatpush2.msra.mxu0 0.0
    %4518 = vmatprep.subr.mxu0 0.0
    %4519 = vmatpush2.msra.mxu0 0.0
    %4520 = vmatprep.subr.mxu0 0.0
    %4521 = vmatpush2.msra.mxu0 0.0
    %4522 = vmatprep.subr.mxu0 0.0
    %4523 = vmatpush2.msra.mxu0 0.0
    %4524 = vmatprep.subr.mxu0 0.0
    %4525 = vmatpush2.msra.mxu0 0.0
    %4526 = vmatprep.subr.mxu0 0.0
    %4527 = vmatpush2.msra.mxu0 0.0
    %4528 = vmatprep.subr.mxu0 0.0
    %4529 = vmatpush2.msra.mxu0 0.0
    %4530 = vmatprep.subr.mxu0 0.0
    %4531 = vmatpush2.msra.mxu0 0.0
    %4532 = vmatprep.mubr.f32.mxu0 0.0
    %4533 = vmatmul.mubr.f32.gmra.mxu0 %v1839
    %v4534 = vpop.f32.mrf.mxu0
    %v4535 = vadd.f32 %v4396, %v4534
    %v4536 = vpop.f32.mrf.mxu0
    %4537 = vdwg.mxu0
    %4538 = vmatprep.subr.mxu0 0.0
    %4539 = vmatpush1.msra.mxu0 0.0
    %4540 = vmatprep.subr.mxu0 0.0
    %4541 = vmatpush1.msra.mxu0 0.0
    %4542 = vmatprep.subr.mxu0 0.0
    %4543 = vmatpush1.msra.mxu0 0.0
    %4544 = vmatprep.subr.mxu0 0.0
    %4545 = vmatpush1.msra.mxu0 0.0
    %4546 = vmatprep.subr.mxu0 0.0
    %4547 = vmatpush1.msra.mxu0 0.0
    %4548 = vmatprep.subr.mxu0 0.0
    %4549 = vmatpush1.msra.mxu0 0.0
    %4550 = vmatprep.subr.mxu0 0.0
    %4551 = vmatpush1.msra.mxu0 0.0
    %4552 = vmatprep.subr.mxu0 0.0
    %4553 = vmatpush1.msra.mxu0 0.0
    %4554 = vmatprep.subr.mxu0 0.0
    %4555 = vmatpush1.msra.mxu0 0.0
    %4556 = vmatprep.subr.mxu0 0.0
    %4557 = vmatpush1.msra.mxu0 0.0
    %4558 = vmatprep.subr.mxu0 0.0
    %4559 = vmatpush1.msra.mxu0 0.0
    %4560 = vmatprep.subr.mxu0 0.0
    %4561 = vmatpush1.msra.mxu0 0.0
    %4562 = vmatprep.subr.mxu0 0.0
    %4563 = vmatpush1.msra.mxu0 %v125
    %4564 = vmatprep.subr.mxu0 0.0
    %4565 = vmatpush1.msra.mxu0 %v124
    %4566 = vmatprep.subr.mxu0 0.0
    %4567 = vmatpush1.msra.mxu0 %v123
    %4568 = vmatprep.subr.mxu0 0.0
    %4569 = vmatpush1.msra.mxu0 %v122
    %4570 = vmatprep.subr.mxu0 0.0
    %4571 = vmatpush2.msra.mxu0 0.0
    %4572 = vmatprep.subr.mxu0 0.0
    %4573 = vmatpush2.msra.mxu0 0.0
    %4574 = vmatprep.subr.mxu0 0.0
    %4575 = vmatpush2.msra.mxu0 0.0
    %4576 = vmatprep.subr.mxu0 0.0
    %4577 = vmatpush2.msra.mxu0 0.0
    %4578 = vmatprep.subr.mxu0 0.0
    %4579 = vmatpush2.msra.mxu0 0.0
    %4580 = vmatprep.subr.mxu0 0.0
    %4581 = vmatpush2.msra.mxu0 0.0
    %4582 = vmatprep.subr.mxu0 0.0
    %4583 = vmatpush2.msra.mxu0 0.0
    %4584 = vmatprep.subr.mxu0 0.0
    %4585 = vmatpush2.msra.mxu0 0.0
    %4586 = vmatprep.subr.mxu0 0.0
    %4587 = vmatpush2.msra.mxu0 0.0
    %4588 = vmatprep.subr.mxu0 0.0
    %4589 = vmatpush2.msra.mxu0 0.0
    %4590 = vmatprep.subr.mxu0 0.0
    %4591 = vmatpush2.msra.mxu0 0.0
    %4592 = vmatprep.subr.mxu0 0.0
    %4593 = vmatpush2.msra.mxu0 0.0
    %4594 = vmatprep.subr.mxu0 0.0
    %4595 = vmatpush2.msra.mxu0 0.0
    %4596 = vmatprep.subr.mxu0 0.0
    %4597 = vmatpush2.msra.mxu0 0.0
    %4598 = vmatprep.subr.mxu0 0.0
    %4599 = vmatpush2.msra.mxu0 0.0
    %4600 = vmatprep.subr.mxu0 0.0
    %4601 = vmatpush2.msra.mxu0 0.0
    %4602 = vmatprep.mubr.f32.mxu0 0.0
    %4603 = vmatmul.mubr.f32.gmra.mxu0 %v2273
    %v4604 = vpop.f32.mrf.mxu0
    %v4605 = vadd.f32 %v4396, %v4604
    %v4606 = vpop.f32.mrf.mxu0
    %4607 = vdwg.mxu0
    %4608 = vmatprep.subr.mxu0 0.0
    %4609 = vmatpush1.msra.mxu0 0.0
    %4610 = vmatprep.subr.mxu0 0.0
    %4611 = vmatpush1.msra.mxu0 0.0
    %4612 = vmatprep.subr.mxu0 0.0
    %4613 = vmatpush1.msra.mxu0 0.0
    %4614 = vmatprep.subr.mxu0 0.0
    %4615 = vmatpush1.msra.mxu0 0.0
    %4616 = vmatprep.subr.mxu0 0.0
    %4617 = vmatpush1.msra.mxu0 0.0
    %4618 = vmatprep.subr.mxu0 0.0
    %4619 = vmatpush1.msra.mxu0 0.0
    %4620 = vmatprep.subr.mxu0 0.0
    %4621 = vmatpush1.msra.mxu0 0.0
    %4622 = vmatprep.subr.mxu0 0.0
    %4623 = vmatpush1.msra.mxu0 0.0
    %4624 = vmatprep.subr.mxu0 0.0
    %4625 = vmatpush1.msra.mxu0 0.0
    %4626 = vmatprep.subr.mxu0 0.0
    %4627 = vmatpush1.msra.mxu0 0.0
    %4628 = vmatprep.subr.mxu0 0.0
    %4629 = vmatpush1.msra.mxu0 0.0
    %4630 = vmatprep.subr.mxu0 0.0
    %4631 = vmatpush1.msra.mxu0 0.0
    %4632 = vmatprep.subr.mxu0 0.0
    %4633 = vmatpush1.msra.mxu0 %v125
    %4634 = vmatprep.subr.mxu0 0.0
    %4635 = vmatpush1.msra.mxu0 %v124
    %4636 = vmatprep.subr.mxu0 0.0
    %4637 = vmatpush1.msra.mxu0 %v123
    %4638 = vmatprep.subr.mxu0 0.0
    %4639 = vmatpush1.msra.mxu0 %v122
    %4640 = vmatprep.subr.mxu0 0.0
    %4641 = vmatpush2.msra.mxu0 0.0
    %4642 = vmatprep.subr.mxu0 0.0
    %4643 = vmatpush2.msra.mxu0 0.0
    %4644 = vmatprep.subr.mxu0 0.0
    %4645 = vmatpush2.msra.mxu0 0.0
    %4646 = vmatprep.subr.mxu0 0.0
    %4647 = vmatpush2.msra.mxu0 0.0
    %4648 = vmatprep.subr.mxu0 0.0
    %4649 = vmatpush2.msra.mxu0 0.0
    %4650 = vmatprep.subr.mxu0 0.0
    %4651 = vmatpush2.msra.mxu0 0.0
    %4652 = vmatprep.subr.mxu0 0.0
    %4653 = vmatpush2.msra.mxu0 0.0
    %4654 = vmatprep.subr.mxu0 0.0
    %4655 = vmatpush2.msra.mxu0 0.0
    %4656 = vmatprep.subr.mxu0 0.0
    %4657 = vmatpush2.msra.mxu0 0.0
    %4658 = vmatprep.subr.mxu0 0.0
    %4659 = vmatpush2.msra.mxu0 0.0
    %4660 = vmatprep.subr.mxu0 0.0
    %4661 = vmatpush2.msra.mxu0 0.0
    %4662 = vmatprep.subr.mxu0 0.0
    %4663 = vmatpush2.msra.mxu0 0.0
    %4664 = vmatprep.subr.mxu0 0.0
    %4665 = vmatpush2.msra.mxu0 0.0
    %4666 = vmatprep.subr.mxu0 0.0
    %4667 = vmatpush2.msra.mxu0 0.0
    %4668 = vmatprep.subr.mxu0 0.0
    %4669 = vmatpush2.msra.mxu0 0.0
    %4670 = vmatprep.subr.mxu0 0.0
    %4671 = vmatpush2.msra.mxu0 0.0
    %4672 = vmatprep.mubr.f32.mxu0 0.0
    %4673 = vmatmul.mubr.f32.gmra.mxu0 %v2707
    %v4674 = vpop.f32.mrf.mxu0
    %v4675 = vadd.f32 %v4396, %v4674
    %v4676 = vpop.f32.mrf.mxu0
    %4677 = vdwg.mxu0
    %4678 = vmatprep.subr.mxu0 0.0
    %4679 = vmatpush1.msra.mxu0 0.0
    %4680 = vmatprep.subr.mxu0 0.0
    %4681 = vmatpush1.msra.mxu0 0.0
    %4682 = vmatprep.subr.mxu0 0.0
    %4683 = vmatpush1.msra.mxu0 0.0
    %4684 = vmatprep.subr.mxu0 0.0
    %4685 = vmatpush1.msra.mxu0 0.0
    %4686 = vmatprep.subr.mxu0 0.0
    %4687 = vmatpush1.msra.mxu0 0.0
    %4688 = vmatprep.subr.mxu0 0.0
    %4689 = vmatpush1.msra.mxu0 0.0
    %4690 = vmatprep.subr.mxu0 0.0
    %4691 = vmatpush1.msra.mxu0 0.0
    %4692 = vmatprep.subr.mxu0 0.0
    %4693 = vmatpush1.msra.mxu0 0.0
    %4694 = vmatprep.subr.mxu0 0.0
    %4695 = vmatpush1.msra.mxu0 0.0
    %4696 = vmatprep.subr.mxu0 0.0
    %4697 = vmatpush1.msra.mxu0 0.0
    %4698 = vmatprep.subr.mxu0 0.0
    %4699 = vmatpush1.msra.mxu0 0.0
    %4700 = vmatprep.subr.mxu0 0.0
    %4701 = vmatpush1.msra.mxu0 0.0
    %4702 = vmatprep.subr.mxu0 0.0
    %4703 = vmatpush1.msra.mxu0 %v125
    %4704 = vmatprep.subr.mxu0 0.0
    %4705 = vmatpush1.msra.mxu0 %v124
    %4706 = vmatprep.subr.mxu0 0.0
    %4707 = vmatpush1.msra.mxu0 %v123
    %4708 = vmatprep.subr.mxu0 0.0
    %4709 = vmatpush1.msra.mxu0 %v122
    %4710 = vmatprep.subr.mxu0 0.0
    %4711 = vmatpush2.msra.mxu0 0.0
    %4712 = vmatprep.subr.mxu0 0.0
    %4713 = vmatpush2.msra.mxu0 0.0
    %4714 = vmatprep.subr.mxu0 0.0
    %4715 = vmatpush2.msra.mxu0 0.0
    %4716 = vmatprep.subr.mxu0 0.0
    %4717 = vmatpush2.msra.mxu0 0.0
    %4718 = vmatprep.subr.mxu0 0.0
    %4719 = vmatpush2.msra.mxu0 0.0
    %4720 = vmatprep.subr.mxu0 0.0
    %4721 = vmatpush2.msra.mxu0 0.0
    %4722 = vmatprep.subr.mxu0 0.0
    %4723 = vmatpush2.msra.mxu0 0.0
    %4724 = vmatprep.subr.mxu0 0.0
    %4725 = vmatpush2.msra.mxu0 0.0
    %4726 = vmatprep.subr.mxu0 0.0
    %4727 = vmatpush2.msra.mxu0 0.0
    %4728 = vmatprep.subr.mxu0 0.0
    %4729 = vmatpush2.msra.mxu0 0.0
    %4730 = vmatprep.subr.mxu0 0.0
    %4731 = vmatpush2.msra.mxu0 0.0
    %4732 = vmatprep.subr.mxu0 0.0
    %4733 = vmatpush2.msra.mxu0 0.0
    %4734 = vmatprep.subr.mxu0 0.0
    %4735 = vmatpush2.msra.mxu0 0.0
    %4736 = vmatprep.subr.mxu0 0.0
    %4737 = vmatpush2.msra.mxu0 0.0
    %4738 = vmatprep.subr.mxu0 0.0
    %4739 = vmatpush2.msra.mxu0 0.0
    %4740 = vmatprep.subr.mxu0 0.0
    %4741 = vmatpush2.msra.mxu0 0.0
    %4742 = vmatprep.mubr.f32.mxu0 0.0
    %4743 = vmatmul.mubr.f32.gmra.mxu0 %v2950
    %v4744 = vpop.f32.mrf.mxu0
    %v4745 = vadd.f32 %v4396, %v4744
    %v4746 = vpop.f32.mrf.mxu0
    %4747 = vdwg.mxu0
    %4748 = vmatprep.subr.mxu0 0.0
    %4749 = vmatpush1.msra.mxu0 0.0
    %4750 = vmatprep.subr.mxu0 0.0
    %4751 = vmatpush1.msra.mxu0 0.0
    %4752 = vmatprep.subr.mxu0 0.0
    %4753 = vmatpush1.msra.mxu0 0.0
    %4754 = vmatprep.subr.mxu0 0.0
    %4755 = vmatpush1.msra.mxu0 0.0
    %4756 = vmatprep.subr.mxu0 0.0
    %4757 = vmatpush1.msra.mxu0 0.0
    %4758 = vmatprep.subr.mxu0 0.0
    %4759 = vmatpush1.msra.mxu0 0.0
    %4760 = vmatprep.subr.mxu0 0.0
    %4761 = vmatpush1.msra.mxu0 0.0
    %4762 = vmatprep.subr.mxu0 0.0
    %4763 = vmatpush1.msra.mxu0 0.0
    %4764 = vmatprep.subr.mxu0 0.0
    %4765 = vmatpush1.msra.mxu0 0.0
    %4766 = vmatprep.subr.mxu0 0.0
    %4767 = vmatpush1.msra.mxu0 0.0
    %4768 = vmatprep.subr.mxu0 0.0
    %4769 = vmatpush1.msra.mxu0 0.0
    %4770 = vmatprep.subr.mxu0 0.0
    %4771 = vmatpush1.msra.mxu0 0.0
    %4772 = vmatprep.subr.mxu0 0.0
    %4773 = vmatpush1.msra.mxu0 %v125
    %4774 = vmatprep.subr.mxu0 0.0
    %4775 = vmatpush1.msra.mxu0 %v124
    %4776 = vmatprep.subr.mxu0 0.0
    %4777 = vmatpush1.msra.mxu0 %v123
    %4778 = vmatprep.subr.mxu0 0.0
    %4779 = vmatpush1.msra.mxu0 %v122
    %4780 = vmatprep.subr.mxu0 0.0
    %4781 = vmatpush2.msra.mxu0 0.0
    %4782 = vmatprep.subr.mxu0 0.0
    %4783 = vmatpush2.msra.mxu0 0.0
    %4784 = vmatprep.subr.mxu0 0.0
    %4785 = vmatpush2.msra.mxu0 0.0
    %4786 = vmatprep.subr.mxu0 0.0
    %4787 = vmatpush2.msra.mxu0 0.0
    %4788 = vmatprep.subr.mxu0 0.0
    %4789 = vmatpush2.msra.mxu0 0.0
    %4790 = vmatprep.subr.mxu0 0.0
    %4791 = vmatpush2.msra.mxu0 0.0
    %4792 = vmatprep.subr.mxu0 0.0
    %4793 = vmatpush2.msra.mxu0 0.0
    %4794 = vmatprep.subr.mxu0 0.0
    %4795 = vmatpush2.msra.mxu0 0.0
    %4796 = vmatprep.subr.mxu0 0.0
    %4797 = vmatpush2.msra.mxu0 0.0
    %4798 = vmatprep.subr.mxu0 0.0
    %4799 = vmatpush2.msra.mxu0 0.0
    %4800 = vmatprep.subr.mxu0 0.0
    %4801 = vmatpush2.msra.mxu0 0.0
    %4802 = vmatprep.subr.mxu0 0.0
    %4803 = vmatpush2.msra.mxu0 0.0
    %4804 = vmatprep.subr.mxu0 0.0
    %4805 = vmatpush2.msra.mxu0 0.0
    %4806 = vmatprep.subr.mxu0 0.0
    %4807 = vmatpush2.msra.mxu0 0.0
    %4808 = vmatprep.subr.mxu0 0.0
    %4809 = vmatpush2.msra.mxu0 0.0
    %4810 = vmatprep.subr.mxu0 0.0
    %4811 = vmatpush2.msra.mxu0 0.0
    %4812 = vmatprep.mubr.f32.mxu0 0.0
    %4813 = vmatmul.mubr.f32.gmra.mxu0 %v3458
    %v4814 = vpop.f32.mrf.mxu0
    %v4815 = vadd.f32 %v4396, %v4814
    %v4816 = vpop.f32.mrf.mxu0
    %4817 = vdwg.mxu0
    %4818 = vmatprep.subr.mxu0 0.0
    %4819 = vmatpush1.msra.mxu0 0.0
    %4820 = vmatprep.subr.mxu0 0.0
    %4821 = vmatpush1.msra.mxu0 0.0
    %4822 = vmatprep.subr.mxu0 0.0
    %4823 = vmatpush1.msra.mxu0 0.0
    %4824 = vmatprep.subr.mxu0 0.0
    %4825 = vmatpush1.msra.mxu0 0.0
    %4826 = vmatprep.subr.mxu0 0.0
    %4827 = vmatpush1.msra.mxu0 0.0
    %4828 = vmatprep.subr.mxu0 0.0
    %4829 = vmatpush1.msra.mxu0 0.0
    %4830 = vmatprep.subr.mxu0 0.0
    %4831 = vmatpush1.msra.mxu0 0.0
    %4832 = vmatprep.subr.mxu0 0.0
    %4833 = vmatpush1.msra.mxu0 0.0
    %4834 = vmatprep.subr.mxu0 0.0
    %4835 = vmatpush1.msra.mxu0 0.0
    %4836 = vmatprep.subr.mxu0 0.0
    %4837 = vmatpush1.msra.mxu0 0.0
    %4838 = vmatprep.subr.mxu0 0.0
    %4839 = vmatpush1.msra.mxu0 0.0
    %4840 = vmatprep.subr.mxu0 0.0
    %4841 = vmatpush1.msra.mxu0 0.0
    %4842 = vmatprep.subr.mxu0 0.0
    %4843 = vmatpush1.msra.mxu0 %v125
    %4844 = vmatprep.subr.mxu0 0.0
    %4845 = vmatpush1.msra.mxu0 %v124
    %4846 = vmatprep.subr.mxu0 0.0
    %4847 = vmatpush1.msra.mxu0 %v123
    %4848 = vmatprep.subr.mxu0 0.0
    %4849 = vmatpush1.msra.mxu0 %v122
    %4850 = vmatprep.subr.mxu0 0.0
    %4851 = vmatpush2.msra.mxu0 0.0
    %4852 = vmatprep.subr.mxu0 0.0
    %4853 = vmatpush2.msra.mxu0 0.0
    %4854 = vmatprep.subr.mxu0 0.0
    %4855 = vmatpush2.msra.mxu0 0.0
    %4856 = vmatprep.subr.mxu0 0.0
    %4857 = vmatpush2.msra.mxu0 0.0
    %4858 = vmatprep.subr.mxu0 0.0
    %4859 = vmatpush2.msra.mxu0 0.0
    %4860 = vmatprep.subr.mxu0 0.0
    %4861 = vmatpush2.msra.mxu0 0.0
    %4862 = vmatprep.subr.mxu0 0.0
    %4863 = vmatpush2.msra.mxu0 0.0
    %4864 = vmatprep.subr.mxu0 0.0
    %4865 = vmatpush2.msra.mxu0 0.0
    %4866 = vmatprep.subr.mxu0 0.0
    %4867 = vmatpush2.msra.mxu0 0.0
    %4868 = vmatprep.subr.mxu0 0.0
    %4869 = vmatpush2.msra.mxu0 0.0
    %4870 = vmatprep.subr.mxu0 0.0
    %4871 = vmatpush2.msra.mxu0 0.0
    %4872 = vmatprep.subr.mxu0 0.0
    %4873 = vmatpush2.msra.mxu0 0.0
    %4874 = vmatprep.subr.mxu0 0.0
    %4875 = vmatpush2.msra.mxu0 0.0
    %4876 = vmatprep.subr.mxu0 0.0
    %4877 = vmatpush2.msra.mxu0 0.0
    %4878 = vmatprep.subr.mxu0 0.0
    %4879 = vmatpush2.msra.mxu0 0.0
    %4880 = vmatprep.subr.mxu0 0.0
    %4881 = vmatpush2.msra.mxu0 0.0
    %4882 = vmatprep.mubr.f32.mxu0 0.0
    %4883 = vmatmul.mubr.f32.gmra.mxu0 %v3962
    %v4884 = vpop.f32.mrf.mxu0
    %v4885 = vadd.f32 %v4396, %v4884
    %v4886 = vpop.f32.mrf.mxu0
    %4887 = vdwg.mxu0
    %4889 = vrot.lane.b32.xlu0 %v4392, 32
    %v4890 = vpop.permute.xlu0 %4889
    %v4891 = vsel %vm678, %v4890, 0
    %4893 = vmatprep.subr.mxu0 0.0
    %4894 = vmatpush1.msra.mxu0 0.0
    %4895 = vmatprep.subr.mxu0 0.0
    %4896 = vmatpush1.msra.mxu0 0.0
    %4897 = vmatprep.subr.mxu0 0.0
    %4898 = vmatpush1.msra.mxu0 0.0
    %4899 = vmatprep.subr.mxu0 0.0
    %4900 = vmatpush1.msra.mxu0 0.0
    %4901 = vmatprep.subr.mxu0 0.0
    %4902 = vmatpush1.msra.mxu0 0.0
    %4903 = vmatprep.subr.mxu0 0.0
    %4904 = vmatpush1.msra.mxu0 0.0
    %4905 = vmatprep.subr.mxu0 0.0
    %4906 = vmatpush1.msra.mxu0 0.0
    %4907 = vmatprep.subr.mxu0 0.0
    %4908 = vmatpush1.msra.mxu0 0.0
    %4909 = vmatprep.subr.mxu0 0.0
    %4910 = vmatpush1.msra.mxu0 0.0
    %4911 = vmatprep.subr.mxu0 0.0
    %4912 = vmatpush1.msra.mxu0 0.0
    %4913 = vmatprep.subr.mxu0 0.0
    %4914 = vmatpush1.msra.mxu0 0.0
    %4915 = vmatprep.subr.mxu0 0.0
    %4916 = vmatpush1.msra.mxu0 0.0
    %4917 = vmatprep.subr.mxu0 0.0
    %4918 = vmatpush1.msra.mxu0 %v125
    %4919 = vmatprep.subr.mxu0 0.0
    %4920 = vmatpush1.msra.mxu0 %v124
    %4921 = vmatprep.subr.mxu0 0.0
    %4922 = vmatpush1.msra.mxu0 %v123
    %4923 = vmatprep.subr.mxu0 0.0
    %4924 = vmatpush1.msra.mxu0 %v122
    %4925 = vmatprep.subr.mxu0 0.0
    %4926 = vmatpush2.msra.mxu0 0.0
    %4927 = vmatprep.subr.mxu0 0.0
    %4928 = vmatpush2.msra.mxu0 0.0
    %4929 = vmatprep.subr.mxu0 0.0
    %4930 = vmatpush2.msra.mxu0 0.0
    %4931 = vmatprep.subr.mxu0 0.0
    %4932 = vmatpush2.msra.mxu0 0.0
    %4933 = vmatprep.subr.mxu0 0.0
    %4934 = vmatpush2.msra.mxu0 0.0
    %4935 = vmatprep.subr.mxu0 0.0
    %4936 = vmatpush2.msra.mxu0 0.0
    %4937 = vmatprep.subr.mxu0 0.0
    %4938 = vmatpush2.msra.mxu0 0.0
    %4939 = vmatprep.subr.mxu0 0.0
    %4940 = vmatpush2.msra.mxu0 0.0
    %4941 = vmatprep.subr.mxu0 0.0
    %4942 = vmatpush2.msra.mxu0 0.0
    %4943 = vmatprep.subr.mxu0 0.0
    %4944 = vmatpush2.msra.mxu0 0.0
    %4945 = vmatprep.subr.mxu0 0.0
    %4946 = vmatpush2.msra.mxu0 0.0
    %4947 = vmatprep.subr.mxu0 0.0
    %4948 = vmatpush2.msra.mxu0 0.0
    %4949 = vmatprep.subr.mxu0 0.0
    %4950 = vmatpush2.msra.mxu0 0.0
    %4951 = vmatprep.subr.mxu0 0.0
    %4952 = vmatpush2.msra.mxu0 0.0
    %4953 = vmatprep.subr.mxu0 0.0
    %4954 = vmatpush2.msra.mxu0 0.0
    %4955 = vmatprep.subr.mxu0 0.0
    %4956 = vmatpush2.msra.mxu0 0.0
    %4957 = vmatprep.mubr.f32.mxu0 0.0
    %4958 = vmatmul.mubr.f32.gmra.mxu0 %v4891
    %v4959 = vpop.f32.mrf.mxu0
    %v4960 = vadd.f32 %v4396, %v4959
    %v4961 = vpop.f32.mrf.mxu0
    %4962 = vdwg.mxu0
    %4964 = vrot.lane.b32.xlu0 %v4535, 16
    %v4965 = vpop.permute.xlu0 %4964
    %4968 = vrot.lane.b32.xlu0 %v4605, 32
    %v4969 = vpop.permute.xlu0 %4968
    %4972 = vrot.lane.b32.xlu0 %v4675, 48
    %v4973 = vpop.permute.xlu0 %4972
    %4976 = vrot.lane.b32.xlu0 %v4745, 64
    %v4977 = vpop.permute.xlu0 %4976
    %4980 = vrot.lane.b32.xlu0 %v4815, 80
    %v4981 = vpop.permute.xlu0 %4980
    %4984 = vrot.lane.b32.xlu0 %v4885, 96
    %v4985 = vpop.permute.xlu0 %4984
    %4988 = vrot.lane.b32.xlu0 %v4960, 112
    %v4989 = vpop.permute.xlu0 %4988
    %v4991 = vsel %vm126, %v4465, %v4965
    %v4992 = vsel %vm678, %v4991, %v4969
    %vm4993 = vcmask 392192
    %v4994 = vsel %vm4993, %v4992, %v4973
    %vm4995 = vcmask 523264
    %v4996 = vsel %vm4995, %v4994, %v4977
    %vm4997 = vcmask 654336
    %v4998 = vsel %vm4997, %v4996, %v4981
    %vm4999 = vcmask 785408
    %v5000 = vsel %vm4999, %v4998, %v4985
    %vm5001 = vcmask 916480
    %v5002 = vsel %vm5001, %v5000, %v4989
    %5003 = vst [vmem:[%s12] sm:$0x3] %v5002
    // Predicated region
    $region74: #{aclstm_forward.1} parent=1 // pred_check
      _
    $region75: #{aclstm_forward.1} parent=1 // pred_check_branch
      %5005 = sbr.rel (0) target = $region77
    $region76: #{aclstm_forward.1} parent=1 // pred_region
      _
    $region77: #{aclstm_forward.1} parent=1 // pred_fallthru
      _
    // Predicated region
    $region78: #{aclstm_forward.1} parent=1 // pred_check
      _
    $region79: #{aclstm_forward.1} parent=1 // pred_check_branch
      %5007 = sbr.rel (0) target = $region81
    $region80: #{aclstm_forward.1} parent=1 // pred_region
      _
    $region81: #{aclstm_forward.1} parent=1 // pred_fallthru
      _
    %5008 = vsyncpa [#allocation3], 1
    %5009 = vsyncpa [#allocation5], 1
    %5010 = vsyncpa [#allocation8], 1
    %5011 = vsyncpa [#allocation11], 1

</llo_original>
